<compile_context>
chip_gen: v7x
topology: tpu7x:2x2x1
jax: 0.10.0
libtpu: 0.0.40
codegen_flags: <defaults>
</compile_context>

<pallas_src>
import functools
import math

import jax
import jax.numpy as jnp
from jax import lax
from jax.experimental import pallas as pl
from jax.experimental.pallas import tpu as pltpu

LANES = 128


def _round_up(x, m):
    return (x + m - 1) // m * m


def _vmem_limit_bytes():
    # Generation-aware scoped-VMEM cap: ~3/4 of physical VMEM (128 MiB on
    # v5e/v6e -> 96 MiB, 64 MiB on v7x -> 48 MiB), clamped to [32, 96] MiB.
    try:
        cap = int(pltpu.get_tpu_info().vmem_capacity_bytes)
    except Exception:
        cap = 64 * 1024 * 1024
    return int(min(max(cap * 3 // 4, 32 * 1024 * 1024), 96 * 1024 * 1024))


def _conv_rows(x, w, *, H, W, Cin, C_pad):
    """3x3 / stride-1 / pad-1 conv of one image as 9 shifted MXU matmuls.

    x : ((H+2)*W + 2, Cin) bf16  -- height-padded NHWC image flattened over
        (row, col), with one zero guard row at each end.
    w : (9*Cin, C_pad)     bf16  -- (di, dj, ci) -> co, channel-padded to 128.
    Returns (H*W, C_pad) f32 pre-norm conv output (no bias: it cancels in
    training-mode BatchNorm).
    """
    HW = H * W
    pix = lax.broadcasted_iota(jnp.int32, (HW, 1), 0)
    col = pix % W
    not_left = col != 0            # dj == 0 taps read col-1 -> invalid at c == 0
    not_right = col != (W - 1)     # dj == 2 taps read col+1 -> invalid at c == W-1

    acc = jnp.zeros((HW, C_pad), jnp.float32)
    for di in range(3):
        for dj in range(3):
            k = di * 3 + dj
            start = di * W + dj    # shifted window into the flattened image
            slab = x[start:start + HW, :]                       # (HW, Cin) bf16
            if dj == 0:
                slab = jnp.where(not_left, slab, jnp.zeros_like(slab))
            elif dj == 2:
                slab = jnp.where(not_right, slab, jnp.zeros_like(slab))
            acc = acc + jnp.dot(slab, w[k * Cin:(k + 1) * Cin, :],
                                preferred_element_type=jnp.float32)
    return acc


def conv_stats_kernel(xf_ref, w_ref, stat_ref, *, H, W, Cin, C_pad):
    """Pass 1: per-image conv -> per-channel sum / sum-of-squares (f32)."""
    acc = _conv_rows(xf_ref[0], w_ref[...], H=H, W=W, Cin=Cin, C_pad=C_pad)
    s = jnp.sum(acc, axis=0, keepdims=True)                     # (1, C_pad)
    ss = jnp.sum(acc * acc, axis=0, keepdims=True)              # (1, C_pad)
    stat_ref[...] = jnp.concatenate([s, ss], axis=0)[None]      # (1, 2, C_pad)


def conv_bn_act_kernel(xf_ref, w_ref, scale_ref, shift_ref, o_ref, *,
                       H, W, Cin, C_pad):
    """Pass 2: recompute conv, fused BN affine + ReLU, lane-dense store."""
    acc = _conv_rows(xf_ref[0], w_ref[...], H=H, W=W, Cin=Cin, C_pad=C_pad)
    y = jnp.maximum(acc * scale_ref[...] + shift_ref[...], 0.0)
    o_ref[...] = y[None].astype(o_ref.dtype)


def conv_bn_relu(x_nchw, w_oihw, bias, gamma, beta, *, eps=1e-3):
    """Forward of ConvBN(k=3, stride=1, padding=1, bias=True, norm='2d',
    act='relu'), PyTorch NCHW conventions, training-mode batch norm.

    `bias` is accepted for interface parity but is mathematically a no-op:
    a per-channel constant added before training-mode BatchNorm cancels
    exactly in the normalized output.
    """
    N, Cin, H, W = x_nchw.shape
    Cout, Cin_w, KH, KW = w_oihw.shape
    assert (KH, KW) == (3, 3) and Cin_w == Cin, "kernel hard-codes 3x3, groups=1"
    del bias                                     # cancels in training-mode BN
    HW = H * W
    K = KH * KW * Cin
    C_pad = _round_up(Cout, LANES)
    rows = (H + 2) * W + 2                       # flattened padded rows + guards

    # ---- layout glue (module boundary is NCHW; transposes kept there) ----
    x = jnp.transpose(x_nchw, (0, 2, 3, 1))                         # NHWC
    xh = jnp.pad(x, ((0, 0), (1, 1), (0, 0), (0, 0)))               # pad H only
    xf = xh.reshape(N, (H + 2) * W, Cin)
    xf = jnp.pad(xf, ((0, 0), (1, 1), (0, 0))).astype(jnp.bfloat16)  # + guards

    # Weights folded to (KH*KW*Cin, Cout), channel-padded to 128 lanes, bf16.
    w2d = jnp.transpose(w_oihw, (2, 3, 1, 0)).reshape(K, Cout)
    w2d = jnp.pad(w2d, ((0, 0), (0, C_pad - Cout))).astype(jnp.bfloat16)
    g2 = jnp.pad(gamma.astype(jnp.float32), (0, C_pad - Cout))
    beta2 = jnp.pad(beta.astype(jnp.float32), (0, C_pad - Cout))

    cparams = pltpu.CompilerParams(
        dimension_semantics=("parallel",),        # megacore split over images
        vmem_limit_bytes=_vmem_limit_bytes())

    xf_spec = pl.BlockSpec((1, rows, Cin), lambda n: (n, 0, 0))
    w_spec = pl.BlockSpec((K, C_pad), lambda n: (0, 0))

    # ---- pass 1: per-image BN partial statistics (no activation intermediate) ----
    stats = pl.pallas_call(
        functools.partial(conv_stats_kernel, H=H, W=W, Cin=Cin, C_pad=C_pad),
        out_shape=jax.ShapeDtypeStruct((N, 2, C_pad), jnp.float32),
        grid=(N,),
        in_specs=[xf_spec, w_spec],
        out_specs=pl.BlockSpec((1, 2, C_pad), lambda n: (n, 0, 0)),
        compiler_params=cparams,
    )(xf, w2d)

    # ---- tiny per-channel finalize in plain JAX (C_pad values) ----
    # NOTE: E[x^2] - mean^2 can cancel for huge batches; fine at these scales.
    cnt = float(N * HW)
    mean = jnp.sum(stats[:, 0, :], axis=0) / cnt
    ex2 = jnp.sum(stats[:, 1, :], axis=0) / cnt
    var = jnp.maximum(ex2 - mean * mean, 0.0)     # biased variance (training BN)
    scale = g2 * lax.rsqrt(var + eps)
    shift = beta2 - mean * scale

    # ---- pass 2: recompute conv, fused scale/shift + ReLU (lane-dense out) ----
    out_pad = pl.pallas_call(
        functools.partial(conv_bn_act_kernel, H=H, W=W, Cin=Cin, C_pad=C_pad),
        out_shape=jax.ShapeDtypeStruct((N, HW, C_pad), jnp.float32),
        grid=(N,),
        in_specs=[xf_spec, w_spec,
                  pl.BlockSpec((1, C_pad), lambda n: (0, 0)),
                  pl.BlockSpec((1, C_pad), lambda n: (0, 0))],
        out_specs=pl.BlockSpec((1, HW, C_pad), lambda n: (n, 0, 0)),
        compiler_params=cparams,
    )(xf, w2d, scale.reshape(1, C_pad), shift.reshape(1, C_pad))

    out = out_pad[:, :, :Cout].reshape(N, H, W, Cout)
    return jnp.transpose(out, (0, 3, 1, 2))       # back to NCHW (module API)


def _reference(x_nchw, w_oihw, bias, gamma, beta, *, eps=1e-3):
    y = lax.conv_general_dilated(
        x_nchw.astype(jnp.float32), w_oihw.astype(jnp.float32),
        window_strides=(1, 1), padding=[(1, 1), (1, 1)],
        dimension_numbers=("NCHW", "OIHW", "NCHW"))
    y = y + bias[None, :, None, None]
    mean = jnp.mean(y, axis=(0, 2, 3), keepdims=True)
    var = jnp.mean((y - mean) ** 2, axis=(0, 2, 3), keepdims=True)
    y = (y - mean) / jnp.sqrt(var + eps)
    y = y * gamma[None, :, None, None] + beta[None, :, None, None]
    return jnp.maximum(y, 0.0)


if __name__ == "__main__":
    N, Cin, H, W = 2, 4, 16, 16
    Cout, Kk = 8, 3

    key = jax.random.PRNGKey(0)
    kx, kw = jax.random.split(key)

    x = jax.random.normal(kx, (N, Cin, H, W), dtype=jnp.float32)

    # he_normal init == truncated normal (+/-2 std) with std = sqrt(2 / in_channels)
    std = math.sqrt(2.0 / Cin)
    w = (jax.random.truncated_normal(kw, -2.0, 2.0, (Cout, Cin, Kk, Kk),
                                     dtype=jnp.float32) * std)
    b = jnp.zeros((Cout,), jnp.float32)          # conv bias init: zeros
    gamma = jnp.ones((Cout,), jnp.float32)       # norm weight init: norm_init=1.0
    beta = jnp.zeros((Cout,), jnp.float32)       # norm bias default: zeros

    out = jax.block_until_ready(conv_bn_relu(x, w, b, gamma, beta, eps=1e-3))
    assert out.shape == (N, Cout, H, W), out.shape

    # The kernel feeds the MXU bf16 operands (with f32 accumulation), so check
    # tightly against a reference built from bf16-rounded operands and loosely
    # against the pure-f32 reference.
    x_bf = x.astype(jnp.bfloat16).astype(jnp.float32)
    w_bf = w.astype(jnp.bfloat16).astype(jnp.float32)
    ref_bf = _reference(x_bf, w_bf, b, gamma, beta, eps=1e-3)
    ref_f32 = _reference(x, w, b, gamma, beta, eps=1e-3)
    err_bf = float(jnp.max(jnp.abs(out - ref_bf)))
    err_f32 = float(jnp.max(jnp.abs(out - ref_f32)))
    assert jnp.allclose(out, ref_bf, rtol=2e-3, atol=2e-3), (err_bf, err_f32)
    assert jnp.allclose(out, ref_f32, rtol=6e-2, atol=6e-2), (err_bf, err_f32)

    print("KERNEL_OK")
</pallas_src>

<mosaic_0001>
module attributes {stable_mosaic.version = 11 : i64} {
  func.func @conv_stats_kernel(%arg0: i32, %arg1: memref<1x290x4xbf16, #tpu.memory_space<vmem>>, %arg2: memref<36x128xbf16, #tpu.memory_space<vmem>>, %arg3: memref<1x2x128xf32, #tpu.memory_space<vmem>>) attributes {dimension_semantics = [#tpu.dimension_semantics<parallel>], iteration_bounds = array<i64: 2>, scalar_prefetch = 0 : i64, scratch_operands = 0 : i64, tpu.core_type = #tpu.core_type<tc>, window_params = [{transform_indices = @transform_0, window_bounds = array<i64: 1, 290, 4>}, {pipeline_mode = #tpu.pipeline_mode<synchronous>, transform_indices = @transform_1, window_bounds = array<i64: 36, 128>}, {transform_indices = @transform_2, window_bounds = array<i64: 1, 2, 128>}]} {
    %c0 = arith.constant 0 : index
    %c0_0 = arith.constant 0 : index
    %c0_1 = arith.constant 0 : index
    %0 = vector.load %arg1[%c0, %c0_0, %c0_1] : memref<1x290x4xbf16, #tpu.memory_space<vmem>>, vector<1x290x4xbf16>
    %1 = vector.shape_cast %0 : vector<1x290x4xbf16> to vector<290x4xbf16>
    %c0_2 = arith.constant 0 : index
    %c0_3 = arith.constant 0 : index
    %2 = vector.load %arg2[%c0_2, %c0_3] : memref<36x128xbf16, #tpu.memory_space<vmem>>, vector<36x128xbf16>
    %3 = tpu.iota {dimensions = array<i32: 0>} : vector<256x1xi32>
    %c16_i32 = arith.constant 16 : i32
    %c0_i32 = arith.constant 0 : i32
    %4 = arith.cmpi eq, %c16_i32, %c0_i32 : i32
    %c1_i32 = arith.constant 1 : i32
    %5 = arith.select %4, %c1_i32, %c16_i32 : i32
    %6 = vector.broadcast %5 : i32 to vector<256x1xi32>
    %7 = arith.remsi %3, %6 : vector<256x1xi32>
    %c0_i32_4 = arith.constant 0 : i32
    %8 = vector.broadcast %c0_i32_4 : i32 to vector<256x1xi32>
    %9 = arith.cmpi ne, %7, %8 : vector<256x1xi32>
    %c0_i32_5 = arith.constant 0 : i32
    %10 = vector.broadcast %c0_i32_5 : i32 to vector<256x1xi32>
    %11 = arith.cmpi slt, %7, %10 : vector<256x1xi32>
    %c0_i32_6 = arith.constant 0 : i32
    %12 = arith.cmpi slt, %5, %c0_i32_6 : i32
    %13 = vector.broadcast %12 : i1 to vector<256x1xi1>
    %14 = vector.broadcast %13 : vector<256x1xi1> to vector<256x1xi1>
    %15 = arith.xori %11, %14 : vector<256x1xi1>
    %16 = arith.andi %15, %9 : vector<256x1xi1>
    %17 = vector.broadcast %5 : i32 to vector<256x1xi32>
    %18 = arith.addi %7, %17 : vector<256x1xi32>
    %19 = arith.select %16, %18, %7 : vector<256x1xi1>, vector<256x1xi32>
    %c0_i32_7 = arith.constant 0 : i32
    %20 = vector.broadcast %c0_i32_7 : i32 to vector<256x1xi32>
    %21 = arith.cmpi ne, %19, %20 : vector<256x1xi32>
    %c15_i32 = arith.constant 15 : i32
    %22 = vector.broadcast %c15_i32 : i32 to vector<256x1xi32>
    %23 = arith.cmpi ne, %19, %22 : vector<256x1xi32>
    %cst = arith.constant 0.000000e+00 : f32
    %24 = vector.broadcast %cst : f32 to vector<256x128xf32>
    %25 = vector.extract_strided_slice %1 {offsets = [0, 0], sizes = [256, 4], strides = [1, 1]} : vector<290x4xbf16> to vector<256x4xbf16>
    %cst_8 = arith.constant 0.000000e+00 : bf16
    %26 = vector.broadcast %cst_8 : bf16 to vector<256x4xbf16>
    %27 = vector.shape_cast %21 : vector<256x1xi1> to vector<256x1xi1>
    %28 = vector.broadcast %27 : vector<256x1xi1> to vector<256x4xi1>
    %29 = arith.select %28, %25, %26 : vector<256x4xi1>, vector<256x4xbf16>
    %30 = vector.extract_strided_slice %2 {offsets = [0, 0], sizes = [4, 128], strides = [1, 1]} : vector<36x128xbf16> to vector<4x128xbf16>
    %cst_9 = arith.constant dense<0.000000e+00> : vector<256x128xf32>
    %31 = tpu.matmul %29, %30, %cst_9 {dimension_numbers = #tpu.dot_dimension_numbers<[1], [0], [0], [1], [0, 0, 1, 1], [], []>} : vector<256x4xbf16>, vector<4x128xbf16>, vector<256x128xf32> -> vector<256x128xf32>
    %32 = arith.addf %24, %31 : vector<256x128xf32>
    %33 = vector.extract_strided_slice %1 {offsets = [1, 0], sizes = [256, 4], strides = [1, 1]} : vector<290x4xbf16> to vector<256x4xbf16>
    %34 = vector.extract_strided_slice %2 {offsets = [4, 0], sizes = [4, 128], strides = [1, 1]} : vector<36x128xbf16> to vector<4x128xbf16>
    %cst_10 = arith.constant dense<0.000000e+00> : vector<256x128xf32>
    %35 = tpu.matmul %33, %34, %cst_10 {dimension_numbers = #tpu.dot_dimension_numbers<[1], [0], [0], [1], [0, 0, 1, 1], [], []>} : vector<256x4xbf16>, vector<4x128xbf16>, vector<256x128xf32> -> vector<256x128xf32>
    %36 = arith.addf %32, %35 : vector<256x128xf32>
    %37 = vector.extract_strided_slice %1 {offsets = [2, 0], sizes = [256, 4], strides = [1, 1]} : vector<290x4xbf16> to vector<256x4xbf16>
    %cst_11 = arith.constant 0.000000e+00 : bf16
    %38 = vector.broadcast %cst_11 : bf16 to vector<256x4xbf16>
    %39 = vector.shape_cast %23 : vector<256x1xi1> to vector<256x1xi1>
    %40 = vector.broadcast %39 : vector<256x1xi1> to vector<256x4xi1>
    %41 = arith.select %40, %37, %38 : vector<256x4xi1>, vector<256x4xbf16>
    %42 = vector.extract_strided_slice %2 {offsets = [8, 0], sizes = [4, 128], strides = [1, 1]} : vector<36x128xbf16> to vector<4x128xbf16>
    %cst_12 = arith.constant dense<0.000000e+00> : vector<256x128xf32>
    %43 = tpu.matmul %41, %42, %cst_12 {dimension_numbers = #tpu.dot_dimension_numbers<[1], [0], [0], [1], [0, 0, 1, 1], [], []>} : vector<256x4xbf16>, vector<4x128xbf16>, vector<256x128xf32> -> vector<256x128xf32>
    %44 = arith.addf %36, %43 : vector<256x128xf32>
    %45 = vector.extract_strided_slice %1 {offsets = [16, 0], sizes = [256, 4], strides = [1, 1]} : vector<290x4xbf16> to vector<256x4xbf16>
    %cst_13 = arith.constant 0.000000e+00 : bf16
    %46 = vector.broadcast %cst_13 : bf16 to vector<256x4xbf16>
    %47 = vector.shape_cast %21 : vector<256x1xi1> to vector<256x1xi1>
    %48 = vector.broadcast %47 : vector<256x1xi1> to vector<256x4xi1>
    %49 = arith.select %48, %45, %46 : vector<256x4xi1>, vector<256x4xbf16>
    %50 = vector.extract_strided_slice %2 {offsets = [12, 0], sizes = [4, 128], strides = [1, 1]} : vector<36x128xbf16> to vector<4x128xbf16>
    %cst_14 = arith.constant dense<0.000000e+00> : vector<256x128xf32>
    %51 = tpu.matmul %49, %50, %cst_14 {dimension_numbers = #tpu.dot_dimension_numbers<[1], [0], [0], [1], [0, 0, 1, 1], [], []>} : vector<256x4xbf16>, vector<4x128xbf16>, vector<256x128xf32> -> vector<256x128xf32>
    %52 = arith.addf %44, %51 : vector<256x128xf32>
    %53 = vector.extract_strided_slice %1 {offsets = [17, 0], sizes = [256, 4], strides = [1, 1]} : vector<290x4xbf16> to vector<256x4xbf16>
    %54 = vector.extract_strided_slice %2 {offsets = [16, 0], sizes = [4, 128], strides = [1, 1]} : vector<36x128xbf16> to vector<4x128xbf16>
    %cst_15 = arith.constant dense<0.000000e+00> : vector<256x128xf32>
    %55 = tpu.matmul %53, %54, %cst_15 {dimension_numbers = #tpu.dot_dimension_numbers<[1], [0], [0], [1], [0, 0, 1, 1], [], []>} : vector<256x4xbf16>, vector<4x128xbf16>, vector<256x128xf32> -> vector<256x128xf32>
    %56 = arith.addf %52, %55 : vector<256x128xf32>
    %57 = vector.extract_strided_slice %1 {offsets = [18, 0], sizes = [256, 4], strides = [1, 1]} : vector<290x4xbf16> to vector<256x4xbf16>
    %cst_16 = arith.constant 0.000000e+00 : bf16
    %58 = vector.broadcast %cst_16 : bf16 to vector<256x4xbf16>
    %59 = vector.shape_cast %23 : vector<256x1xi1> to vector<256x1xi1>
    %60 = vector.broadcast %59 : vector<256x1xi1> to vector<256x4xi1>
    %61 = arith.select %60, %57, %58 : vector<256x4xi1>, vector<256x4xbf16>
    %62 = vector.extract_strided_slice %2 {offsets = [20, 0], sizes = [4, 128], strides = [1, 1]} : vector<36x128xbf16> to vector<4x128xbf16>
    %cst_17 = arith.constant dense<0.000000e+00> : vector<256x128xf32>
    %63 = tpu.matmul %61, %62, %cst_17 {dimension_numbers = #tpu.dot_dimension_numbers<[1], [0], [0], [1], [0, 0, 1, 1], [], []>} : vector<256x4xbf16>, vector<4x128xbf16>, vector<256x128xf32> -> vector<256x128xf32>
    %64 = arith.addf %56, %63 : vector<256x128xf32>
    %65 = vector.extract_strided_slice %1 {offsets = [32, 0], sizes = [256, 4], strides = [1, 1]} : vector<290x4xbf16> to vector<256x4xbf16>
    %cst_18 = arith.constant 0.000000e+00 : bf16
    %66 = vector.broadcast %cst_18 : bf16 to vector<256x4xbf16>
    %67 = vector.shape_cast %21 : vector<256x1xi1> to vector<256x1xi1>
    %68 = vector.broadcast %67 : vector<256x1xi1> to vector<256x4xi1>
    %69 = arith.select %68, %65, %66 : vector<256x4xi1>, vector<256x4xbf16>
    %70 = vector.extract_strided_slice %2 {offsets = [24, 0], sizes = [4, 128], strides = [1, 1]} : vector<36x128xbf16> to vector<4x128xbf16>
    %cst_19 = arith.constant dense<0.000000e+00> : vector<256x128xf32>
    %71 = tpu.matmul %69, %70, %cst_19 {dimension_numbers = #tpu.dot_dimension_numbers<[1], [0], [0], [1], [0, 0, 1, 1], [], []>} : vector<256x4xbf16>, vector<4x128xbf16>, vector<256x128xf32> -> vector<256x128xf32>
    %72 = arith.addf %64, %71 : vector<256x128xf32>
    %73 = vector.extract_strided_slice %1 {offsets = [33, 0], sizes = [256, 4], strides = [1, 1]} : vector<290x4xbf16> to vector<256x4xbf16>
    %74 = vector.extract_strided_slice %2 {offsets = [28, 0], sizes = [4, 128], strides = [1, 1]} : vector<36x128xbf16> to vector<4x128xbf16>
    %cst_20 = arith.constant dense<0.000000e+00> : vector<256x128xf32>
    %75 = tpu.matmul %73, %74, %cst_20 {dimension_numbers = #tpu.dot_dimension_numbers<[1], [0], [0], [1], [0, 0, 1, 1], [], []>} : vector<256x4xbf16>, vector<4x128xbf16>, vector<256x128xf32> -> vector<256x128xf32>
    %76 = arith.addf %72, %75 : vector<256x128xf32>
    %77 = vector.extract_strided_slice %1 {offsets = [34, 0], sizes = [256, 4], strides = [1, 1]} : vector<290x4xbf16> to vector<256x4xbf16>
    %cst_21 = arith.constant 0.000000e+00 : bf16
    %78 = vector.broadcast %cst_21 : bf16 to vector<256x4xbf16>
    %79 = vector.shape_cast %23 : vector<256x1xi1> to vector<256x1xi1>
    %80 = vector.broadcast %79 : vector<256x1xi1> to vector<256x4xi1>
    %81 = arith.select %80, %77, %78 : vector<256x4xi1>, vector<256x4xbf16>
    %82 = vector.extract_strided_slice %2 {offsets = [32, 0], sizes = [4, 128], strides = [1, 1]} : vector<36x128xbf16> to vector<4x128xbf16>
    %cst_22 = arith.constant dense<0.000000e+00> : vector<256x128xf32>
    %83 = tpu.matmul %81, %82, %cst_22 {dimension_numbers = #tpu.dot_dimension_numbers<[1], [0], [0], [1], [0, 0, 1, 1], [], []>} : vector<256x4xbf16>, vector<4x128xbf16>, vector<256x128xf32> -> vector<256x128xf32>
    %84 = arith.addf %76, %83 : vector<256x128xf32>
    %cst_23 = arith.constant dense<0.000000e+00> : vector<128xf32>
    %85 = vector.multi_reduction <add>, %84, %cst_23 [0] : vector<256x128xf32> to vector<128xf32>
    %86 = vector.shape_cast %85 : vector<128xf32> to vector<1x128xf32>
    %87 = arith.mulf %84, %84 : vector<256x128xf32>
    %cst_24 = arith.constant dense<0.000000e+00> : vector<128xf32>
    %88 = vector.multi_reduction <add>, %87, %cst_24 [0] : vector<256x128xf32> to vector<128xf32>
    %89 = vector.shape_cast %88 : vector<128xf32> to vector<1x128xf32>
    %90 = tpu.concatenate %86, %89 in 0 : vector<1x128xf32>, vector<1x128xf32> -> vector<2x128xf32>
    %91 = vector.shape_cast %90 : vector<2x128xf32> to vector<1x2x128xf32>
    %c0_25 = arith.constant 0 : index
    %c0_26 = arith.constant 0 : index
    %c0_27 = arith.constant 0 : index
    %92 = vector.load %arg3[%c0_25, %c0_26, %c0_27] : memref<1x2x128xf32, #tpu.memory_space<vmem>>, vector<1x2x128xf32>
    tpu.vector_store %arg3[%c0_25, %c0_26, %c0_27], %91 {strides = array<i32>} : memref<1x2x128xf32, #tpu.memory_space<vmem>>, vector<1x2x128xf32>,
    return
  }
  func.func @transform_0(%arg0: i32) -> (i32, i32, i32) {
    %c0_i32 = arith.constant 0 : i32
    %c0_i32_0 = arith.constant 0 : i32
    %c0_i32_1 = arith.constant 0 : i32
    return %arg0, %c0_i32, %c0_i32_0 : i32, i32, i32
  }
  func.func @transform_1(%arg0: i32) -> (i32, i32) {
    %c0_i32 = arith.constant 0 : i32
    %c0_i32_0 = arith.constant 0 : i32
    %c0_i32_1 = arith.constant 0 : i32
    return %c0_i32, %c0_i32_0 : i32, i32
  }
  func.func @transform_2(%arg0: i32) -> (i32, i32, i32) {
    %c0_i32 = arith.constant 0 : i32
    %c0_i32_0 = arith.constant 0 : i32
    %c0_i32_1 = arith.constant 0 : i32
    return %arg0, %c0_i32, %c0_i32_0 : i32, i32, i32
  }
}

</mosaic_0001>

<llo_original>
// kernel: tpu_custom_call.1
$region0: #{tpu_custom_call.1}
  #allocation0 [shape = 'u32[]', space=smem, size = 0x4, offset = 0x4, fixed_abs, tag = 'smem constant byte address 0x4 - core index']
  #allocation1 [shape = 'u32[144,128]{1,0:T(1,128)}', space=vmem, size = 0x12000, scoped, tag = 'internal scratch']
  %s0 = inlined_call_operand.vmem [shape: bf16[2,290,4], index: 0, kind: input, shape index: {}]
  %s1 = inlined_call_operand.vmem [shape: bf16[36,128], index: 1, kind: input, shape index: {}]
  %s2 = inlined_call_operand.hbm [shape: f32[2,2,128], index: 2, kind: output, shape index: {}]
  %s3 = sld [smem:[#allocation0]]
  $region41: #{tpu_custom_call.1} parent=0
    _
  %s5 = ssub.s32 1, %s3
  %s6 = scalar_select 0, %s5, %s3
  $region1: #{tpu_custom_call.1} parent=0
    #allocation2 [shape = 'u8[2048]{0}', space=vmem, size = 0x800, scoped, tag = 'output window, operand 0']
    #allocation3 [shape = 's32[2]{0}', space=sflag, size = 0x8, scoped, tag = 'scoped memory for tpu_custom_call.1']
    %7 = vsyncpa [#allocation3], 0
    %s8 = scalar_lea.sflag [#allocation3], 1
    %9 = vsyncpa %s8, 0
    loop: start=0, step=1, limit=4
    $region2: #{tpu_custom_call.1} parent=1 // loop_pre_header
      _
    $region3: #{tpu_custom_call.1} parent=1 // loop_header
      %s11 = sphi 0, %s15
      %p12 = scmp.ge.s32.totalorder %s11, 4
      %s21 = sphi 0, %s23
      %s24 = sphi 0, %s21
      %s25 = sphi 0, %s24
      %s41 = sphi 0, %s25
      %s45 = sphi 0, %s45
      %s47 = sphi 0, %s45
      %s48 = sphi 0, %s47
      %s62 = sphi 0, %s48
      %s68 = sphi 0, %s70
      %s71 = sphi 0, %s68
      %s72 = sphi 0, %s71
      %s88 = sphi 0, %s72
    $region4: #{tpu_custom_call.1} parent=1 // loop_header_branch
      %14 = sbr.rel (%p12) target = $region8
    $region5: #{tpu_custom_call.1} parent=1 // loop_body
      %s16 = ssub.s32 %s11, 1
      %s17 = ssub.s32 %s11, 2
      %s18 = sadd.s32 %s11, 1
      %s19 = ssub.s32 %s11, %s18
      %p20 = scmp.eq.s32.totalorder %s19, 0
      %s22 = sadd.s32 %s21, 1
      %s23 = scalar_select %p20, %s21, %s22
      %p26 = pneg %p20
      %p27 = scmp.eq.s32.totalorder %s11, 1
      %p28 = por %p26, %p27
      %p29 = scmp.ne.s32.totalorder %s21, %s24
      %p30 = scmp.eq.s32.totalorder %s11, 0
      %p31 = por %p29, %p30
      %p32 = scmp.ne.s32.totalorder %s21, %s24
      %p33 = scmp.eq.s32.totalorder %s16, 1
      %p34 = por %p32, %p33
      %p35 = scmp.ne.s32.totalorder %s24, %s25
      %p36 = scmp.eq.s32.totalorder %s16, 0
      %p37 = por %p35, %p36
      %p38 = scmp.ne.s32.totalorder %s24, %s25
      %p39 = scmp.eq.s32.totalorder %s17, 1
      %p40 = por %p38, %p39
      %p42 = scmp.ne.s32.totalorder %s25, %s41
      %p43 = scmp.eq.s32.totalorder %s17, 0
      %p44 = por %p42, %p43
      %s46 = sadd.s32 %s45, 1
      %p49 = scmp.eq.s32.totalorder %s11, 1
      %p50 = scmp.ne.s32.totalorder %s45, %s47
      %p51 = scmp.eq.s32.totalorder %s11, 0
      %p52 = por %p50, %p51
      %p53 = scmp.ne.s32.totalorder %s45, %s47
      %p54 = scmp.eq.s32.totalorder %s16, 1
      %p55 = por %p53, %p54
      %p56 = scmp.ne.s32.totalorder %s47, %s48
      %p57 = scmp.eq.s32.totalorder %s16, 0
      %p58 = por %p56, %p57
      %p59 = scmp.ne.s32.totalorder %s47, %s48
      %p60 = scmp.eq.s32.totalorder %s17, 1
      %p61 = por %p59, %p60
      %p63 = scmp.ne.s32.totalorder %s48, %s62
      %p64 = scmp.eq.s32.totalorder %s17, 0
      %p65 = por %p63, %p64
      %s66 = ssub.s32 %s11, %s18
      %p67 = scmp.eq.s32.totalorder %s66, 0
      %s69 = sadd.s32 %s68, 1
      %s70 = scalar_select %p67, %s68, %s69
      %p73 = pneg %p67
      %p74 = scmp.eq.s32.totalorder %s11, 1
      %p75 = por %p73, %p74
      %p76 = scmp.ne.s32.totalorder %s68, %s71
      %p77 = scmp.eq.s32.totalorder %s11, 0
      %p78 = por %p76, %p77
      %p79 = scmp.ne.s32.totalorder %s68, %s71
      %p80 = scmp.eq.s32.totalorder %s16, 1
      %p81 = por %p79, %p80
      %p82 = scmp.ne.s32.totalorder %s71, %s72
      %p83 = scmp.eq.s32.totalorder %s16, 0
      %p84 = por %p82, %p83
      %p85 = scmp.ne.s32.totalorder %s71, %s72
      %p86 = scmp.eq.s32.totalorder %s17, 1
      %p87 = por %p85, %p86
      %p89 = scmp.ne.s32.totalorder %s72, %s88
      %p90 = scmp.eq.s32.totalorder %s17, 0
      %p91 = por %p89, %p90
      %p92 = scmp.le.s32.totalorder 1, %s11
      %p93 = scmp.lt.s32.totalorder %s11, 3
      %p94 = pnand %p92, %p93
      %p95 = pneg %p94
      // Predicated region
      $region9: #{tpu_custom_call.1} parent=5 // pred_check
        _
      $region10: #{tpu_custom_call.1} parent=5 // pred_check_branch
        %97 = sbr.rel (%p94) target = $region12
      $region11: #{tpu_custom_call.1} parent=5 // pred_region
        %s98 = ssub.s32 %s11, 1
        // Predicated region
        $region13: #{tpu_custom_call.1} parent=11 // pred_check
          %p99 = pneg %p58
        $region14: #{tpu_custom_call.1} parent=11 // pred_check_branch
          %101 = sbr.rel (%p99) target = $region16
        $region15: #{tpu_custom_call.1} parent=11 // pred_region
          _
        $region16: #{tpu_custom_call.1} parent=11 // pred_fallthru
          _
      $region12: #{tpu_custom_call.1} parent=5 // pred_fallthru
        _
      %p102 = scmp.lt.s32.totalorder %s11, 2
      // Predicated region
      $region17: #{tpu_custom_call.1} parent=5 // pred_check
        %p103 = pneg %p102
      $region18: #{tpu_custom_call.1} parent=5 // pred_check_branch
        %105 = sbr.rel (%p103) target = $region20
      $region19: #{tpu_custom_call.1} parent=5 // pred_region
        // Predicated region
        $region21: #{tpu_custom_call.1} parent=19 // pred_check
          %p106 = pneg %p31
        $region22: #{tpu_custom_call.1} parent=19 // pred_check_branch
          %108 = sbr.rel (%p106) target = $region24
        $region23: #{tpu_custom_call.1} parent=19 // pred_region
          %p109 = scmp.lt.s32.totalorder %s11, 1
          %s110 = scalar_select %p109, %s11, 1
          %s111 = smul.addr %s110, 37
          %s112 = smul.addr %s111, 4
          %s113 = scalar_lea.vmem %s0, %s112
        $region24: #{tpu_custom_call.1} parent=19 // pred_fallthru
          _
      $region20: #{tpu_custom_call.1} parent=5 // pred_fallthru
        _
      %p114 = scmp.le.s32.totalorder 1, %s11
      %p115 = scmp.lt.s32.totalorder %s11, 3
      %p116 = pnand %p114, %p115
      %p117 = pneg %p116
      // Predicated region
      $region25: #{tpu_custom_call.1} parent=5 // pred_check
        _
      $region26: #{tpu_custom_call.1} parent=5 // pred_check_branch
        %119 = sbr.rel (%p116) target = $region28
      $region27: #{tpu_custom_call.1} parent=5 // pred_region
        %s120 = ssub.s32 %s11, 1
        %p121 = scmp.lt.s32.totalorder %s16, 1
        %s122 = scalar_select %p121, %s16, 1
        %s123 = smul.addr %s122, 37
        %s124 = smul.addr %s123, 4
        %s125 = scalar_lea.vmem %s0, %s124
        %p126 = pneg %p37
        %p127 = pneg %p34
        %p128 = pneg %p58
        %p129 = pneg %p55
        %p130 = pneg %p84
        %p131 = pneg %p81
        %s132 = sand.u32 %s71, 1
        %s133 = scalar_lea.sflag [#allocation3], %s132
        %s134 = sand.u32 %s71, 1
        %s135 = smul.addr %s134, 2
        %s136 = scalar_lea.vmem [#allocation2], %s135
        %p137 = scmp.lt.s32.totalorder %s16, 1
        %s138 = scalar_select %p137, %s16, 1
        %s139 = smul.addr %s138, 37
        %s140 = smul.addr %s139, 4
        %s141 = scalar_lea.vmem %s0, %s140
        %v145 = vld [vmem:[%s141] sm:$0xf]
        %v146 = vld [vmem:[%s141 + $0x4] sm:$0xf]
        %v147 = vld [vmem:[%s141 + $0x8] sm:$0xf]
        %v148 = vld [vmem:[%s141 + $0xc] sm:$0xf]
        %v149 = vld [vmem:[%s141 + $0x10] sm:$0xf]
        %v150 = vld [vmem:[%s141 + $0x14] sm:$0xf]
        %v151 = vld [vmem:[%s141 + $0x18] sm:$0xf]
        %v152 = vld [vmem:[%s141 + $0x1c] sm:$0xf]
        %v153 = vld [vmem:[%s141 + $0x20] sm:$0xf]
        %v154 = vld [vmem:[%s141 + $0x24] sm:$0xf]
        %v155 = vld [vmem:[%s141 + $0x28] sm:$0xf]
        %v156 = vld [vmem:[%s141 + $0x2c] sm:$0xf]
        %v157 = vld [vmem:[%s141 + $0x30] sm:$0xf]
        %v158 = vld [vmem:[%s141 + $0x34] sm:$0xf]
        %v159 = vld [vmem:[%s141 + $0x38] sm:$0xf]
        %v160 = vld [vmem:[%s141 + $0x3c] sm:$0xf]
        %v161 = vld [vmem:[%s141 + $0x40] sm:$0xf]
        %v162 = vld [vmem:[%s141 + $0x44] sm:$0xf]
        %v163 = vld [vmem:[%s141 + $0x48] sm:$0xf]
        %v164 = vld [vmem:[%s141 + $0x4c] sm:$0xf]
        %v165 = vld [vmem:[%s141 + $0x50] sm:$0xf]
        %v166 = vld [vmem:[%s141 + $0x54] sm:$0xf]
        %v167 = vld [vmem:[%s141 + $0x58] sm:$0xf]
        %v168 = vld [vmem:[%s141 + $0x5c] sm:$0xf]
        %v169 = vld [vmem:[%s141 + $0x60] sm:$0xf]
        %v170 = vld [vmem:[%s141 + $0x64] sm:$0xf]
        %v171 = vld [vmem:[%s141 + $0x68] sm:$0xf]
        %v172 = vld [vmem:[%s141 + $0x6c] sm:$0xf]
        %v173 = vld [vmem:[%s141 + $0x70] sm:$0xf]
        %v174 = vld [vmem:[%s141 + $0x74] sm:$0xf]
        %v175 = vld [vmem:[%s141 + $0x78] sm:$0xf]
        %v176 = vld [vmem:[%s141 + $0x7c] sm:$0xf]
        %v177 = vld [vmem:[%s141 + $0x80] sm:$0xf]
        %v178 = vld [vmem:[%s141 + $0x84] sm:$0xf]
        %v179 = vld [vmem:[%s141 + $0x88] sm:$0xf]
        %v180 = vld [vmem:[%s141 + $0x8c] sm:$0xf]
        %v181 = vld [vmem:[%s141 + $0x90] sm:$0x1]
        %v182 = vld [vmem:[%s1] sm:$0xf]
        %v183 = vld [vmem:[%s1 + $0x4] sm:$0xf]
        %v184 = vld [vmem:[%s1 + $0x8] sm:$0xf]
        %v185 = vld [vmem:[%s1 + $0xc] sm:$0xf]
        %v186 = vld [vmem:[%s1 + $0x10] sm:$0x3]
        %v187 = vlaneseq
        %v188 = vshrl.u32 %v187, 7
        %v189 = vadd.s32 %v188, 8
        %v190 = vadd.s32 %v188, 16
        %v191 = vadd.s32 %v188, 24
        %v192 = vadd.s32 %v188, 32
        %v193 = vadd.s32 %v188, 40
        %v194 = vadd.s32 %v188, 48
        %v195 = vadd.s32 %v188, 56
        %v196 = vadd.s32 %v188, 64
        %v197 = vadd.s32 %v188, 72
        %v198 = vadd.s32 %v188, 80
        %v199 = vadd.s32 %v188, 88
        %v200 = vadd.s32 %v188, 96
        %v201 = vadd.s32 %v188, 104
        %v202 = vadd.s32 %v188, 112
        %v203 = vadd.s32 %v188, 120
        %v204 = vadd.s32 %v188, 128
        %v205 = vadd.s32 %v188, 136
        %v206 = vadd.s32 %v188, 144
        %v207 = vadd.s32 %v188, 152
        %v208 = vadd.s32 %v188, 160
        %v209 = vadd.s32 %v188, 168
        %v210 = vadd.s32 %v188, 176
        %v211 = vadd.s32 %v188, 184
        %v212 = vadd.s32 %v188, 192
        %v213 = vadd.s32 %v188, 200
        %v214 = vadd.s32 %v188, 208
        %v215 = vadd.s32 %v188, 216
        %v216 = vadd.s32 %v188, 224
        %v217 = vadd.s32 %v188, 232
        %v218 = vadd.s32 %v188, 240
        %v219 = vadd.s32 %v188, 248
        %vm220 = vcmp.lt.s32.totalorder %v188, 0
        %v221 = vsub.s32 0, %v188
        %v222 = vsel %vm220, %v221, %v188
        %v223 = vshrl.u32 %v222, 4
        %v224 = vand.u32 %v222, 15
        %v225 = vsub.s32 0, %v224
        %v226 = vsel %vm220, %v225, %v224
        %vm227 = vcmp.lt.s32.totalorder %v189, 0
        %v228 = vsub.s32 0, %v189
        %v229 = vsel %vm227, %v228, %v189
        %v230 = vshrl.u32 %v229, 4
        %v231 = vand.u32 %v229, 15
        %v232 = vsub.s32 0, %v231
        %v233 = vsel %vm227, %v232, %v231
        %vm234 = vcmp.lt.s32.totalorder %v190, 0
        %v235 = vsub.s32 0, %v190
        %v236 = vsel %vm234, %v235, %v190
        %v237 = vshrl.u32 %v236, 4
        %v238 = vand.u32 %v236, 15
        %v239 = vsub.s32 0, %v238
        %v240 = vsel %vm234, %v239, %v238
        %vm241 = vcmp.lt.s32.totalorder %v191, 0
        %v242 = vsub.s32 0, %v191
        %v243 = vsel %vm241, %v242, %v191
        %v244 = vshrl.u32 %v243, 4
        %v245 = vand.u32 %v243, 15
        %v246 = vsub.s32 0, %v245
        %v247 = vsel %vm241, %v246, %v245
        %vm248 = vcmp.lt.s32.totalorder %v192, 0
        %v249 = vsub.s32 0, %v192
        %v250 = vsel %vm248, %v249, %v192
        %v251 = vshrl.u32 %v250, 4
        %v252 = vand.u32 %v250, 15
        %v253 = vsub.s32 0, %v252
        %v254 = vsel %vm248, %v253, %v252
        %vm255 = vcmp.lt.s32.totalorder %v193, 0
        %v256 = vsub.s32 0, %v193
        %v257 = vsel %vm255, %v256, %v193
        %v258 = vshrl.u32 %v257, 4
        %v259 = vand.u32 %v257, 15
        %v260 = vsub.s32 0, %v259
        %v261 = vsel %vm255, %v260, %v259
        %vm262 = vcmp.lt.s32.totalorder %v194, 0
        %v263 = vsub.s32 0, %v194
        %v264 = vsel %vm262, %v263, %v194
        %v265 = vshrl.u32 %v264, 4
        %v266 = vand.u32 %v264, 15
        %v267 = vsub.s32 0, %v266
        %v268 = vsel %vm262, %v267, %v266
        %vm269 = vcmp.lt.s32.totalorder %v195, 0
        %v270 = vsub.s32 0, %v195
        %v271 = vsel %vm269, %v270, %v195
        %v272 = vshrl.u32 %v271, 4
        %v273 = vand.u32 %v271, 15
        %v274 = vsub.s32 0, %v273
        %v275 = vsel %vm269, %v274, %v273
        %vm276 = vcmp.lt.s32.totalorder %v196, 0
        %v277 = vsub.s32 0, %v196
        %v278 = vsel %vm276, %v277, %v196
        %v279 = vshrl.u32 %v278, 4
        %v280 = vand.u32 %v278, 15
        %v281 = vsub.s32 0, %v280
        %v282 = vsel %vm276, %v281, %v280
        %vm283 = vcmp.lt.s32.totalorder %v197, 0
        %v284 = vsub.s32 0, %v197
        %v285 = vsel %vm283, %v284, %v197
        %v286 = vshrl.u32 %v285, 4
        %v287 = vand.u32 %v285, 15
        %v288 = vsub.s32 0, %v287
        %v289 = vsel %vm283, %v288, %v287
        %vm290 = vcmp.lt.s32.totalorder %v198, 0
        %v291 = vsub.s32 0, %v198
        %v292 = vsel %vm290, %v291, %v198
        %v293 = vshrl.u32 %v292, 4
        %v294 = vand.u32 %v292, 15
        %v295 = vsub.s32 0, %v294
        %v296 = vsel %vm290, %v295, %v294
        %vm297 = vcmp.lt.s32.totalorder %v199, 0
        %v298 = vsub.s32 0, %v199
        %v299 = vsel %vm297, %v298, %v199
        %v300 = vshrl.u32 %v299, 4
        %v301 = vand.u32 %v299, 15
        %v302 = vsub.s32 0, %v301
        %v303 = vsel %vm297, %v302, %v301
        %vm304 = vcmp.lt.s32.totalorder %v200, 0
        %v305 = vsub.s32 0, %v200
        %v306 = vsel %vm304, %v305, %v200
        %v307 = vshrl.u32 %v306, 4
        %v308 = vand.u32 %v306, 15
        %v309 = vsub.s32 0, %v308
        %v310 = vsel %vm304, %v309, %v308
        %vm311 = vcmp.lt.s32.totalorder %v201, 0
        %v312 = vsub.s32 0, %v201
        %v313 = vsel %vm311, %v312, %v201
        %v314 = vshrl.u32 %v313, 4
        %v315 = vand.u32 %v313, 15
        %v316 = vsub.s32 0, %v315
        %v317 = vsel %vm311, %v316, %v315
        %vm318 = vcmp.lt.s32.totalorder %v202, 0
        %v319 = vsub.s32 0, %v202
        %v320 = vsel %vm318, %v319, %v202
        %v321 = vshrl.u32 %v320, 4
        %v322 = vand.u32 %v320, 15
        %v323 = vsub.s32 0, %v322
        %v324 = vsel %vm318, %v323, %v322
        %vm325 = vcmp.lt.s32.totalorder %v203, 0
        %v326 = vsub.s32 0, %v203
        %v327 = vsel %vm325, %v326, %v203
        %v328 = vshrl.u32 %v327, 4
        %v329 = vand.u32 %v327, 15
        %v330 = vsub.s32 0, %v329
        %v331 = vsel %vm325, %v330, %v329
        %vm332 = vcmp.lt.s32.totalorder %v204, 0
        %v333 = vsub.s32 0, %v204
        %v334 = vsel %vm332, %v333, %v204
        %v335 = vshrl.u32 %v334, 4
        %v336 = vand.u32 %v334, 15
        %v337 = vsub.s32 0, %v336
        %v338 = vsel %vm332, %v337, %v336
        %vm339 = vcmp.lt.s32.totalorder %v205, 0
        %v340 = vsub.s32 0, %v205
        %v341 = vsel %vm339, %v340, %v205
        %v342 = vshrl.u32 %v341, 4
        %v343 = vand.u32 %v341, 15
        %v344 = vsub.s32 0, %v343
        %v345 = vsel %vm339, %v344, %v343
        %vm346 = vcmp.lt.s32.totalorder %v206, 0
        %v347 = vsub.s32 0, %v206
        %v348 = vsel %vm346, %v347, %v206
        %v349 = vshrl.u32 %v348, 4
        %v350 = vand.u32 %v348, 15
        %v351 = vsub.s32 0, %v350
        %v352 = vsel %vm346, %v351, %v350
        %vm353 = vcmp.lt.s32.totalorder %v207, 0
        %v354 = vsub.s32 0, %v207
        %v355 = vsel %vm353, %v354, %v207
        %v356 = vshrl.u32 %v355, 4
        %v357 = vand.u32 %v355, 15
        %v358 = vsub.s32 0, %v357
        %v359 = vsel %vm353, %v358, %v357
        %vm360 = vcmp.lt.s32.totalorder %v208, 0
        %v361 = vsub.s32 0, %v208
        %v362 = vsel %vm360, %v361, %v208
        %v363 = vshrl.u32 %v362, 4
        %v364 = vand.u32 %v362, 15
        %v365 = vsub.s32 0, %v364
        %v366 = vsel %vm360, %v365, %v364
        %vm367 = vcmp.lt.s32.totalorder %v209, 0
        %v368 = vsub.s32 0, %v209
        %v369 = vsel %vm367, %v368, %v209
        %v370 = vshrl.u32 %v369, 4
        %v371 = vand.u32 %v369, 15
        %v372 = vsub.s32 0, %v371
        %v373 = vsel %vm367, %v372, %v371
        %vm374 = vcmp.lt.s32.totalorder %v210, 0
        %v375 = vsub.s32 0, %v210
        %v376 = vsel %vm374, %v375, %v210
        %v377 = vshrl.u32 %v376, 4
        %v378 = vand.u32 %v376, 15
        %v379 = vsub.s32 0, %v378
        %v380 = vsel %vm374, %v379, %v378
        %vm381 = vcmp.lt.s32.totalorder %v211, 0
        %v382 = vsub.s32 0, %v211
        %v383 = vsel %vm381, %v382, %v211
        %v384 = vshrl.u32 %v383, 4
        %v385 = vand.u32 %v383, 15
        %v386 = vsub.s32 0, %v385
        %v387 = vsel %vm381, %v386, %v385
        %vm388 = vcmp.lt.s32.totalorder %v212, 0
        %v389 = vsub.s32 0, %v212
        %v390 = vsel %vm388, %v389, %v212
        %v391 = vshrl.u32 %v390, 4
        %v392 = vand.u32 %v390, 15
        %v393 = vsub.s32 0, %v392
        %v394 = vsel %vm388, %v393, %v392
        %vm395 = vcmp.lt.s32.totalorder %v213, 0
        %v396 = vsub.s32 0, %v213
        %v397 = vsel %vm395, %v396, %v213
        %v398 = vshrl.u32 %v397, 4
        %v399 = vand.u32 %v397, 15
        %v400 = vsub.s32 0, %v399
        %v401 = vsel %vm395, %v400, %v399
        %vm402 = vcmp.lt.s32.totalorder %v214, 0
        %v403 = vsub.s32 0, %v214
        %v404 = vsel %vm402, %v403, %v214
        %v405 = vshrl.u32 %v404, 4
        %v406 = vand.u32 %v404, 15
        %v407 = vsub.s32 0, %v406
        %v408 = vsel %vm402, %v407, %v406
        %vm409 = vcmp.lt.s32.totalorder %v215, 0
        %v410 = vsub.s32 0, %v215
        %v411 = vsel %vm409, %v410, %v215
        %v412 = vshrl.u32 %v411, 4
        %v413 = vand.u32 %v411, 15
        %v414 = vsub.s32 0, %v413
        %v415 = vsel %vm409, %v414, %v413
        %vm416 = vcmp.lt.s32.totalorder %v216, 0
        %v417 = vsub.s32 0, %v216
        %v418 = vsel %vm416, %v417, %v216
        %v419 = vshrl.u32 %v418, 4
        %v420 = vand.u32 %v418, 15
        %v421 = vsub.s32 0, %v420
        %v422 = vsel %vm416, %v421, %v420
        %vm423 = vcmp.lt.s32.totalorder %v217, 0
        %v424 = vsub.s32 0, %v217
        %v425 = vsel %vm423, %v424, %v217
        %v426 = vshrl.u32 %v425, 4
        %v427 = vand.u32 %v425, 15
        %v428 = vsub.s32 0, %v427
        %v429 = vsel %vm423, %v428, %v427
        %vm430 = vcmp.lt.s32.totalorder %v218, 0
        %v431 = vsub.s32 0, %v218
        %v432 = vsel %vm430, %v431, %v218
        %v433 = vshrl.u32 %v432, 4
        %v434 = vand.u32 %v432, 15
        %v435 = vsub.s32 0, %v434
        %v436 = vsel %vm430, %v435, %v434
        %vm437 = vcmp.lt.s32.totalorder %v219, 0
        %v438 = vsub.s32 0, %v219
        %v439 = vsel %vm437, %v438, %v219
        %v440 = vshrl.u32 %v439, 4
        %v441 = vand.u32 %v439, 15
        %v442 = vsub.s32 0, %v441
        %v443 = vsel %vm437, %v442, %v441
        %vm444 = vcmp.ne.s32.totalorder %v226, 0
        %vm445 = vcmp.ne.s32.totalorder %v233, 0
        %vm446 = vcmp.ne.s32.totalorder %v240, 0
        %vm447 = vcmp.ne.s32.totalorder %v247, 0
        %vm448 = vcmp.ne.s32.totalorder %v254, 0
        %vm449 = vcmp.ne.s32.totalorder %v261, 0
        %vm450 = vcmp.ne.s32.totalorder %v268, 0
        %vm451 = vcmp.ne.s32.totalorder %v275, 0
        %vm452 = vcmp.ne.s32.totalorder %v282, 0
        %vm453 = vcmp.ne.s32.totalorder %v289, 0
        %vm454 = vcmp.ne.s32.totalorder %v296, 0
        %vm455 = vcmp.ne.s32.totalorder %v303, 0
        %vm456 = vcmp.ne.s32.totalorder %v310, 0
        %vm457 = vcmp.ne.s32.totalorder %v317, 0
        %vm458 = vcmp.ne.s32.totalorder %v324, 0
        %vm459 = vcmp.ne.s32.totalorder %v331, 0
        %vm460 = vcmp.ne.s32.totalorder %v338, 0
        %vm461 = vcmp.ne.s32.totalorder %v345, 0
        %vm462 = vcmp.ne.s32.totalorder %v352, 0
        %vm463 = vcmp.ne.s32.totalorder %v359, 0
        %vm464 = vcmp.ne.s32.totalorder %v366, 0
        %vm465 = vcmp.ne.s32.totalorder %v373, 0
        %vm466 = vcmp.ne.s32.totalorder %v380, 0
        %vm467 = vcmp.ne.s32.totalorder %v387, 0
        %vm468 = vcmp.ne.s32.totalorder %v394, 0
        %vm469 = vcmp.ne.s32.totalorder %v401, 0
        %vm470 = vcmp.ne.s32.totalorder %v408, 0
        %vm471 = vcmp.ne.s32.totalorder %v415, 0
        %vm472 = vcmp.ne.s32.totalorder %v422, 0
        %vm473 = vcmp.ne.s32.totalorder %v429, 0
        %vm474 = vcmp.ne.s32.totalorder %v436, 0
        %vm475 = vcmp.ne.s32.totalorder %v443, 0
        %vm476 = vcmp.lt.s32.totalorder %v226, 0
        %vm477 = vcmp.lt.s32.totalorder %v233, 0
        %vm478 = vcmp.lt.s32.totalorder %v240, 0
        %vm479 = vcmp.lt.s32.totalorder %v247, 0
        %vm480 = vcmp.lt.s32.totalorder %v254, 0
        %vm481 = vcmp.lt.s32.totalorder %v261, 0
        %vm482 = vcmp.lt.s32.totalorder %v268, 0
        %vm483 = vcmp.lt.s32.totalorder %v275, 0
        %vm484 = vcmp.lt.s32.totalorder %v282, 0
        %vm485 = vcmp.lt.s32.totalorder %v289, 0
        %vm486 = vcmp.lt.s32.totalorder %v296, 0
        %vm487 = vcmp.lt.s32.totalorder %v303, 0
        %vm488 = vcmp.lt.s32.totalorder %v310, 0
        %vm489 = vcmp.lt.s32.totalorder %v317, 0
        %vm490 = vcmp.lt.s32.totalorder %v324, 0
        %vm491 = vcmp.lt.s32.totalorder %v331, 0
        %vm492 = vcmp.lt.s32.totalorder %v338, 0
        %vm493 = vcmp.lt.s32.totalorder %v345, 0
        %vm494 = vcmp.lt.s32.totalorder %v352, 0
        %vm495 = vcmp.lt.s32.totalorder %v359, 0
        %vm496 = vcmp.lt.s32.totalorder %v366, 0
        %vm497 = vcmp.lt.s32.totalorder %v373, 0
        %vm498 = vcmp.lt.s32.totalorder %v380, 0
        %vm499 = vcmp.lt.s32.totalorder %v387, 0
        %vm500 = vcmp.lt.s32.totalorder %v394, 0
        %vm501 = vcmp.lt.s32.totalorder %v401, 0
        %vm502 = vcmp.lt.s32.totalorder %v408, 0
        %vm503 = vcmp.lt.s32.totalorder %v415, 0
        %vm504 = vcmp.lt.s32.totalorder %v422, 0
        %vm505 = vcmp.lt.s32.totalorder %v429, 0
        %vm506 = vcmp.lt.s32.totalorder %v436, 0
        %vm507 = vcmp.lt.s32.totalorder %v443, 0
        %vm508 = vmand %vm476, %vm444
        %vm509 = vmand %vm477, %vm445
        %vm510 = vmand %vm478, %vm446
        %vm511 = vmand %vm479, %vm447
        %vm512 = vmand %vm480, %vm448
        %vm513 = vmand %vm481, %vm449
        %vm514 = vmand %vm482, %vm450
        %vm515 = vmand %vm483, %vm451
        %vm516 = vmand %vm484, %vm452
        %vm517 = vmand %vm485, %vm453
        %vm518 = vmand %vm486, %vm454
        %vm519 = vmand %vm487, %vm455
        %vm520 = vmand %vm488, %vm456
        %vm521 = vmand %vm489, %vm457
        %vm522 = vmand %vm490, %vm458
        %vm523 = vmand %vm491, %vm459
        %vm524 = vmand %vm492, %vm460
        %vm525 = vmand %vm493, %vm461
        %vm526 = vmand %vm494, %vm462
        %vm527 = vmand %vm495, %vm463
        %vm528 = vmand %vm496, %vm464
        %vm529 = vmand %vm497, %vm465
        %vm530 = vmand %vm498, %vm466
        %vm531 = vmand %vm499, %vm467
        %vm532 = vmand %vm500, %vm468
        %vm533 = vmand %vm501, %vm469
        %vm534 = vmand %vm502, %vm470
        %vm535 = vmand %vm503, %vm471
        %vm536 = vmand %vm504, %vm472
        %vm537 = vmand %vm505, %vm473
        %vm538 = vmand %vm506, %vm474
        %vm539 = vmand %vm507, %vm475
        %v540 = vadd.s32 %v226, 16
        %v541 = vadd.s32 %v233, 16
        %v542 = vadd.s32 %v240, 16
        %v543 = vadd.s32 %v247, 16
        %v544 = vadd.s32 %v254, 16
        %v545 = vadd.s32 %v261, 16
        %v546 = vadd.s32 %v268, 16
        %v547 = vadd.s32 %v275, 16
        %v548 = vadd.s32 %v282, 16
        %v549 = vadd.s32 %v289, 16
        %v550 = vadd.s32 %v296, 16
        %v551 = vadd.s32 %v303, 16
        %v552 = vadd.s32 %v310, 16
        %v553 = vadd.s32 %v317, 16
        %v554 = vadd.s32 %v324, 16
        %v555 = vadd.s32 %v331, 16
        %v556 = vadd.s32 %v338, 16
        %v557 = vadd.s32 %v345, 16
        %v558 = vadd.s32 %v352, 16
        %v559 = vadd.s32 %v359, 16
        %v560 = vadd.s32 %v366, 16
        %v561 = vadd.s32 %v373, 16
        %v562 = vadd.s32 %v380, 16
        %v563 = vadd.s32 %v387, 16
        %v564 = vadd.s32 %v394, 16
        %v565 = vadd.s32 %v401, 16
        %v566 = vadd.s32 %v408, 16
        %v567 = vadd.s32 %v415, 16
        %v568 = vadd.s32 %v422, 16
        %v569 = vadd.s32 %v429, 16
        %v570 = vadd.s32 %v436, 16
        %v571 = vadd.s32 %v443, 16
        %v572 = vsel %vm508, %v540, %v226
        %v573 = vsel %vm509, %v541, %v233
        %v574 = vsel %vm510, %v542, %v240
        %v575 = vsel %vm511, %v543, %v247
        %v576 = vsel %vm512, %v544, %v254
        %v577 = vsel %vm513, %v545, %v261
        %v578 = vsel %vm514, %v546, %v268
        %v579 = vsel %vm515, %v547, %v275
        %v580 = vsel %vm516, %v548, %v282
        %v581 = vsel %vm517, %v549, %v289
        %v582 = vsel %vm518, %v550, %v296
        %v583 = vsel %vm519, %v551, %v303
        %v584 = vsel %vm520, %v552, %v310
        %v585 = vsel %vm521, %v553, %v317
        %v586 = vsel %vm522, %v554, %v324
        %v587 = vsel %vm523, %v555, %v331
        %v588 = vsel %vm524, %v556, %v338
        %v589 = vsel %vm525, %v557, %v345
        %v590 = vsel %vm526, %v558, %v352
        %v591 = vsel %vm527, %v559, %v359
        %v592 = vsel %vm528, %v560, %v366
        %v593 = vsel %vm529, %v561, %v373
        %v594 = vsel %vm530, %v562, %v380
        %v595 = vsel %vm531, %v563, %v387
        %v596 = vsel %vm532, %v564, %v394
        %v597 = vsel %vm533, %v565, %v401
        %v598 = vsel %vm534, %v566, %v408
        %v599 = vsel %vm535, %v567, %v415
        %v600 = vsel %vm536, %v568, %v422
        %v601 = vsel %vm537, %v569, %v429
        %v602 = vsel %vm538, %v570, %v436
        %v603 = vsel %vm539, %v571, %v443
        %vm604 = vcmp.ne.s32.totalorder %v572, 0
        %vm605 = vcmp.ne.s32.totalorder %v573, 0
        %vm606 = vcmp.ne.s32.totalorder %v574, 0
        %vm607 = vcmp.ne.s32.totalorder %v575, 0
        %vm608 = vcmp.ne.s32.totalorder %v576, 0
        %vm609 = vcmp.ne.s32.totalorder %v577, 0
        %vm610 = vcmp.ne.s32.totalorder %v578, 0
        %vm611 = vcmp.ne.s32.totalorder %v579, 0
        %vm612 = vcmp.ne.s32.totalorder %v580, 0
        %vm613 = vcmp.ne.s32.totalorder %v581, 0
        %vm614 = vcmp.ne.s32.totalorder %v582, 0
        %vm615 = vcmp.ne.s32.totalorder %v583, 0
        %vm616 = vcmp.ne.s32.totalorder %v584, 0
        %vm617 = vcmp.ne.s32.totalorder %v585, 0
        %vm618 = vcmp.ne.s32.totalorder %v586, 0
        %vm619 = vcmp.ne.s32.totalorder %v587, 0
        %vm620 = vcmp.ne.s32.totalorder %v588, 0
        %vm621 = vcmp.ne.s32.totalorder %v589, 0
        %vm622 = vcmp.ne.s32.totalorder %v590, 0
        %vm623 = vcmp.ne.s32.totalorder %v591, 0
        %vm624 = vcmp.ne.s32.totalorder %v592, 0
        %vm625 = vcmp.ne.s32.totalorder %v593, 0
        %vm626 = vcmp.ne.s32.totalorder %v594, 0
        %vm627 = vcmp.ne.s32.totalorder %v595, 0
        %vm628 = vcmp.ne.s32.totalorder %v596, 0
        %vm629 = vcmp.ne.s32.totalorder %v597, 0
        %vm630 = vcmp.ne.s32.totalorder %v598, 0
        %vm631 = vcmp.ne.s32.totalorder %v599, 0
        %vm632 = vcmp.ne.s32.totalorder %v600, 0
        %vm633 = vcmp.ne.s32.totalorder %v601, 0
        %vm634 = vcmp.ne.s32.totalorder %v602, 0
        %vm635 = vcmp.ne.s32.totalorder %v603, 0
        %vm636 = vcmp.ne.s32.totalorder %v572, 15
        %vm637 = vcmp.ne.s32.totalorder %v573, 15
        %vm638 = vcmp.ne.s32.totalorder %v574, 15
        %vm639 = vcmp.ne.s32.totalorder %v575, 15
        %vm640 = vcmp.ne.s32.totalorder %v576, 15
        %vm641 = vcmp.ne.s32.totalorder %v577, 15
        %vm642 = vcmp.ne.s32.totalorder %v578, 15
        %vm643 = vcmp.ne.s32.totalorder %v579, 15
        %vm644 = vcmp.ne.s32.totalorder %v580, 15
        %vm645 = vcmp.ne.s32.totalorder %v581, 15
        %vm646 = vcmp.ne.s32.totalorder %v582, 15
        %vm647 = vcmp.ne.s32.totalorder %v583, 15
        %vm648 = vcmp.ne.s32.totalorder %v584, 15
        %vm649 = vcmp.ne.s32.totalorder %v585, 15
        %vm650 = vcmp.ne.s32.totalorder %v586, 15
        %vm651 = vcmp.ne.s32.totalorder %v587, 15
        %vm652 = vcmp.ne.s32.totalorder %v588, 15
        %vm653 = vcmp.ne.s32.totalorder %v589, 15
        %vm654 = vcmp.ne.s32.totalorder %v590, 15
        %vm655 = vcmp.ne.s32.totalorder %v591, 15
        %vm656 = vcmp.ne.s32.totalorder %v592, 15
        %vm657 = vcmp.ne.s32.totalorder %v593, 15
        %vm658 = vcmp.ne.s32.totalorder %v594, 15
        %vm659 = vcmp.ne.s32.totalorder %v595, 15
        %vm660 = vcmp.ne.s32.totalorder %v596, 15
        %vm661 = vcmp.ne.s32.totalorder %v597, 15
        %vm662 = vcmp.ne.s32.totalorder %v598, 15
        %vm663 = vcmp.ne.s32.totalorder %v599, 15
        %vm664 = vcmp.ne.s32.totalorder %v600, 15
        %vm665 = vcmp.ne.s32.totalorder %v601, 15
        %vm666 = vcmp.ne.s32.totalorder %v602, 15
        %vm667 = vcmp.ne.s32.totalorder %v603, 15
        %v668 = vsel %vm604, 1, 0
        %v669 = vsel %vm605, 1, 0
        %v670 = vsel %vm606, 1, 0
        %v671 = vsel %vm607, 1, 0
        %v672 = vsel %vm608, 1, 0
        %v673 = vsel %vm609, 1, 0
        %v674 = vsel %vm610, 1, 0
        %v675 = vsel %vm611, 1, 0
        %v676 = vsel %vm612, 1, 0
        %v677 = vsel %vm613, 1, 0
        %v678 = vsel %vm614, 1, 0
        %v679 = vsel %vm615, 1, 0
        %v680 = vsel %vm616, 1, 0
        %v681 = vsel %vm617, 1, 0
        %v682 = vsel %vm618, 1, 0
        %v683 = vsel %vm619, 1, 0
        %v684 = vsel %vm620, 1, 0
        %v685 = vsel %vm621, 1, 0
        %v686 = vsel %vm622, 1, 0
        %v687 = vsel %vm623, 1, 0
        %v688 = vsel %vm624, 1, 0
        %v689 = vsel %vm625, 1, 0
        %v690 = vsel %vm626, 1, 0
        %v691 = vsel %vm627, 1, 0
        %v692 = vsel %vm628, 1, 0
        %v693 = vsel %vm629, 1, 0
        %v694 = vsel %vm630, 1, 0
        %v695 = vsel %vm631, 1, 0
        %v696 = vsel %vm632, 1, 0
        %v697 = vsel %vm633, 1, 0
        %v698 = vsel %vm634, 1, 0
        %v699 = vsel %vm635, 1, 0
        %vm700 = vcmp.eq.s32.totalorder %v668, 1
        %vm701 = vcmp.eq.s32.totalorder %v669, 1
        %vm702 = vcmp.eq.s32.totalorder %v670, 1
        %vm703 = vcmp.eq.s32.totalorder %v671, 1
        %vm704 = vcmp.eq.s32.totalorder %v672, 1
        %vm705 = vcmp.eq.s32.totalorder %v673, 1
        %vm706 = vcmp.eq.s32.totalorder %v674, 1
        %vm707 = vcmp.eq.s32.totalorder %v675, 1
        %vm708 = vcmp.eq.s32.totalorder %v676, 1
        %vm709 = vcmp.eq.s32.totalorder %v677, 1
        %vm710 = vcmp.eq.s32.totalorder %v678, 1
        %vm711 = vcmp.eq.s32.totalorder %v679, 1
        %vm712 = vcmp.eq.s32.totalorder %v680, 1
        %vm713 = vcmp.eq.s32.totalorder %v681, 1
        %vm714 = vcmp.eq.s32.totalorder %v682, 1
        %vm715 = vcmp.eq.s32.totalorder %v683, 1
        %vm716 = vcmp.eq.s32.totalorder %v684, 1
        %vm717 = vcmp.eq.s32.totalorder %v685, 1
        %vm718 = vcmp.eq.s32.totalorder %v686, 1
        %vm719 = vcmp.eq.s32.totalorder %v687, 1
        %vm720 = vcmp.eq.s32.totalorder %v688, 1
        %vm721 = vcmp.eq.s32.totalorder %v689, 1
        %vm722 = vcmp.eq.s32.totalorder %v690, 1
        %vm723 = vcmp.eq.s32.totalorder %v691, 1
        %vm724 = vcmp.eq.s32.totalorder %v692, 1
        %vm725 = vcmp.eq.s32.totalorder %v693, 1
        %vm726 = vcmp.eq.s32.totalorder %v694, 1
        %vm727 = vcmp.eq.s32.totalorder %v695, 1
        %vm728 = vcmp.eq.s32.totalorder %v696, 1
        %vm729 = vcmp.eq.s32.totalorder %v697, 1
        %vm730 = vcmp.eq.s32.totalorder %v698, 1
        %vm731 = vcmp.eq.s32.totalorder %v699, 1
        %vm732 = vmpackc.low %vm700, %vm700
        %vm733 = vmpackc.low %vm701, %vm701
        %vm734 = vmpackc.low %vm702, %vm702
        %vm735 = vmpackc.low %vm703, %vm703
        %vm736 = vmpackc.low %vm704, %vm704
        %vm737 = vmpackc.low %vm705, %vm705
        %vm738 = vmpackc.low %vm706, %vm706
        %vm739 = vmpackc.low %vm707, %vm707
        %vm740 = vmpackc.low %vm708, %vm708
        %vm741 = vmpackc.low %vm709, %vm709
        %vm742 = vmpackc.low %vm710, %vm710
        %vm743 = vmpackc.low %vm711, %vm711
        %vm744 = vmpackc.low %vm712, %vm712
        %vm745 = vmpackc.low %vm713, %vm713
        %vm746 = vmpackc.low %vm714, %vm714
        %vm747 = vmpackc.low %vm715, %vm715
        %vm748 = vmpackc.low %vm716, %vm716
        %vm749 = vmpackc.low %vm717, %vm717
        %vm750 = vmpackc.low %vm718, %vm718
        %vm751 = vmpackc.low %vm719, %vm719
        %vm752 = vmpackc.low %vm720, %vm720
        %vm753 = vmpackc.low %vm721, %vm721
        %vm754 = vmpackc.low %vm722, %vm722
        %vm755 = vmpackc.low %vm723, %vm723
        %vm756 = vmpackc.low %vm724, %vm724
        %vm757 = vmpackc.low %vm725, %vm725
        %vm758 = vmpackc.low %vm726, %vm726
        %vm759 = vmpackc.low %vm727, %vm727
        %vm760 = vmpackc.low %vm728, %vm728
        %vm761 = vmpackc.low %vm729, %vm729
        %vm762 = vmpackc.low %vm730, %vm730
        %vm763 = vmpackc.low %vm731, %vm731
        %v764 = vsel %vm732, %v145, 0
        %v765 = vsel %vm733, %v146, 0
        %v766 = vsel %vm734, %v147, 0
        %v767 = vsel %vm735, %v148, 0
        %v768 = vsel %vm736, %v149, 0
        %v769 = vsel %vm737, %v150, 0
        %v770 = vsel %vm738, %v151, 0
        %v771 = vsel %vm739, %v152, 0
        %v772 = vsel %vm740, %v153, 0
        %v773 = vsel %vm741, %v154, 0
        %v774 = vsel %vm742, %v155, 0
        %v775 = vsel %vm743, %v156, 0
        %v776 = vsel %vm744, %v157, 0
        %v777 = vsel %vm745, %v158, 0
        %v778 = vsel %vm746, %v159, 0
        %v779 = vsel %vm747, %v160, 0
        %v780 = vsel %vm748, %v161, 0
        %v781 = vsel %vm749, %v162, 0
        %v782 = vsel %vm750, %v163, 0
        %v783 = vsel %vm751, %v164, 0
        %v784 = vsel %vm752, %v165, 0
        %v785 = vsel %vm753, %v166, 0
        %v786 = vsel %vm754, %v167, 0
        %v787 = vsel %vm755, %v168, 0
        %v788 = vsel %vm756, %v169, 0
        %v789 = vsel %vm757, %v170, 0
        %v790 = vsel %vm758, %v171, 0
        %v791 = vsel %vm759, %v172, 0
        %v792 = vsel %vm760, %v173, 0
        %v793 = vsel %vm761, %v174, 0
        %v794 = vsel %vm762, %v175, 0
        %v795 = vsel %vm763, %v176, 0
        %v829 = vunpack.c.l.b16 %v145
        %v830 = vunpack.c.l.b16 %v146
        %v831 = vunpack.c.l.b16 %v147
        %v832 = vunpack.c.l.b16 %v148
        %v833 = vunpack.c.l.b16 %v149
        %v834 = vunpack.c.l.b16 %v150
        %v835 = vunpack.c.l.b16 %v151
        %v836 = vunpack.c.l.b16 %v152
        %v837 = vunpack.c.l.b16 %v153
        %v838 = vunpack.c.l.b16 %v154
        %v839 = vunpack.c.l.b16 %v155
        %v840 = vunpack.c.l.b16 %v156
        %v841 = vunpack.c.l.b16 %v157
        %v842 = vunpack.c.l.b16 %v158
        %v843 = vunpack.c.l.b16 %v159
        %v844 = vunpack.c.l.b16 %v160
        %v845 = vunpack.c.l.b16 %v161
        %v846 = vunpack.c.l.b16 %v162
        %v847 = vunpack.c.l.b16 %v163
        %v848 = vunpack.c.l.b16 %v164
        %v849 = vunpack.c.l.b16 %v165
        %v850 = vunpack.c.l.b16 %v166
        %v851 = vunpack.c.l.b16 %v167
        %v852 = vunpack.c.l.b16 %v168
        %v853 = vunpack.c.l.b16 %v169
        %v854 = vunpack.c.l.b16 %v170
        %v855 = vunpack.c.l.b16 %v171
        %v856 = vunpack.c.l.b16 %v172
        %v857 = vunpack.c.l.b16 %v173
        %v858 = vunpack.c.l.b16 %v174
        %v859 = vunpack.c.l.b16 %v175
        %v860 = vunpack.c.l.b16 %v176
        %v861 = vunpack.c.l.b16 %v177
        %v862 = vpack.c.b16 %v830, %v829
        %v863 = vpack.c.b16 %v832, %v831
        %v864 = vpack.c.b16 %v834, %v833
        %v865 = vpack.c.b16 %v836, %v835
        %v866 = vpack.c.b16 %v838, %v837
        %v867 = vpack.c.b16 %v840, %v839
        %v868 = vpack.c.b16 %v842, %v841
        %v869 = vpack.c.b16 %v844, %v843
        %v870 = vpack.c.b16 %v846, %v845
        %v871 = vpack.c.b16 %v848, %v847
        %v872 = vpack.c.b16 %v850, %v849
        %v873 = vpack.c.b16 %v852, %v851
        %v874 = vpack.c.b16 %v854, %v853
        %v875 = vpack.c.b16 %v856, %v855
        %v876 = vpack.c.b16 %v858, %v857
        %v877 = vpack.c.b16 %v860, %v859
        %v878 = vpack.c.b16 %v861, %v861
        %vm879 = vsmask.f32 7424
        %v881 = vshrl.u32 %v862, 16
        %v883 = vshll.u32 %v862, 16
        %v885 = vrot.slane %v883, 1
        %v886 = vor.u32 %v881, %v885
        %v888 = vshll.u32 %v863, 16
        %v890 = vrot.slane %v888, 1
        %v891 = vsel %vm879, %v886, %v890
        %v892 = vshrl.u32 %v863, 16
        %v894 = vor.u32 %v892, %v890
        %v896 = vshll.u32 %v864, 16
        %v898 = vrot.slane %v896, 1
        %v899 = vsel %vm879, %v894, %v898
        %v900 = vshrl.u32 %v864, 16
        %v902 = vor.u32 %v900, %v898
        %v904 = vshll.u32 %v865, 16
        %v906 = vrot.slane %v904, 1
        %v907 = vsel %vm879, %v902, %v906
        %v908 = vshrl.u32 %v865, 16
        %v910 = vor.u32 %v908, %v906
        %v912 = vshll.u32 %v866, 16
        %v914 = vrot.slane %v912, 1
        %v915 = vsel %vm879, %v910, %v914
        %v916 = vshrl.u32 %v866, 16
        %v918 = vor.u32 %v916, %v914
        %v920 = vshll.u32 %v867, 16
        %v922 = vrot.slane %v920, 1
        %v923 = vsel %vm879, %v918, %v922
        %v924 = vshrl.u32 %v867, 16
        %v926 = vor.u32 %v924, %v922
        %v928 = vshll.u32 %v868, 16
        %v930 = vrot.slane %v928, 1
        %v931 = vsel %vm879, %v926, %v930
        %v932 = vshrl.u32 %v868, 16
        %v934 = vor.u32 %v932, %v930
        %v936 = vshll.u32 %v869, 16
        %v938 = vrot.slane %v936, 1
        %v939 = vsel %vm879, %v934, %v938
        %v940 = vshrl.u32 %v869, 16
        %v942 = vor.u32 %v940, %v938
        %v944 = vshll.u32 %v870, 16
        %v946 = vrot.slane %v944, 1
        %v947 = vsel %vm879, %v942, %v946
        %v948 = vshrl.u32 %v870, 16
        %v950 = vor.u32 %v948, %v946
        %v952 = vshll.u32 %v871, 16
        %v954 = vrot.slane %v952, 1
        %v955 = vsel %vm879, %v950, %v954
        %v956 = vshrl.u32 %v871, 16
        %v958 = vor.u32 %v956, %v954
        %v960 = vshll.u32 %v872, 16
        %v962 = vrot.slane %v960, 1
        %v963 = vsel %vm879, %v958, %v962
        %v964 = vshrl.u32 %v872, 16
        %v966 = vor.u32 %v964, %v962
        %v968 = vshll.u32 %v873, 16
        %v970 = vrot.slane %v968, 1
        %v971 = vsel %vm879, %v966, %v970
        %v972 = vshrl.u32 %v873, 16
        %v974 = vor.u32 %v972, %v970
        %v976 = vshll.u32 %v874, 16
        %v978 = vrot.slane %v976, 1
        %v979 = vsel %vm879, %v974, %v978
        %v980 = vshrl.u32 %v874, 16
        %v982 = vor.u32 %v980, %v978
        %v984 = vshll.u32 %v875, 16
        %v986 = vrot.slane %v984, 1
        %v987 = vsel %vm879, %v982, %v986
        %v988 = vshrl.u32 %v875, 16
        %v990 = vor.u32 %v988, %v986
        %v992 = vshll.u32 %v876, 16
        %v994 = vrot.slane %v992, 1
        %v995 = vsel %vm879, %v990, %v994
        %v996 = vshrl.u32 %v876, 16
        %v998 = vor.u32 %v996, %v994
        %v1000 = vshll.u32 %v877, 16
        %v1002 = vrot.slane %v1000, 1
        %v1003 = vsel %vm879, %v998, %v1002
        %v1004 = vshrl.u32 %v877, 16
        %v1006 = vor.u32 %v1004, %v1002
        %v1008 = vshll.u32 %v878, 16
        %v1010 = vrot.slane %v1008, 1
        %v1011 = vsel %vm879, %v1006, %v1010
        %v1013 = vunpack.c.l.b16 %v182
        %v1014 = vpack.c.b16 %v1013, %v1013
        %v1015 = vrot.slane %v1014, 2
        %vm1016 = vcmask 31744
        %v1018 = vsel %vm1016, %v891, 0
        %v1021 = vsel %vm1016, %v899, 0
        %v1024 = vsel %vm1016, %v907, 0
        %v1027 = vsel %vm1016, %v915, 0
        %v1030 = vsel %vm1016, %v923, 0
        %v1033 = vsel %vm1016, %v931, 0
        %v1036 = vsel %vm1016, %v939, 0
        %v1039 = vsel %vm1016, %v947, 0
        %v1042 = vsel %vm1016, %v955, 0
        %v1045 = vsel %vm1016, %v963, 0
        %v1048 = vsel %vm1016, %v971, 0
        %v1051 = vsel %vm1016, %v979, 0
        %v1054 = vsel %vm1016, %v987, 0
        %v1057 = vsel %vm1016, %v995, 0
        %v1060 = vsel %vm1016, %v1003, 0
        %v1063 = vsel %vm1016, %v1011, 0
        %vm1065 = vcmask 1041408
        %v1067 = vsel %vm1065, %v1015, 0
        %1069 = vmatprep.subr.bf16.mxu0 0
        %1070 = vmatpush1.bf16.msra.mxu0 %v1067
        %1071 = vmatprep.subr.bf16.mxu0 0
        %1072 = vmatpush1.bf16.msra.mxu0 0
        %1073 = vmatprep.subr.bf16.mxu0 0
        %1074 = vmatpush1.bf16.msra.mxu0 0
        %1075 = vmatprep.subr.bf16.mxu0 0
        %1076 = vmatpush1.bf16.msra.mxu0 0
        %1077 = vmatprep.subr.bf16.mxu0 0
        %1078 = vmatpush1.bf16.msra.mxu0 0
        %1079 = vmatprep.subr.bf16.mxu0 0
        %1080 = vmatpush1.bf16.msra.mxu0 0
        %1081 = vmatprep.subr.bf16.mxu0 0
        %1082 = vmatpush1.bf16.msra.mxu0 0
        %1083 = vmatprep.subr.bf16.mxu0 0
        %1084 = vmatpush1.bf16.msra.mxu0 0
        %1085 = vmatprep.subr.bf16.mxu0 0
        %1086 = vmatpush1.bf16.msra.mxu0 0
        %1087 = vmatprep.subr.bf16.mxu0 0
        %1088 = vmatpush1.bf16.msra.mxu0 0
        %1089 = vmatprep.subr.bf16.mxu0 0
        %1090 = vmatpush1.bf16.msra.mxu0 0
        %1091 = vmatprep.subr.bf16.mxu0 0
        %1092 = vmatpush1.bf16.msra.mxu0 0
        %1093 = vmatprep.subr.bf16.mxu0 0
        %1094 = vmatpush1.bf16.msra.mxu0 0
        %1095 = vmatprep.subr.bf16.mxu0 0
        %1096 = vmatpush1.bf16.msra.mxu0 0
        %1097 = vmatprep.subr.bf16.mxu0 0
        %1098 = vmatpush1.bf16.msra.mxu0 0
        %1099 = vmatprep.subr.bf16.mxu0 0
        %1100 = vmatpush1.bf16.msra.mxu0 0
        %1101 = vmatprep.mubr.bf16.mxu0 0
        %1102 = vmatmul.mubr.bf16.gmra.mrb[0].mxu0 %v1018
        %v1103 = vpop.f32.mrb[0].mxu0
        %v1104 = vadd.f32 0.0, %v1103
        %v1105 = vpop.f32.mrb[0].mxu0
        %v1106 = vpop.f32.mrb[0].mxu0
        %v1107 = vadd.f32 0.0, %v1106
        %v1108 = vpop.f32.mrb[0].mxu0
        %1109 = vmatprep.mubr.bf16.mxu0 0
        %1110 = vmatmul.mubr.bf16.gmra.mrb[0].mxu0 %v1021
        %v1111 = vpop.f32.mrb[0].mxu0
        %v1112 = vadd.f32 0.0, %v1111
        %v1113 = vpop.f32.mrb[0].mxu0
        %v1114 = vpop.f32.mrb[0].mxu0
        %v1115 = vadd.f32 0.0, %v1114
        %v1116 = vpop.f32.mrb[0].mxu0
        %1117 = vmatprep.mubr.bf16.mxu0 0
        %1118 = vmatmul.mubr.bf16.gmra.mrb[0].mxu0 %v1024
        %v1119 = vpop.f32.mrb[0].mxu0
        %v1120 = vadd.f32 0.0, %v1119
        %v1121 = vpop.f32.mrb[0].mxu0
        %v1122 = vpop.f32.mrb[0].mxu0
        %v1123 = vadd.f32 0.0, %v1122
        %v1124 = vpop.f32.mrb[0].mxu0
        %1125 = vmatprep.mubr.bf16.mxu0 0
        %1126 = vmatmul.mubr.bf16.gmra.mrb[0].mxu0 %v1027
        %v1127 = vpop.f32.mrb[0].mxu0
        %v1128 = vadd.f32 0.0, %v1127
        %v1129 = vpop.f32.mrb[0].mxu0
        %v1130 = vpop.f32.mrb[0].mxu0
        %v1131 = vadd.f32 0.0, %v1130
        %v1132 = vpop.f32.mrb[0].mxu0
        %1133 = vmatprep.mubr.bf16.mxu0 0
        %1134 = vmatmul.mubr.bf16.gmra.mrb[0].mxu0 %v1030
        %v1135 = vpop.f32.mrb[0].mxu0
        %v1136 = vadd.f32 0.0, %v1135
        %v1137 = vpop.f32.mrb[0].mxu0
        %v1138 = vpop.f32.mrb[0].mxu0
        %v1139 = vadd.f32 0.0, %v1138
        %v1140 = vpop.f32.mrb[0].mxu0
        %1141 = vmatprep.mubr.bf16.mxu0 0
        %1142 = vmatmul.mubr.bf16.gmra.mrb[0].mxu0 %v1033
        %v1143 = vpop.f32.mrb[0].mxu0
        %v1144 = vadd.f32 0.0, %v1143
        %v1145 = vpop.f32.mrb[0].mxu0
        %v1146 = vpop.f32.mrb[0].mxu0
        %v1147 = vadd.f32 0.0, %v1146
        %v1148 = vpop.f32.mrb[0].mxu0
        %1149 = vmatprep.mubr.bf16.mxu0 0
        %1150 = vmatmul.mubr.bf16.gmra.mrb[0].mxu0 %v1036
        %v1151 = vpop.f32.mrb[0].mxu0
        %v1152 = vadd.f32 0.0, %v1151
        %v1153 = vpop.f32.mrb[0].mxu0
        %v1154 = vpop.f32.mrb[0].mxu0
        %v1155 = vadd.f32 0.0, %v1154
        %v1156 = vpop.f32.mrb[0].mxu0
        %1157 = vmatprep.mubr.bf16.mxu0 0
        %1158 = vmatmul.mubr.bf16.gmra.mrb[0].mxu0 %v1039
        %v1159 = vpop.f32.mrb[0].mxu0
        %v1160 = vadd.f32 0.0, %v1159
        %v1161 = vpop.f32.mrb[0].mxu0
        %v1162 = vpop.f32.mrb[0].mxu0
        %v1163 = vadd.f32 0.0, %v1162
        %v1164 = vpop.f32.mrb[0].mxu0
        %1165 = vmatprep.mubr.bf16.mxu0 0
        %1166 = vmatmul.mubr.bf16.gmra.mrb[0].mxu0 %v1042
        %v1167 = vpop.f32.mrb[0].mxu0
        %v1168 = vadd.f32 0.0, %v1167
        %v1169 = vpop.f32.mrb[0].mxu0
        %v1170 = vpop.f32.mrb[0].mxu0
        %v1171 = vadd.f32 0.0, %v1170
        %v1172 = vpop.f32.mrb[0].mxu0
        %1173 = vmatprep.mubr.bf16.mxu0 0
        %1174 = vmatmul.mubr.bf16.gmra.mrb[0].mxu0 %v1045
        %v1175 = vpop.f32.mrb[0].mxu0
        %v1176 = vadd.f32 0.0, %v1175
        %v1177 = vpop.f32.mrb[0].mxu0
        %v1178 = vpop.f32.mrb[0].mxu0
        %v1179 = vadd.f32 0.0, %v1178
        %v1180 = vpop.f32.mrb[0].mxu0
        %1181 = vmatprep.mubr.bf16.mxu0 0
        %1182 = vmatmul.mubr.bf16.gmra.mrb[0].mxu0 %v1048
        %v1183 = vpop.f32.mrb[0].mxu0
        %v1184 = vadd.f32 0.0, %v1183
        %v1185 = vpop.f32.mrb[0].mxu0
        %v1186 = vpop.f32.mrb[0].mxu0
        %v1187 = vadd.f32 0.0, %v1186
        %v1188 = vpop.f32.mrb[0].mxu0
        %1189 = vmatprep.mubr.bf16.mxu0 0
        %1190 = vmatmul.mubr.bf16.gmra.mrb[0].mxu0 %v1051
        %v1191 = vpop.f32.mrb[0].mxu0
        %v1192 = vadd.f32 0.0, %v1191
        %v1193 = vpop.f32.mrb[0].mxu0
        %v1194 = vpop.f32.mrb[0].mxu0
        %v1195 = vadd.f32 0.0, %v1194
        %v1196 = vpop.f32.mrb[0].mxu0
        %1197 = vmatprep.mubr.bf16.mxu0 0
        %1198 = vmatmul.mubr.bf16.gmra.mrb[0].mxu0 %v1054
        %v1199 = vpop.f32.mrb[0].mxu0
        %v1200 = vadd.f32 0.0, %v1199
        %v1201 = vpop.f32.mrb[0].mxu0
        %v1202 = vpop.f32.mrb[0].mxu0
        %v1203 = vadd.f32 0.0, %v1202
        %v1204 = vpop.f32.mrb[0].mxu0
        %1205 = vmatprep.mubr.bf16.mxu0 0
        %1206 = vmatmul.mubr.bf16.gmra.mrb[0].mxu0 %v1057
        %v1207 = vpop.f32.mrb[0].mxu0
        %v1208 = vadd.f32 0.0, %v1207
        %v1209 = vpop.f32.mrb[0].mxu0
        %v1210 = vpop.f32.mrb[0].mxu0
        %v1211 = vadd.f32 0.0, %v1210
        %v1212 = vpop.f32.mrb[0].mxu0
        %1213 = vmatprep.mubr.bf16.mxu0 0
        %1214 = vmatmul.mubr.bf16.gmra.mrb[0].mxu0 %v1060
        %v1215 = vpop.f32.mrb[0].mxu0
        %v1216 = vadd.f32 0.0, %v1215
        %v1217 = vpop.f32.mrb[0].mxu0
        %v1218 = vpop.f32.mrb[0].mxu0
        %v1219 = vadd.f32 0.0, %v1218
        %v1220 = vpop.f32.mrb[0].mxu0
        %1221 = vmatprep.mubr.bf16.mxu0 0
        %1222 = vmatmul.mubr.bf16.gmra.mrb[0].mxu0 %v1063
        %v1223 = vpop.f32.mrb[0].mxu0
        %v1224 = vadd.f32 0.0, %v1223
        %v1225 = vpop.f32.mrb[0].mxu0
        %v1226 = vpop.f32.mrb[0].mxu0
        %v1227 = vadd.f32 0.0, %v1226
        %v1228 = vpop.f32.mrb[0].mxu0
        %1229 = vdwg.mxu0
        %v1262 = vunpack.c.l.b16 %v764
        %v1263 = vunpack.c.l.b16 %v765
        %v1264 = vunpack.c.l.b16 %v766
        %v1265 = vunpack.c.l.b16 %v767
        %v1266 = vunpack.c.l.b16 %v768
        %v1267 = vunpack.c.l.b16 %v769
        %v1268 = vunpack.c.l.b16 %v770
        %v1269 = vunpack.c.l.b16 %v771
        %v1270 = vunpack.c.l.b16 %v772
        %v1271 = vunpack.c.l.b16 %v773
        %v1272 = vunpack.c.l.b16 %v774
        %v1273 = vunpack.c.l.b16 %v775
        %v1274 = vunpack.c.l.b16 %v776
        %v1275 = vunpack.c.l.b16 %v777
        %v1276 = vunpack.c.l.b16 %v778
        %v1277 = vunpack.c.l.b16 %v779
        %v1278 = vunpack.c.l.b16 %v780
        %v1279 = vunpack.c.l.b16 %v781
        %v1280 = vunpack.c.l.b16 %v782
        %v1281 = vunpack.c.l.b16 %v783
        %v1282 = vunpack.c.l.b16 %v784
        %v1283 = vunpack.c.l.b16 %v785
        %v1284 = vunpack.c.l.b16 %v786
        %v1285 = vunpack.c.l.b16 %v787
        %v1286 = vunpack.c.l.b16 %v788
        %v1287 = vunpack.c.l.b16 %v789
        %v1288 = vunpack.c.l.b16 %v790
        %v1289 = vunpack.c.l.b16 %v791
        %v1290 = vunpack.c.l.b16 %v792
        %v1291 = vunpack.c.l.b16 %v793
        %v1292 = vunpack.c.l.b16 %v794
        %v1293 = vunpack.c.l.b16 %v795
        %v1294 = vpack.c.b16 %v1263, %v1262
        %v1295 = vpack.c.b16 %v1265, %v1264
        %v1296 = vpack.c.b16 %v1267, %v1266
        %v1297 = vpack.c.b16 %v1269, %v1268
        %v1298 = vpack.c.b16 %v1271, %v1270
        %v1299 = vpack.c.b16 %v1273, %v1272
        %v1300 = vpack.c.b16 %v1275, %v1274
        %v1301 = vpack.c.b16 %v1277, %v1276
        %v1302 = vpack.c.b16 %v1279, %v1278
        %v1303 = vpack.c.b16 %v1281, %v1280
        %v1304 = vpack.c.b16 %v1283, %v1282
        %v1305 = vpack.c.b16 %v1285, %v1284
        %v1306 = vpack.c.b16 %v1287, %v1286
        %v1307 = vpack.c.b16 %v1289, %v1288
        %v1308 = vpack.c.b16 %v1291, %v1290
        %v1309 = vpack.c.b16 %v1293, %v1292
        %v1311 = vsel %vm1016, %v1294, 0
        %v1314 = vsel %vm1016, %v1295, 0
        %v1317 = vsel %vm1016, %v1296, 0
        %v1320 = vsel %vm1016, %v1297, 0
        %v1323 = vsel %vm1016, %v1298, 0
        %v1326 = vsel %vm1016, %v1299, 0
        %v1329 = vsel %vm1016, %v1300, 0
        %v1332 = vsel %vm1016, %v1301, 0
        %v1335 = vsel %vm1016, %v1302, 0
        %v1338 = vsel %vm1016, %v1303, 0
        %v1341 = vsel %vm1016, %v1304, 0
        %v1344 = vsel %vm1016, %v1305, 0
        %v1347 = vsel %vm1016, %v1306, 0
        %v1350 = vsel %vm1016, %v1307, 0
        %v1353 = vsel %vm1016, %v1308, 0
        %v1356 = vsel %vm1016, %v1309, 0
        %v1359 = vsel %vm1065, %v182, 0
        %1361 = vmatprep.subr.bf16.mxu0 0
        %1362 = vmatpush1.bf16.msra.mxu0 %v1359
        %1363 = vmatprep.subr.bf16.mxu0 0
        %1364 = vmatpush1.bf16.msra.mxu0 0
        %1365 = vmatprep.subr.bf16.mxu0 0
        %1366 = vmatpush1.bf16.msra.mxu0 0
        %1367 = vmatprep.subr.bf16.mxu0 0
        %1368 = vmatpush1.bf16.msra.mxu0 0
        %1369 = vmatprep.subr.bf16.mxu0 0
        %1370 = vmatpush1.bf16.msra.mxu0 0
        %1371 = vmatprep.subr.bf16.mxu0 0
        %1372 = vmatpush1.bf16.msra.mxu0 0
        %1373 = vmatprep.subr.bf16.mxu0 0
        %1374 = vmatpush1.bf16.msra.mxu0 0
        %1375 = vmatprep.subr.bf16.mxu0 0
        %1376 = vmatpush1.bf16.msra.mxu0 0
        %1377 = vmatprep.subr.bf16.mxu0 0
        %1378 = vmatpush1.bf16.msra.mxu0 0
        %1379 = vmatprep.subr.bf16.mxu0 0
        %1380 = vmatpush1.bf16.msra.mxu0 0
        %1381 = vmatprep.subr.bf16.mxu0 0
        %1382 = vmatpush1.bf16.msra.mxu0 0
        %1383 = vmatprep.subr.bf16.mxu0 0
        %1384 = vmatpush1.bf16.msra.mxu0 0
        %1385 = vmatprep.subr.bf16.mxu0 0
        %1386 = vmatpush1.bf16.msra.mxu0 0
        %1387 = vmatprep.subr.bf16.mxu0 0
        %1388 = vmatpush1.bf16.msra.mxu0 0
        %1389 = vmatprep.subr.bf16.mxu0 0
        %1390 = vmatpush1.bf16.msra.mxu0 0
        %1391 = vmatprep.subr.bf16.mxu0 0
        %1392 = vmatpush1.bf16.msra.mxu0 0
        %1393 = vmatprep.mubr.bf16.mxu0 0
        %1394 = vmatmul.mubr.bf16.gmra.mrb[0].mxu0 %v1311
        %v1395 = vpop.f32.mrb[0].mxu0
        %v1396 = vadd.f32 %v1104, %v1395
        %v1397 = vpop.f32.mrb[0].mxu0
        %v1398 = vpop.f32.mrb[0].mxu0
        %v1399 = vadd.f32 %v1107, %v1398
        %v1400 = vpop.f32.mrb[0].mxu0
        %1401 = vmatprep.mubr.bf16.mxu0 0
        %1402 = vmatmul.mubr.bf16.gmra.mrb[0].mxu0 %v1314
        %v1403 = vpop.f32.mrb[0].mxu0
        %v1404 = vadd.f32 %v1112, %v1403
        %v1405 = vpop.f32.mrb[0].mxu0
        %v1406 = vpop.f32.mrb[0].mxu0
        %v1407 = vadd.f32 %v1115, %v1406
        %v1408 = vpop.f32.mrb[0].mxu0
        %1409 = vmatprep.mubr.bf16.mxu0 0
        %1410 = vmatmul.mubr.bf16.gmra.mrb[0].mxu0 %v1317
        %v1411 = vpop.f32.mrb[0].mxu0
        %v1412 = vadd.f32 %v1120, %v1411
        %v1413 = vpop.f32.mrb[0].mxu0
        %v1414 = vpop.f32.mrb[0].mxu0
        %v1415 = vadd.f32 %v1123, %v1414
        %v1416 = vpop.f32.mrb[0].mxu0
        %1417 = vmatprep.mubr.bf16.mxu0 0
        %1418 = vmatmul.mubr.bf16.gmra.mrb[0].mxu0 %v1320
        %v1419 = vpop.f32.mrb[0].mxu0
        %v1420 = vadd.f32 %v1128, %v1419
        %v1421 = vpop.f32.mrb[0].mxu0
        %v1422 = vpop.f32.mrb[0].mxu0
        %v1423 = vadd.f32 %v1131, %v1422
        %v1424 = vpop.f32.mrb[0].mxu0
        %1425 = vmatprep.mubr.bf16.mxu0 0
        %1426 = vmatmul.mubr.bf16.gmra.mrb[0].mxu0 %v1323
        %v1427 = vpop.f32.mrb[0].mxu0
        %v1428 = vadd.f32 %v1136, %v1427
        %v1429 = vpop.f32.mrb[0].mxu0
        %v1430 = vpop.f32.mrb[0].mxu0
        %v1431 = vadd.f32 %v1139, %v1430
        %v1432 = vpop.f32.mrb[0].mxu0
        %1433 = vmatprep.mubr.bf16.mxu0 0
        %1434 = vmatmul.mubr.bf16.gmra.mrb[0].mxu0 %v1326
        %v1435 = vpop.f32.mrb[0].mxu0
        %v1436 = vadd.f32 %v1144, %v1435
        %v1437 = vpop.f32.mrb[0].mxu0
        %v1438 = vpop.f32.mrb[0].mxu0
        %v1439 = vadd.f32 %v1147, %v1438
        %v1440 = vpop.f32.mrb[0].mxu0
        %1441 = vmatprep.mubr.bf16.mxu0 0
        %1442 = vmatmul.mubr.bf16.gmra.mrb[0].mxu0 %v1329
        %v1443 = vpop.f32.mrb[0].mxu0
        %v1444 = vadd.f32 %v1152, %v1443
        %v1445 = vpop.f32.mrb[0].mxu0
        %v1446 = vpop.f32.mrb[0].mxu0
        %v1447 = vadd.f32 %v1155, %v1446
        %v1448 = vpop.f32.mrb[0].mxu0
        %1449 = vmatprep.mubr.bf16.mxu0 0
        %1450 = vmatmul.mubr.bf16.gmra.mrb[0].mxu0 %v1332
        %v1451 = vpop.f32.mrb[0].mxu0
        %v1452 = vadd.f32 %v1160, %v1451
        %v1453 = vpop.f32.mrb[0].mxu0
        %v1454 = vpop.f32.mrb[0].mxu0
        %v1455 = vadd.f32 %v1163, %v1454
        %v1456 = vpop.f32.mrb[0].mxu0
        %1457 = vmatprep.mubr.bf16.mxu0 0
        %1458 = vmatmul.mubr.bf16.gmra.mrb[0].mxu0 %v1335
        %v1459 = vpop.f32.mrb[0].mxu0
        %v1460 = vadd.f32 %v1168, %v1459
        %v1461 = vpop.f32.mrb[0].mxu0
        %v1462 = vpop.f32.mrb[0].mxu0
        %v1463 = vadd.f32 %v1171, %v1462
        %v1464 = vpop.f32.mrb[0].mxu0
        %1465 = vmatprep.mubr.bf16.mxu0 0
        %1466 = vmatmul.mubr.bf16.gmra.mrb[0].mxu0 %v1338
        %v1467 = vpop.f32.mrb[0].mxu0
        %v1468 = vadd.f32 %v1176, %v1467
        %v1469 = vpop.f32.mrb[0].mxu0
        %v1470 = vpop.f32.mrb[0].mxu0
        %v1471 = vadd.f32 %v1179, %v1470
        %v1472 = vpop.f32.mrb[0].mxu0
        %1473 = vmatprep.mubr.bf16.mxu0 0
        %1474 = vmatmul.mubr.bf16.gmra.mrb[0].mxu0 %v1341
        %v1475 = vpop.f32.mrb[0].mxu0
        %v1476 = vadd.f32 %v1184, %v1475
        %v1477 = vpop.f32.mrb[0].mxu0
        %v1478 = vpop.f32.mrb[0].mxu0
        %v1479 = vadd.f32 %v1187, %v1478
        %v1480 = vpop.f32.mrb[0].mxu0
        %1481 = vmatprep.mubr.bf16.mxu0 0
        %1482 = vmatmul.mubr.bf16.gmra.mrb[0].mxu0 %v1344
        %v1483 = vpop.f32.mrb[0].mxu0
        %v1484 = vadd.f32 %v1192, %v1483
        %v1485 = vpop.f32.mrb[0].mxu0
        %v1486 = vpop.f32.mrb[0].mxu0
        %v1487 = vadd.f32 %v1195, %v1486
        %v1488 = vpop.f32.mrb[0].mxu0
        %1489 = vmatprep.mubr.bf16.mxu0 0
        %1490 = vmatmul.mubr.bf16.gmra.mrb[0].mxu0 %v1347
        %v1491 = vpop.f32.mrb[0].mxu0
        %v1492 = vadd.f32 %v1200, %v1491
        %v1493 = vpop.f32.mrb[0].mxu0
        %v1494 = vpop.f32.mrb[0].mxu0
        %v1495 = vadd.f32 %v1203, %v1494
        %v1496 = vpop.f32.mrb[0].mxu0
        %1497 = vmatprep.mubr.bf16.mxu0 0
        %1498 = vmatmul.mubr.bf16.gmra.mrb[0].mxu0 %v1350
        %v1499 = vpop.f32.mrb[0].mxu0
        %v1500 = vadd.f32 %v1208, %v1499
        %v1501 = vpop.f32.mrb[0].mxu0
        %v1502 = vpop.f32.mrb[0].mxu0
        %v1503 = vadd.f32 %v1211, %v1502
        %v1504 = vpop.f32.mrb[0].mxu0
        %1505 = vmatprep.mubr.bf16.mxu0 0
        %1506 = vmatmul.mubr.bf16.gmra.mrb[0].mxu0 %v1353
        %v1507 = vpop.f32.mrb[0].mxu0
        %v1508 = vadd.f32 %v1216, %v1507
        %v1509 = vpop.f32.mrb[0].mxu0
        %v1510 = vpop.f32.mrb[0].mxu0
        %v1511 = vadd.f32 %v1219, %v1510
        %v1512 = vpop.f32.mrb[0].mxu0
        %1513 = vmatprep.mubr.bf16.mxu0 0
        %1514 = vmatmul.mubr.bf16.gmra.mrb[0].mxu0 %v1356
        %v1515 = vpop.f32.mrb[0].mxu0
        %v1516 = vadd.f32 %v1224, %v1515
        %v1517 = vpop.f32.mrb[0].mxu0
        %v1518 = vpop.f32.mrb[0].mxu0
        %v1519 = vadd.f32 %v1227, %v1518
        %v1520 = vpop.f32.mrb[0].mxu0
        %1521 = vdwg.mxu0
        %v1522 = vsel %vm636, 1, 0
        %v1523 = vsel %vm637, 1, 0
        %v1524 = vsel %vm638, 1, 0
        %v1525 = vsel %vm639, 1, 0
        %v1526 = vsel %vm640, 1, 0
        %v1527 = vsel %vm641, 1, 0
        %v1528 = vsel %vm642, 1, 0
        %v1529 = vsel %vm643, 1, 0
        %v1530 = vsel %vm644, 1, 0
        %v1531 = vsel %vm645, 1, 0
        %v1532 = vsel %vm646, 1, 0
        %v1533 = vsel %vm647, 1, 0
        %v1534 = vsel %vm648, 1, 0
        %v1535 = vsel %vm649, 1, 0
        %v1536 = vsel %vm650, 1, 0
        %v1537 = vsel %vm651, 1, 0
        %v1538 = vsel %vm652, 1, 0
        %v1539 = vsel %vm653, 1, 0
        %v1540 = vsel %vm654, 1, 0
        %v1541 = vsel %vm655, 1, 0
        %v1542 = vsel %vm656, 1, 0
        %v1543 = vsel %vm657, 1, 0
        %v1544 = vsel %vm658, 1, 0
        %v1545 = vsel %vm659, 1, 0
        %v1546 = vsel %vm660, 1, 0
        %v1547 = vsel %vm661, 1, 0
        %v1548 = vsel %vm662, 1, 0
        %v1549 = vsel %vm663, 1, 0
        %v1550 = vsel %vm664, 1, 0
        %v1551 = vsel %vm665, 1, 0
        %v1552 = vsel %vm666, 1, 0
        %v1553 = vsel %vm667, 1, 0
        %vm1554 = vcmp.eq.s32.totalorder %v1522, 1
        %vm1555 = vcmp.eq.s32.totalorder %v1523, 1
        %vm1556 = vcmp.eq.s32.totalorder %v1524, 1
        %vm1557 = vcmp.eq.s32.totalorder %v1525, 1
        %vm1558 = vcmp.eq.s32.totalorder %v1526, 1
        %vm1559 = vcmp.eq.s32.totalorder %v1527, 1
        %vm1560 = vcmp.eq.s32.totalorder %v1528, 1
        %vm1561 = vcmp.eq.s32.totalorder %v1529, 1
        %vm1562 = vcmp.eq.s32.totalorder %v1530, 1
        %vm1563 = vcmp.eq.s32.totalorder %v1531, 1
        %vm1564 = vcmp.eq.s32.totalorder %v1532, 1
        %vm1565 = vcmp.eq.s32.totalorder %v1533, 1
        %vm1566 = vcmp.eq.s32.totalorder %v1534, 1
        %vm1567 = vcmp.eq.s32.totalorder %v1535, 1
        %vm1568 = vcmp.eq.s32.totalorder %v1536, 1
        %vm1569 = vcmp.eq.s32.totalorder %v1537, 1
        %vm1570 = vcmp.eq.s32.totalorder %v1538, 1
        %vm1571 = vcmp.eq.s32.totalorder %v1539, 1
        %vm1572 = vcmp.eq.s32.totalorder %v1540, 1
        %vm1573 = vcmp.eq.s32.totalorder %v1541, 1
        %vm1574 = vcmp.eq.s32.totalorder %v1542, 1
        %vm1575 = vcmp.eq.s32.totalorder %v1543, 1
        %vm1576 = vcmp.eq.s32.totalorder %v1544, 1
        %vm1577 = vcmp.eq.s32.totalorder %v1545, 1
        %vm1578 = vcmp.eq.s32.totalorder %v1546, 1
        %vm1579 = vcmp.eq.s32.totalorder %v1547, 1
        %vm1580 = vcmp.eq.s32.totalorder %v1548, 1
        %vm1581 = vcmp.eq.s32.totalorder %v1549, 1
        %vm1582 = vcmp.eq.s32.totalorder %v1550, 1
        %vm1583 = vcmp.eq.s32.totalorder %v1551, 1
        %vm1584 = vcmp.eq.s32.totalorder %v1552, 1
        %vm1585 = vcmp.eq.s32.totalorder %v1553, 1
        %vm1586 = vmpackc.low %vm1554, %vm1554
        %vm1587 = vmpackc.low %vm1555, %vm1555
        %vm1588 = vmpackc.low %vm1556, %vm1556
        %vm1589 = vmpackc.low %vm1557, %vm1557
        %vm1590 = vmpackc.low %vm1558, %vm1558
        %vm1591 = vmpackc.low %vm1559, %vm1559
        %vm1592 = vmpackc.low %vm1560, %vm1560
        %vm1593 = vmpackc.low %vm1561, %vm1561
        %vm1594 = vmpackc.low %vm1562, %vm1562
        %vm1595 = vmpackc.low %vm1563, %vm1563
        %vm1596 = vmpackc.low %vm1564, %vm1564
        %vm1597 = vmpackc.low %vm1565, %vm1565
        %vm1598 = vmpackc.low %vm1566, %vm1566
        %vm1599 = vmpackc.low %vm1567, %vm1567
        %vm1600 = vmpackc.low %vm1568, %vm1568
        %vm1601 = vmpackc.low %vm1569, %vm1569
        %vm1602 = vmpackc.low %vm1570, %vm1570
        %vm1603 = vmpackc.low %vm1571, %vm1571
        %vm1604 = vmpackc.low %vm1572, %vm1572
        %vm1605 = vmpackc.low %vm1573, %vm1573
        %vm1606 = vmpackc.low %vm1574, %vm1574
        %vm1607 = vmpackc.low %vm1575, %vm1575
        %vm1608 = vmpackc.low %vm1576, %vm1576
        %vm1609 = vmpackc.low %vm1577, %vm1577
        %vm1610 = vmpackc.low %vm1578, %vm1578
        %vm1611 = vmpackc.low %vm1579, %vm1579
        %vm1612 = vmpackc.low %vm1580, %vm1580
        %vm1613 = vmpackc.low %vm1581, %vm1581
        %vm1614 = vmpackc.low %vm1582, %vm1582
        %vm1615 = vmpackc.low %vm1583, %vm1583
        %vm1616 = vmpackc.low %vm1584, %vm1584
        %vm1617 = vmpackc.low %vm1585, %vm1585
        %v1618 = vsel %vm1586, 65537, 0
        %v1619 = vsel %vm1587, 65537, 0
        %v1620 = vsel %vm1588, 65537, 0
        %v1621 = vsel %vm1589, 65537, 0
        %v1622 = vsel %vm1590, 65537, 0
        %v1623 = vsel %vm1591, 65537, 0
        %v1624 = vsel %vm1592, 65537, 0
        %v1625 = vsel %vm1593, 65537, 0
        %v1626 = vsel %vm1594, 65537, 0
        %v1627 = vsel %vm1595, 65537, 0
        %v1628 = vsel %vm1596, 65537, 0
        %v1629 = vsel %vm1597, 65537, 0
        %v1630 = vsel %vm1598, 65537, 0
        %v1631 = vsel %vm1599, 65537, 0
        %v1632 = vsel %vm1600, 65537, 0
        %v1633 = vsel %vm1601, 65537, 0
        %v1634 = vsel %vm1602, 65537, 0
        %v1635 = vsel %vm1603, 65537, 0
        %v1636 = vsel %vm1604, 65537, 0
        %v1637 = vsel %vm1605, 65537, 0
        %v1638 = vsel %vm1606, 65537, 0
        %v1639 = vsel %vm1607, 65537, 0
        %v1640 = vsel %vm1608, 65537, 0
        %v1641 = vsel %vm1609, 65537, 0
        %v1642 = vsel %vm1610, 65537, 0
        %v1643 = vsel %vm1611, 65537, 0
        %v1644 = vsel %vm1612, 65537, 0
        %v1645 = vsel %vm1613, 65537, 0
        %v1646 = vsel %vm1614, 65537, 0
        %v1647 = vsel %vm1615, 65537, 0
        %v1648 = vsel %vm1616, 65537, 0
        %v1649 = vsel %vm1617, 65537, 0
        %vm1650 = vcmask 1040384
        %vm1651 = vcmask 1044484
        %vm1652 = vmor %vm1650, %vm1651
        %v1653 = vrot.slane %v1618, 7
        %v1654 = vrot.slane %v1653, 4
        %v1655 = vrot.slane %v1619, 7
        %v1656 = vsel %vm1652, %v1654, %v1655
        %v1657 = vrot.slane %v1655, 4
        %v1658 = vrot.slane %v1620, 7
        %v1659 = vsel %vm1652, %v1657, %v1658
        %v1660 = vrot.slane %v1658, 4
        %v1661 = vrot.slane %v1621, 7
        %v1662 = vsel %vm1652, %v1660, %v1661
        %v1663 = vrot.slane %v1661, 4
        %v1664 = vrot.slane %v1622, 7
        %v1665 = vsel %vm1652, %v1663, %v1664
        %v1666 = vrot.slane %v1664, 4
        %v1667 = vrot.slane %v1623, 7
        %v1668 = vsel %vm1652, %v1666, %v1667
        %v1669 = vrot.slane %v1667, 4
        %v1670 = vrot.slane %v1624, 7
        %v1671 = vsel %vm1652, %v1669, %v1670
        %v1672 = vrot.slane %v1670, 4
        %v1673 = vrot.slane %v1625, 7
        %v1674 = vsel %vm1652, %v1672, %v1673
        %v1675 = vrot.slane %v1673, 4
        %v1676 = vrot.slane %v1626, 7
        %v1677 = vsel %vm1652, %v1675, %v1676
        %v1678 = vrot.slane %v1676, 4
        %v1679 = vrot.slane %v1627, 7
        %v1680 = vsel %vm1652, %v1678, %v1679
        %v1681 = vrot.slane %v1679, 4
        %v1682 = vrot.slane %v1628, 7
        %v1683 = vsel %vm1652, %v1681, %v1682
        %v1684 = vrot.slane %v1682, 4
        %v1685 = vrot.slane %v1629, 7
        %v1686 = vsel %vm1652, %v1684, %v1685
        %v1687 = vrot.slane %v1685, 4
        %v1688 = vrot.slane %v1630, 7
        %v1689 = vsel %vm1652, %v1687, %v1688
        %v1690 = vrot.slane %v1688, 4
        %v1691 = vrot.slane %v1631, 7
        %v1692 = vsel %vm1652, %v1690, %v1691
        %v1693 = vrot.slane %v1691, 4
        %v1694 = vrot.slane %v1632, 7
        %v1695 = vsel %vm1652, %v1693, %v1694
        %v1696 = vrot.slane %v1694, 4
        %v1697 = vrot.slane %v1633, 7
        %v1698 = vsel %vm1652, %v1696, %v1697
        %v1699 = vrot.slane %v1697, 4
        %v1700 = vrot.slane %v1634, 7
        %v1701 = vsel %vm1652, %v1699, %v1700
        %v1702 = vrot.slane %v1700, 4
        %v1703 = vrot.slane %v1635, 7
        %v1704 = vsel %vm1652, %v1702, %v1703
        %v1705 = vrot.slane %v1703, 4
        %v1706 = vrot.slane %v1636, 7
        %v1707 = vsel %vm1652, %v1705, %v1706
        %v1708 = vrot.slane %v1706, 4
        %v1709 = vrot.slane %v1637, 7
        %v1710 = vsel %vm1652, %v1708, %v1709
        %v1711 = vrot.slane %v1709, 4
        %v1712 = vrot.slane %v1638, 7
        %v1713 = vsel %vm1652, %v1711, %v1712
        %v1714 = vrot.slane %v1712, 4
        %v1715 = vrot.slane %v1639, 7
        %v1716 = vsel %vm1652, %v1714, %v1715
        %v1717 = vrot.slane %v1715, 4
        %v1718 = vrot.slane %v1640, 7
        %v1719 = vsel %vm1652, %v1717, %v1718
        %v1720 = vrot.slane %v1718, 4
        %v1721 = vrot.slane %v1641, 7
        %v1722 = vsel %vm1652, %v1720, %v1721
        %v1723 = vrot.slane %v1721, 4
        %v1724 = vrot.slane %v1642, 7
        %v1725 = vsel %vm1652, %v1723, %v1724
        %v1726 = vrot.slane %v1724, 4
        %v1727 = vrot.slane %v1643, 7
        %v1728 = vsel %vm1652, %v1726, %v1727
        %v1729 = vrot.slane %v1727, 4
        %v1730 = vrot.slane %v1644, 7
        %v1731 = vsel %vm1652, %v1729, %v1730
        %v1732 = vrot.slane %v1730, 4
        %v1733 = vrot.slane %v1645, 7
        %v1734 = vsel %vm1652, %v1732, %v1733
        %v1735 = vrot.slane %v1733, 4
        %v1736 = vrot.slane %v1646, 7
        %v1737 = vsel %vm1652, %v1735, %v1736
        %v1738 = vrot.slane %v1736, 4
        %v1739 = vrot.slane %v1647, 7
        %v1740 = vsel %vm1652, %v1738, %v1739
        %v1741 = vrot.slane %v1739, 4
        %v1742 = vrot.slane %v1648, 7
        %v1743 = vsel %vm1652, %v1741, %v1742
        %v1744 = vrot.slane %v1742, 4
        %v1745 = vrot.slane %v1649, 7
        %v1746 = vsel %vm1652, %v1744, %v1745
        %v1747 = vrot.slane %v1745, 4
        %vm1748 = vcmp.ne.s16.totalorder %v1653, 0
        %vm1749 = vcmp.ne.s16.totalorder %v1656, 0
        %vm1750 = vcmp.ne.s16.totalorder %v1659, 0
        %vm1751 = vcmp.ne.s16.totalorder %v1662, 0
        %vm1752 = vcmp.ne.s16.totalorder %v1665, 0
        %vm1753 = vcmp.ne.s16.totalorder %v1668, 0
        %vm1754 = vcmp.ne.s16.totalorder %v1671, 0
        %vm1755 = vcmp.ne.s16.totalorder %v1674, 0
        %vm1756 = vcmp.ne.s16.totalorder %v1677, 0
        %vm1757 = vcmp.ne.s16.totalorder %v1680, 0
        %vm1758 = vcmp.ne.s16.totalorder %v1683, 0
        %vm1759 = vcmp.ne.s16.totalorder %v1686, 0
        %vm1760 = vcmp.ne.s16.totalorder %v1689, 0
        %vm1761 = vcmp.ne.s16.totalorder %v1692, 0
        %vm1762 = vcmp.ne.s16.totalorder %v1695, 0
        %vm1763 = vcmp.ne.s16.totalorder %v1698, 0
        %vm1764 = vcmp.ne.s16.totalorder %v1701, 0
        %vm1765 = vcmp.ne.s16.totalorder %v1704, 0
        %vm1766 = vcmp.ne.s16.totalorder %v1707, 0
        %vm1767 = vcmp.ne.s16.totalorder %v1710, 0
        %vm1768 = vcmp.ne.s16.totalorder %v1713, 0
        %vm1769 = vcmp.ne.s16.totalorder %v1716, 0
        %vm1770 = vcmp.ne.s16.totalorder %v1719, 0
        %vm1771 = vcmp.ne.s16.totalorder %v1722, 0
        %vm1772 = vcmp.ne.s16.totalorder %v1725, 0
        %vm1773 = vcmp.ne.s16.totalorder %v1728, 0
        %vm1774 = vcmp.ne.s16.totalorder %v1731, 0
        %vm1775 = vcmp.ne.s16.totalorder %v1734, 0
        %vm1776 = vcmp.ne.s16.totalorder %v1737, 0
        %vm1777 = vcmp.ne.s16.totalorder %v1740, 0
        %vm1778 = vcmp.ne.s16.totalorder %v1743, 0
        %vm1779 = vcmp.ne.s16.totalorder %v1746, 0
        %vm1780 = vcmp.ne.s16.totalorder %v1747, 0
        %v1781 = vsel %vm1748, %v145, 0
        %v1782 = vsel %vm1749, %v146, 0
        %v1783 = vsel %vm1750, %v147, 0
        %v1784 = vsel %vm1751, %v148, 0
        %v1785 = vsel %vm1752, %v149, 0
        %v1786 = vsel %vm1753, %v150, 0
        %v1787 = vsel %vm1754, %v151, 0
        %v1788 = vsel %vm1755, %v152, 0
        %v1789 = vsel %vm1756, %v153, 0
        %v1790 = vsel %vm1757, %v154, 0
        %v1791 = vsel %vm1758, %v155, 0
        %v1792 = vsel %vm1759, %v156, 0
        %v1793 = vsel %vm1760, %v157, 0
        %v1794 = vsel %vm1761, %v158, 0
        %v1795 = vsel %vm1762, %v159, 0
        %v1796 = vsel %vm1763, %v160, 0
        %v1797 = vsel %vm1764, %v161, 0
        %v1798 = vsel %vm1765, %v162, 0
        %v1799 = vsel %vm1766, %v163, 0
        %v1800 = vsel %vm1767, %v164, 0
        %v1801 = vsel %vm1768, %v165, 0
        %v1802 = vsel %vm1769, %v166, 0
        %v1803 = vsel %vm1770, %v167, 0
        %v1804 = vsel %vm1771, %v168, 0
        %v1805 = vsel %vm1772, %v169, 0
        %v1806 = vsel %vm1773, %v170, 0
        %v1807 = vsel %vm1774, %v171, 0
        %v1808 = vsel %vm1775, %v172, 0
        %v1809 = vsel %vm1776, %v173, 0
        %v1810 = vsel %vm1777, %v174, 0
        %v1811 = vsel %vm1778, %v175, 0
        %v1812 = vsel %vm1779, %v176, 0
        %v1813 = vsel %vm1780, %v177, 0
        %v1847 = vunpack.c.l.b16 %v1781
        %v1848 = vunpack.c.l.b16 %v1782
        %v1849 = vunpack.c.l.b16 %v1783
        %v1850 = vunpack.c.l.b16 %v1784
        %v1851 = vunpack.c.l.b16 %v1785
        %v1852 = vunpack.c.l.b16 %v1786
        %v1853 = vunpack.c.l.b16 %v1787
        %v1854 = vunpack.c.l.b16 %v1788
        %v1855 = vunpack.c.l.b16 %v1789
        %v1856 = vunpack.c.l.b16 %v1790
        %v1857 = vunpack.c.l.b16 %v1791
        %v1858 = vunpack.c.l.b16 %v1792
        %v1859 = vunpack.c.l.b16 %v1793
        %v1860 = vunpack.c.l.b16 %v1794
        %v1861 = vunpack.c.l.b16 %v1795
        %v1862 = vunpack.c.l.b16 %v1796
        %v1863 = vunpack.c.l.b16 %v1797
        %v1864 = vunpack.c.l.b16 %v1798
        %v1865 = vunpack.c.l.b16 %v1799
        %v1866 = vunpack.c.l.b16 %v1800
        %v1867 = vunpack.c.l.b16 %v1801
        %v1868 = vunpack.c.l.b16 %v1802
        %v1869 = vunpack.c.l.b16 %v1803
        %v1870 = vunpack.c.l.b16 %v1804
        %v1871 = vunpack.c.l.b16 %v1805
        %v1872 = vunpack.c.l.b16 %v1806
        %v1873 = vunpack.c.l.b16 %v1807
        %v1874 = vunpack.c.l.b16 %v1808
        %v1875 = vunpack.c.l.b16 %v1809
        %v1876 = vunpack.c.l.b16 %v1810
        %v1877 = vunpack.c.l.b16 %v1811
        %v1878 = vunpack.c.l.b16 %v1812
        %v1879 = vunpack.c.l.b16 %v1813
        %v1880 = vpack.c.b16 %v1848, %v1847
        %v1881 = vpack.c.b16 %v1850, %v1849
        %v1882 = vpack.c.b16 %v1852, %v1851
        %v1883 = vpack.c.b16 %v1854, %v1853
        %v1884 = vpack.c.b16 %v1856, %v1855
        %v1885 = vpack.c.b16 %v1858, %v1857
        %v1886 = vpack.c.b16 %v1860, %v1859
        %v1887 = vpack.c.b16 %v1862, %v1861
        %v1888 = vpack.c.b16 %v1864, %v1863
        %v1889 = vpack.c.b16 %v1866, %v1865
        %v1890 = vpack.c.b16 %v1868, %v1867
        %v1891 = vpack.c.b16 %v1870, %v1869
        %v1892 = vpack.c.b16 %v1872, %v1871
        %v1893 = vpack.c.b16 %v1874, %v1873
        %v1894 = vpack.c.b16 %v1876, %v1875
        %v1895 = vpack.c.b16 %v1878, %v1877
        %v1896 = vpack.c.b16 %v1879, %v1879
        %vm1897 = vcmask 1046528
        %v1898 = vrot.slane %v1880, 1
        %v1899 = vrot.slane %v1881, 1
        %v1900 = vsel %vm1897, %v1898, %v1899
        %v1901 = vrot.slane %v1882, 1
        %v1902 = vsel %vm1897, %v1899, %v1901
        %v1903 = vrot.slane %v1883, 1
        %v1904 = vsel %vm1897, %v1901, %v1903
        %v1905 = vrot.slane %v1884, 1
        %v1906 = vsel %vm1897, %v1903, %v1905
        %v1907 = vrot.slane %v1885, 1
        %v1908 = vsel %vm1897, %v1905, %v1907
        %v1909 = vrot.slane %v1886, 1
        %v1910 = vsel %vm1897, %v1907, %v1909
        %v1911 = vrot.slane %v1887, 1
        %v1912 = vsel %vm1897, %v1909, %v1911
        %v1913 = vrot.slane %v1888, 1
        %v1914 = vsel %vm1897, %v1911, %v1913
        %v1915 = vrot.slane %v1889, 1
        %v1916 = vsel %vm1897, %v1913, %v1915
        %v1917 = vrot.slane %v1890, 1
        %v1918 = vsel %vm1897, %v1915, %v1917
        %v1919 = vrot.slane %v1891, 1
        %v1920 = vsel %vm1897, %v1917, %v1919
        %v1921 = vrot.slane %v1892, 1
        %v1922 = vsel %vm1897, %v1919, %v1921
        %v1923 = vrot.slane %v1893, 1
        %v1924 = vsel %vm1897, %v1921, %v1923
        %v1925 = vrot.slane %v1894, 1
        %v1926 = vsel %vm1897, %v1923, %v1925
        %v1927 = vrot.slane %v1895, 1
        %v1928 = vsel %vm1897, %v1925, %v1927
        %v1929 = vrot.slane %v1896, 1
        %v1930 = vsel %vm1897, %v1927, %v1929
        %v1932 = vsel %vm1016, %v1900, 0
        %v1935 = vsel %vm1016, %v1902, 0
        %v1938 = vsel %vm1016, %v1904, 0
        %v1941 = vsel %vm1016, %v1906, 0
        %v1944 = vsel %vm1016, %v1908, 0
        %v1947 = vsel %vm1016, %v1910, 0
        %v1950 = vsel %vm1016, %v1912, 0
        %v1953 = vsel %vm1016, %v1914, 0
        %v1956 = vsel %vm1016, %v1916, 0
        %v1959 = vsel %vm1016, %v1918, 0
        %v1962 = vsel %vm1016, %v1920, 0
        %v1965 = vsel %vm1016, %v1922, 0
        %v1968 = vsel %vm1016, %v1924, 0
        %v1971 = vsel %vm1016, %v1926, 0
        %v1974 = vsel %vm1016, %v1928, 0
        %v1977 = vsel %vm1016, %v1930, 0
        %v1980 = vsel %vm1065, %v183, 0
        %1982 = vmatprep.subr.bf16.mxu0 0
        %1983 = vmatpush1.bf16.msra.mxu0 %v1980
        %1984 = vmatprep.subr.bf16.mxu0 0
        %1985 = vmatpush1.bf16.msra.mxu0 0
        %1986 = vmatprep.subr.bf16.mxu0 0
        %1987 = vmatpush1.bf16.msra.mxu0 0
        %1988 = vmatprep.subr.bf16.mxu0 0
        %1989 = vmatpush1.bf16.msra.mxu0 0
        %1990 = vmatprep.subr.bf16.mxu0 0
        %1991 = vmatpush1.bf16.msra.mxu0 0
        %1992 = vmatprep.subr.bf16.mxu0 0
        %1993 = vmatpush1.bf16.msra.mxu0 0
        %1994 = vmatprep.subr.bf16.mxu0 0
        %1995 = vmatpush1.bf16.msra.mxu0 0
        %1996 = vmatprep.subr.bf16.mxu0 0
        %1997 = vmatpush1.bf16.msra.mxu0 0
        %1998 = vmatprep.subr.bf16.mxu0 0
        %1999 = vmatpush1.bf16.msra.mxu0 0
        %2000 = vmatprep.subr.bf16.mxu0 0
        %2001 = vmatpush1.bf16.msra.mxu0 0
        %2002 = vmatprep.subr.bf16.mxu0 0
        %2003 = vmatpush1.bf16.msra.mxu0 0
        %2004 = vmatprep.subr.bf16.mxu0 0
        %2005 = vmatpush1.bf16.msra.mxu0 0
        %2006 = vmatprep.subr.bf16.mxu0 0
        %2007 = vmatpush1.bf16.msra.mxu0 0
        %2008 = vmatprep.subr.bf16.mxu0 0
        %2009 = vmatpush1.bf16.msra.mxu0 0
        %2010 = vmatprep.subr.bf16.mxu0 0
        %2011 = vmatpush1.bf16.msra.mxu0 0
        %2012 = vmatprep.subr.bf16.mxu0 0
        %2013 = vmatpush1.bf16.msra.mxu0 0
        %2014 = vmatprep.mubr.bf16.mxu0 0
        %2015 = vmatmul.mubr.bf16.gmra.mrb[0].mxu0 %v1932
        %v2016 = vpop.f32.mrb[0].mxu0
        %v2017 = vadd.f32 0.0, %v2016
        %v2018 = vpop.f32.mrb[0].mxu0
        %v2019 = vpop.f32.mrb[0].mxu0
        %v2020 = vadd.f32 0.0, %v2019
        %v2021 = vpop.f32.mrb[0].mxu0
        %2022 = vmatprep.mubr.bf16.mxu0 0
        %2023 = vmatmul.mubr.bf16.gmra.mrb[0].mxu0 %v1935
        %v2024 = vpop.f32.mrb[0].mxu0
        %v2025 = vadd.f32 0.0, %v2024
        %v2026 = vpop.f32.mrb[0].mxu0
        %v2027 = vpop.f32.mrb[0].mxu0
        %v2028 = vadd.f32 0.0, %v2027
        %v2029 = vpop.f32.mrb[0].mxu0
        %2030 = vmatprep.mubr.bf16.mxu0 0
        %2031 = vmatmul.mubr.bf16.gmra.mrb[0].mxu0 %v1938
        %v2032 = vpop.f32.mrb[0].mxu0
        %v2033 = vadd.f32 0.0, %v2032
        %v2034 = vpop.f32.mrb[0].mxu0
        %v2035 = vpop.f32.mrb[0].mxu0
        %v2036 = vadd.f32 0.0, %v2035
        %v2037 = vpop.f32.mrb[0].mxu0
        %2038 = vmatprep.mubr.bf16.mxu0 0
        %2039 = vmatmul.mubr.bf16.gmra.mrb[0].mxu0 %v1941
        %v2040 = vpop.f32.mrb[0].mxu0
        %v2041 = vadd.f32 0.0, %v2040
        %v2042 = vpop.f32.mrb[0].mxu0
        %v2043 = vpop.f32.mrb[0].mxu0
        %v2044 = vadd.f32 0.0, %v2043
        %v2045 = vpop.f32.mrb[0].mxu0
        %2046 = vmatprep.mubr.bf16.mxu0 0
        %2047 = vmatmul.mubr.bf16.gmra.mrb[0].mxu0 %v1944
        %v2048 = vpop.f32.mrb[0].mxu0
        %v2049 = vadd.f32 0.0, %v2048
        %v2050 = vpop.f32.mrb[0].mxu0
        %v2051 = vpop.f32.mrb[0].mxu0
        %v2052 = vadd.f32 0.0, %v2051
        %v2053 = vpop.f32.mrb[0].mxu0
        %2054 = vmatprep.mubr.bf16.mxu0 0
        %2055 = vmatmul.mubr.bf16.gmra.mrb[0].mxu0 %v1947
        %v2056 = vpop.f32.mrb[0].mxu0
        %v2057 = vadd.f32 0.0, %v2056
        %v2058 = vpop.f32.mrb[0].mxu0
        %v2059 = vpop.f32.mrb[0].mxu0
        %v2060 = vadd.f32 0.0, %v2059
        %v2061 = vpop.f32.mrb[0].mxu0
        %2062 = vmatprep.mubr.bf16.mxu0 0
        %2063 = vmatmul.mubr.bf16.gmra.mrb[0].mxu0 %v1950
        %v2064 = vpop.f32.mrb[0].mxu0
        %v2065 = vadd.f32 0.0, %v2064
        %v2066 = vpop.f32.mrb[0].mxu0
        %v2067 = vpop.f32.mrb[0].mxu0
        %v2068 = vadd.f32 0.0, %v2067
        %v2069 = vpop.f32.mrb[0].mxu0
        %2070 = vmatprep.mubr.bf16.mxu0 0
        %2071 = vmatmul.mubr.bf16.gmra.mrb[0].mxu0 %v1953
        %v2072 = vpop.f32.mrb[0].mxu0
        %v2073 = vadd.f32 0.0, %v2072
        %v2074 = vpop.f32.mrb[0].mxu0
        %v2075 = vpop.f32.mrb[0].mxu0
        %v2076 = vadd.f32 0.0, %v2075
        %v2077 = vpop.f32.mrb[0].mxu0
        %2078 = vmatprep.mubr.bf16.mxu0 0
        %2079 = vmatmul.mubr.bf16.gmra.mrb[0].mxu0 %v1956
        %v2080 = vpop.f32.mrb[0].mxu0
        %v2081 = vadd.f32 0.0, %v2080
        %v2082 = vpop.f32.mrb[0].mxu0
        %v2083 = vpop.f32.mrb[0].mxu0
        %v2084 = vadd.f32 0.0, %v2083
        %v2085 = vpop.f32.mrb[0].mxu0
        %2086 = vmatprep.mubr.bf16.mxu0 0
        %2087 = vmatmul.mubr.bf16.gmra.mrb[0].mxu0 %v1959
        %v2088 = vpop.f32.mrb[0].mxu0
        %v2089 = vadd.f32 0.0, %v2088
        %v2090 = vpop.f32.mrb[0].mxu0
        %v2091 = vpop.f32.mrb[0].mxu0
        %v2092 = vadd.f32 0.0, %v2091
        %v2093 = vpop.f32.mrb[0].mxu0
        %2094 = vmatprep.mubr.bf16.mxu0 0
        %2095 = vmatmul.mubr.bf16.gmra.mrb[0].mxu0 %v1962
        %v2096 = vpop.f32.mrb[0].mxu0
        %v2097 = vadd.f32 0.0, %v2096
        %v2098 = vpop.f32.mrb[0].mxu0
        %v2099 = vpop.f32.mrb[0].mxu0
        %v2100 = vadd.f32 0.0, %v2099
        %v2101 = vpop.f32.mrb[0].mxu0
        %2102 = vmatprep.mubr.bf16.mxu0 0
        %2103 = vmatmul.mubr.bf16.gmra.mrb[0].mxu0 %v1965
        %v2104 = vpop.f32.mrb[0].mxu0
        %v2105 = vadd.f32 0.0, %v2104
        %v2106 = vpop.f32.mrb[0].mxu0
        %v2107 = vpop.f32.mrb[0].mxu0
        %v2108 = vadd.f32 0.0, %v2107
        %v2109 = vpop.f32.mrb[0].mxu0
        %2110 = vmatprep.mubr.bf16.mxu0 0
        %2111 = vmatmul.mubr.bf16.gmra.mrb[0].mxu0 %v1968
        %v2112 = vpop.f32.mrb[0].mxu0
        %v2113 = vadd.f32 0.0, %v2112
        %v2114 = vpop.f32.mrb[0].mxu0
        %v2115 = vpop.f32.mrb[0].mxu0
        %v2116 = vadd.f32 0.0, %v2115
        %v2117 = vpop.f32.mrb[0].mxu0
        %2118 = vmatprep.mubr.bf16.mxu0 0
        %2119 = vmatmul.mubr.bf16.gmra.mrb[0].mxu0 %v1971
        %v2120 = vpop.f32.mrb[0].mxu0
        %v2121 = vadd.f32 0.0, %v2120
        %v2122 = vpop.f32.mrb[0].mxu0
        %v2123 = vpop.f32.mrb[0].mxu0
        %v2124 = vadd.f32 0.0, %v2123
        %v2125 = vpop.f32.mrb[0].mxu0
        %2126 = vmatprep.mubr.bf16.mxu0 0
        %2127 = vmatmul.mubr.bf16.gmra.mrb[0].mxu0 %v1974
        %v2128 = vpop.f32.mrb[0].mxu0
        %v2129 = vadd.f32 0.0, %v2128
        %v2130 = vpop.f32.mrb[0].mxu0
        %v2131 = vpop.f32.mrb[0].mxu0
        %v2132 = vadd.f32 0.0, %v2131
        %v2133 = vpop.f32.mrb[0].mxu0
        %2134 = vmatprep.mubr.bf16.mxu0 0
        %2135 = vmatmul.mubr.bf16.gmra.mrb[0].mxu0 %v1977
        %v2136 = vpop.f32.mrb[0].mxu0
        %v2137 = vadd.f32 0.0, %v2136
        %v2138 = vpop.f32.mrb[0].mxu0
        %v2139 = vpop.f32.mrb[0].mxu0
        %v2140 = vadd.f32 0.0, %v2139
        %v2141 = vpop.f32.mrb[0].mxu0
        %2142 = vdwg.mxu0
        %v2143 = vadd.f32 %v1396, %v2017
        %v2144 = vadd.f32 %v1399, %v2020
        %v2145 = vadd.f32 %v1404, %v2025
        %v2146 = vadd.f32 %v1407, %v2028
        %v2147 = vadd.f32 %v1412, %v2033
        %v2148 = vadd.f32 %v1415, %v2036
        %v2149 = vadd.f32 %v1420, %v2041
        %v2150 = vadd.f32 %v1423, %v2044
        %v2151 = vadd.f32 %v1428, %v2049
        %v2152 = vadd.f32 %v1431, %v2052
        %v2153 = vadd.f32 %v1436, %v2057
        %v2154 = vadd.f32 %v1439, %v2060
        %v2155 = vadd.f32 %v1444, %v2065
        %v2156 = vadd.f32 %v1447, %v2068
        %v2157 = vadd.f32 %v1452, %v2073
        %v2158 = vadd.f32 %v1455, %v2076
        %v2159 = vadd.f32 %v1460, %v2081
        %v2160 = vadd.f32 %v1463, %v2084
        %v2161 = vadd.f32 %v1468, %v2089
        %v2162 = vadd.f32 %v1471, %v2092
        %v2163 = vadd.f32 %v1476, %v2097
        %v2164 = vadd.f32 %v1479, %v2100
        %v2165 = vadd.f32 %v1484, %v2105
        %v2166 = vadd.f32 %v1487, %v2108
        %v2167 = vadd.f32 %v1492, %v2113
        %v2168 = vadd.f32 %v1495, %v2116
        %v2169 = vadd.f32 %v1500, %v2121
        %v2170 = vadd.f32 %v1503, %v2124
        %v2171 = vadd.f32 %v1508, %v2129
        %v2172 = vadd.f32 %v1511, %v2132
        %v2173 = vadd.f32 %v1516, %v2137
        %v2174 = vadd.f32 %v1519, %v2140
        %v2175 = vsel %vm732, %v147, 0
        %v2176 = vsel %vm733, %v148, 0
        %v2177 = vsel %vm734, %v149, 0
        %v2178 = vsel %vm735, %v150, 0
        %v2179 = vsel %vm736, %v151, 0
        %v2180 = vsel %vm737, %v152, 0
        %v2181 = vsel %vm738, %v153, 0
        %v2182 = vsel %vm739, %v154, 0
        %v2183 = vsel %vm740, %v155, 0
        %v2184 = vsel %vm741, %v156, 0
        %v2185 = vsel %vm742, %v157, 0
        %v2186 = vsel %vm743, %v158, 0
        %v2187 = vsel %vm744, %v159, 0
        %v2188 = vsel %vm745, %v160, 0
        %v2189 = vsel %vm746, %v161, 0
        %v2190 = vsel %vm747, %v162, 0
        %v2191 = vsel %vm748, %v163, 0
        %v2192 = vsel %vm749, %v164, 0
        %v2193 = vsel %vm750, %v165, 0
        %v2194 = vsel %vm751, %v166, 0
        %v2195 = vsel %vm752, %v167, 0
        %v2196 = vsel %vm753, %v168, 0
        %v2197 = vsel %vm754, %v169, 0
        %v2198 = vsel %vm755, %v170, 0
        %v2199 = vsel %vm756, %v171, 0
        %v2200 = vsel %vm757, %v172, 0
        %v2201 = vsel %vm758, %v173, 0
        %v2202 = vsel %vm759, %v174, 0
        %v2203 = vsel %vm760, %v175, 0
        %v2204 = vsel %vm761, %v176, 0
        %v2205 = vsel %vm762, %v177, 0
        %v2206 = vsel %vm763, %v178, 0
        %v2239 = vunpack.c.l.b16 %v2175
        %v2240 = vunpack.c.l.b16 %v2176
        %v2241 = vunpack.c.l.b16 %v2177
        %v2242 = vunpack.c.l.b16 %v2178
        %v2243 = vunpack.c.l.b16 %v2179
        %v2244 = vunpack.c.l.b16 %v2180
        %v2245 = vunpack.c.l.b16 %v2181
        %v2246 = vunpack.c.l.b16 %v2182
        %v2247 = vunpack.c.l.b16 %v2183
        %v2248 = vunpack.c.l.b16 %v2184
        %v2249 = vunpack.c.l.b16 %v2185
        %v2250 = vunpack.c.l.b16 %v2186
        %v2251 = vunpack.c.l.b16 %v2187
        %v2252 = vunpack.c.l.b16 %v2188
        %v2253 = vunpack.c.l.b16 %v2189
        %v2254 = vunpack.c.l.b16 %v2190
        %v2255 = vunpack.c.l.b16 %v2191
        %v2256 = vunpack.c.l.b16 %v2192
        %v2257 = vunpack.c.l.b16 %v2193
        %v2258 = vunpack.c.l.b16 %v2194
        %v2259 = vunpack.c.l.b16 %v2195
        %v2260 = vunpack.c.l.b16 %v2196
        %v2261 = vunpack.c.l.b16 %v2197
        %v2262 = vunpack.c.l.b16 %v2198
        %v2263 = vunpack.c.l.b16 %v2199
        %v2264 = vunpack.c.l.b16 %v2200
        %v2265 = vunpack.c.l.b16 %v2201
        %v2266 = vunpack.c.l.b16 %v2202
        %v2267 = vunpack.c.l.b16 %v2203
        %v2268 = vunpack.c.l.b16 %v2204
        %v2269 = vunpack.c.l.b16 %v2205
        %v2270 = vunpack.c.l.b16 %v2206
        %v2271 = vpack.c.b16 %v2240, %v2239
        %v2272 = vpack.c.b16 %v2242, %v2241
        %v2273 = vpack.c.b16 %v2244, %v2243
        %v2274 = vpack.c.b16 %v2246, %v2245
        %v2275 = vpack.c.b16 %v2248, %v2247
        %v2276 = vpack.c.b16 %v2250, %v2249
        %v2277 = vpack.c.b16 %v2252, %v2251
        %v2278 = vpack.c.b16 %v2254, %v2253
        %v2279 = vpack.c.b16 %v2256, %v2255
        %v2280 = vpack.c.b16 %v2258, %v2257
        %v2281 = vpack.c.b16 %v2260, %v2259
        %v2282 = vpack.c.b16 %v2262, %v2261
        %v2283 = vpack.c.b16 %v2264, %v2263
        %v2284 = vpack.c.b16 %v2266, %v2265
        %v2285 = vpack.c.b16 %v2268, %v2267
        %v2286 = vpack.c.b16 %v2270, %v2269
        %v2288 = vunpack.c.l.b16 %v183
        %v2289 = vpack.c.b16 %v2288, %v2288
        %v2290 = vrot.slane %v2289, 2
        %v2292 = vsel %vm1016, %v2271, 0
        %v2295 = vsel %vm1016, %v2272, 0
        %v2298 = vsel %vm1016, %v2273, 0
        %v2301 = vsel %vm1016, %v2274, 0
        %v2304 = vsel %vm1016, %v2275, 0
        %v2307 = vsel %vm1016, %v2276, 0
        %v2310 = vsel %vm1016, %v2277, 0
        %v2313 = vsel %vm1016, %v2278, 0
        %v2316 = vsel %vm1016, %v2279, 0
        %v2319 = vsel %vm1016, %v2280, 0
        %v2322 = vsel %vm1016, %v2281, 0
        %v2325 = vsel %vm1016, %v2282, 0
        %v2328 = vsel %vm1016, %v2283, 0
        %v2331 = vsel %vm1016, %v2284, 0
        %v2334 = vsel %vm1016, %v2285, 0
        %v2337 = vsel %vm1016, %v2286, 0
        %v2340 = vsel %vm1065, %v2290, 0
        %2342 = vmatprep.subr.bf16.mxu0 0
        %2343 = vmatpush1.bf16.msra.mxu0 %v2340
        %2344 = vmatprep.subr.bf16.mxu0 0
        %2345 = vmatpush1.bf16.msra.mxu0 0
        %2346 = vmatprep.subr.bf16.mxu0 0
        %2347 = vmatpush1.bf16.msra.mxu0 0
        %2348 = vmatprep.subr.bf16.mxu0 0
        %2349 = vmatpush1.bf16.msra.mxu0 0
        %2350 = vmatprep.subr.bf16.mxu0 0
        %2351 = vmatpush1.bf16.msra.mxu0 0
        %2352 = vmatprep.subr.bf16.mxu0 0
        %2353 = vmatpush1.bf16.msra.mxu0 0
        %2354 = vmatprep.subr.bf16.mxu0 0
        %2355 = vmatpush1.bf16.msra.mxu0 0
        %2356 = vmatprep.subr.bf16.mxu0 0
        %2357 = vmatpush1.bf16.msra.mxu0 0
        %2358 = vmatprep.subr.bf16.mxu0 0
        %2359 = vmatpush1.bf16.msra.mxu0 0
        %2360 = vmatprep.subr.bf16.mxu0 0
        %2361 = vmatpush1.bf16.msra.mxu0 0
        %2362 = vmatprep.subr.bf16.mxu0 0
        %2363 = vmatpush1.bf16.msra.mxu0 0
        %2364 = vmatprep.subr.bf16.mxu0 0
        %2365 = vmatpush1.bf16.msra.mxu0 0
        %2366 = vmatprep.subr.bf16.mxu0 0
        %2367 = vmatpush1.bf16.msra.mxu0 0
        %2368 = vmatprep.subr.bf16.mxu0 0
        %2369 = vmatpush1.bf16.msra.mxu0 0
        %2370 = vmatprep.subr.bf16.mxu0 0
        %2371 = vmatpush1.bf16.msra.mxu0 0
        %2372 = vmatprep.subr.bf16.mxu0 0
        %2373 = vmatpush1.bf16.msra.mxu0 0
        %2374 = vmatprep.mubr.bf16.mxu0 0
        %2375 = vmatmul.mubr.bf16.gmra.mrb[0].mxu0 %v2292
        %v2376 = vpop.f32.mrb[0].mxu0
        %v2377 = vadd.f32 0.0, %v2376
        %v2378 = vpop.f32.mrb[0].mxu0
        %v2379 = vpop.f32.mrb[0].mxu0
        %v2380 = vadd.f32 0.0, %v2379
        %v2381 = vpop.f32.mrb[0].mxu0
        %2382 = vmatprep.mubr.bf16.mxu0 0
        %2383 = vmatmul.mubr.bf16.gmra.mrb[0].mxu0 %v2295
        %v2384 = vpop.f32.mrb[0].mxu0
        %v2385 = vadd.f32 0.0, %v2384
        %v2386 = vpop.f32.mrb[0].mxu0
        %v2387 = vpop.f32.mrb[0].mxu0
        %v2388 = vadd.f32 0.0, %v2387
        %v2389 = vpop.f32.mrb[0].mxu0
        %2390 = vmatprep.mubr.bf16.mxu0 0
        %2391 = vmatmul.mubr.bf16.gmra.mrb[0].mxu0 %v2298
        %v2392 = vpop.f32.mrb[0].mxu0
        %v2393 = vadd.f32 0.0, %v2392
        %v2394 = vpop.f32.mrb[0].mxu0
        %v2395 = vpop.f32.mrb[0].mxu0
        %v2396 = vadd.f32 0.0, %v2395
        %v2397 = vpop.f32.mrb[0].mxu0
        %2398 = vmatprep.mubr.bf16.mxu0 0
        %2399 = vmatmul.mubr.bf16.gmra.mrb[0].mxu0 %v2301
        %v2400 = vpop.f32.mrb[0].mxu0
        %v2401 = vadd.f32 0.0, %v2400
        %v2402 = vpop.f32.mrb[0].mxu0
        %v2403 = vpop.f32.mrb[0].mxu0
        %v2404 = vadd.f32 0.0, %v2403
        %v2405 = vpop.f32.mrb[0].mxu0
        %2406 = vmatprep.mubr.bf16.mxu0 0
        %2407 = vmatmul.mubr.bf16.gmra.mrb[0].mxu0 %v2304
        %v2408 = vpop.f32.mrb[0].mxu0
        %v2409 = vadd.f32 0.0, %v2408
        %v2410 = vpop.f32.mrb[0].mxu0
        %v2411 = vpop.f32.mrb[0].mxu0
        %v2412 = vadd.f32 0.0, %v2411
        %v2413 = vpop.f32.mrb[0].mxu0
        %2414 = vmatprep.mubr.bf16.mxu0 0
        %2415 = vmatmul.mubr.bf16.gmra.mrb[0].mxu0 %v2307
        %v2416 = vpop.f32.mrb[0].mxu0
        %v2417 = vadd.f32 0.0, %v2416
        %v2418 = vpop.f32.mrb[0].mxu0
        %v2419 = vpop.f32.mrb[0].mxu0
        %v2420 = vadd.f32 0.0, %v2419
        %v2421 = vpop.f32.mrb[0].mxu0
        %2422 = vmatprep.mubr.bf16.mxu0 0
        %2423 = vmatmul.mubr.bf16.gmra.mrb[0].mxu0 %v2310
        %v2424 = vpop.f32.mrb[0].mxu0
        %v2425 = vadd.f32 0.0, %v2424
        %v2426 = vpop.f32.mrb[0].mxu0
        %v2427 = vpop.f32.mrb[0].mxu0
        %v2428 = vadd.f32 0.0, %v2427
        %v2429 = vpop.f32.mrb[0].mxu0
        %2430 = vmatprep.mubr.bf16.mxu0 0
        %2431 = vmatmul.mubr.bf16.gmra.mrb[0].mxu0 %v2313
        %v2432 = vpop.f32.mrb[0].mxu0
        %v2433 = vadd.f32 0.0, %v2432
        %v2434 = vpop.f32.mrb[0].mxu0
        %v2435 = vpop.f32.mrb[0].mxu0
        %v2436 = vadd.f32 0.0, %v2435
        %v2437 = vpop.f32.mrb[0].mxu0
        %2438 = vmatprep.mubr.bf16.mxu0 0
        %2439 = vmatmul.mubr.bf16.gmra.mrb[0].mxu0 %v2316
        %v2440 = vpop.f32.mrb[0].mxu0
        %v2441 = vadd.f32 0.0, %v2440
        %v2442 = vpop.f32.mrb[0].mxu0
        %v2443 = vpop.f32.mrb[0].mxu0
        %v2444 = vadd.f32 0.0, %v2443
        %v2445 = vpop.f32.mrb[0].mxu0
        %2446 = vmatprep.mubr.bf16.mxu0 0
        %2447 = vmatmul.mubr.bf16.gmra.mrb[0].mxu0 %v2319
        %v2448 = vpop.f32.mrb[0].mxu0
        %v2449 = vadd.f32 0.0, %v2448
        %v2450 = vpop.f32.mrb[0].mxu0
        %v2451 = vpop.f32.mrb[0].mxu0
        %v2452 = vadd.f32 0.0, %v2451
        %v2453 = vpop.f32.mrb[0].mxu0
        %2454 = vmatprep.mubr.bf16.mxu0 0
        %2455 = vmatmul.mubr.bf16.gmra.mrb[0].mxu0 %v2322
        %v2456 = vpop.f32.mrb[0].mxu0
        %v2457 = vadd.f32 0.0, %v2456
        %v2458 = vpop.f32.mrb[0].mxu0
        %v2459 = vpop.f32.mrb[0].mxu0
        %v2460 = vadd.f32 0.0, %v2459
        %v2461 = vpop.f32.mrb[0].mxu0
        %2462 = vmatprep.mubr.bf16.mxu0 0
        %2463 = vmatmul.mubr.bf16.gmra.mrb[0].mxu0 %v2325
        %v2464 = vpop.f32.mrb[0].mxu0
        %v2465 = vadd.f32 0.0, %v2464
        %v2466 = vpop.f32.mrb[0].mxu0
        %v2467 = vpop.f32.mrb[0].mxu0
        %v2468 = vadd.f32 0.0, %v2467
        %v2469 = vpop.f32.mrb[0].mxu0
        %2470 = vmatprep.mubr.bf16.mxu0 0
        %2471 = vmatmul.mubr.bf16.gmra.mrb[0].mxu0 %v2328
        %v2472 = vpop.f32.mrb[0].mxu0
        %v2473 = vadd.f32 0.0, %v2472
        %v2474 = vpop.f32.mrb[0].mxu0
        %v2475 = vpop.f32.mrb[0].mxu0
        %v2476 = vadd.f32 0.0, %v2475
        %v2477 = vpop.f32.mrb[0].mxu0
        %2478 = vmatprep.mubr.bf16.mxu0 0
        %2479 = vmatmul.mubr.bf16.gmra.mrb[0].mxu0 %v2331
        %v2480 = vpop.f32.mrb[0].mxu0
        %v2481 = vadd.f32 0.0, %v2480
        %v2482 = vpop.f32.mrb[0].mxu0
        %v2483 = vpop.f32.mrb[0].mxu0
        %v2484 = vadd.f32 0.0, %v2483
        %v2485 = vpop.f32.mrb[0].mxu0
        %2486 = vmatprep.mubr.bf16.mxu0 0
        %2487 = vmatmul.mubr.bf16.gmra.mrb[0].mxu0 %v2334
        %v2488 = vpop.f32.mrb[0].mxu0
        %v2489 = vadd.f32 0.0, %v2488
        %v2490 = vpop.f32.mrb[0].mxu0
        %v2491 = vpop.f32.mrb[0].mxu0
        %v2492 = vadd.f32 0.0, %v2491
        %v2493 = vpop.f32.mrb[0].mxu0
        %2494 = vmatprep.mubr.bf16.mxu0 0
        %2495 = vmatmul.mubr.bf16.gmra.mrb[0].mxu0 %v2337
        %v2496 = vpop.f32.mrb[0].mxu0
        %v2497 = vadd.f32 0.0, %v2496
        %v2498 = vpop.f32.mrb[0].mxu0
        %v2499 = vpop.f32.mrb[0].mxu0
        %v2500 = vadd.f32 0.0, %v2499
        %v2501 = vpop.f32.mrb[0].mxu0
        %2502 = vdwg.mxu0
        %v2503 = vadd.f32 %v2143, %v2377
        %v2504 = vadd.f32 %v2144, %v2380
        %v2505 = vadd.f32 %v2145, %v2385
        %v2506 = vadd.f32 %v2146, %v2388
        %v2507 = vadd.f32 %v2147, %v2393
        %v2508 = vadd.f32 %v2148, %v2396
        %v2509 = vadd.f32 %v2149, %v2401
        %v2510 = vadd.f32 %v2150, %v2404
        %v2511 = vadd.f32 %v2151, %v2409
        %v2512 = vadd.f32 %v2152, %v2412
        %v2513 = vadd.f32 %v2153, %v2417
        %v2514 = vadd.f32 %v2154, %v2420
        %v2515 = vadd.f32 %v2155, %v2425
        %v2516 = vadd.f32 %v2156, %v2428
        %v2517 = vadd.f32 %v2157, %v2433
        %v2518 = vadd.f32 %v2158, %v2436
        %v2519 = vadd.f32 %v2159, %v2441
        %v2520 = vadd.f32 %v2160, %v2444
        %v2521 = vadd.f32 %v2161, %v2449
        %v2522 = vadd.f32 %v2162, %v2452
        %v2523 = vadd.f32 %v2163, %v2457
        %v2524 = vadd.f32 %v2164, %v2460
        %v2525 = vadd.f32 %v2165, %v2465
        %v2526 = vadd.f32 %v2166, %v2468
        %v2527 = vadd.f32 %v2167, %v2473
        %v2528 = vadd.f32 %v2168, %v2476
        %v2529 = vadd.f32 %v2169, %v2481
        %v2530 = vadd.f32 %v2170, %v2484
        %v2531 = vadd.f32 %v2171, %v2489
        %v2532 = vadd.f32 %v2172, %v2492
        %v2533 = vadd.f32 %v2173, %v2497
        %v2534 = vadd.f32 %v2174, %v2500
        %v2537 = vunpack.c.l.b16 %v178
        %v2538 = vunpack.c.l.b16 %v179
        %v2539 = vpack.c.b16 %v2537, %v861
        %v2540 = vpack.c.b16 %v2538, %v2538
        %v2542 = vshll.u32 %v2539, 16
        %v2544 = vrot.slane %v2542, 1
        %v2545 = vsel %vm879, %v1006, %v2544
        %v2546 = vshrl.u32 %v2539, 16
        %v2548 = vor.u32 %v2546, %v2544
        %v2550 = vshll.u32 %v2540, 16
        %v2552 = vrot.slane %v2550, 1
        %v2553 = vsel %vm879, %v2548, %v2552
        %v2555 = vsel %vm1016, %v2545, 0
        %v2558 = vsel %vm1016, %v2553, 0
        %v2561 = vsel %vm1065, %v184, 0
        %2563 = vmatprep.subr.bf16.mxu0 0
        %2564 = vmatpush1.bf16.msra.mxu0 %v2561
        %2565 = vmatprep.subr.bf16.mxu0 0
        %2566 = vmatpush1.bf16.msra.mxu0 0
        %2567 = vmatprep.subr.bf16.mxu0 0
        %2568 = vmatpush1.bf16.msra.mxu0 0
        %2569 = vmatprep.subr.bf16.mxu0 0
        %2570 = vmatpush1.bf16.msra.mxu0 0
        %2571 = vmatprep.subr.bf16.mxu0 0
        %2572 = vmatpush1.bf16.msra.mxu0 0
        %2573 = vmatprep.subr.bf16.mxu0 0
        %2574 = vmatpush1.bf16.msra.mxu0 0
        %2575 = vmatprep.subr.bf16.mxu0 0
        %2576 = vmatpush1.bf16.msra.mxu0 0
        %2577 = vmatprep.subr.bf16.mxu0 0
        %2578 = vmatpush1.bf16.msra.mxu0 0
        %2579 = vmatprep.subr.bf16.mxu0 0
        %2580 = vmatpush1.bf16.msra.mxu0 0
        %2581 = vmatprep.subr.bf16.mxu0 0
        %2582 = vmatpush1.bf16.msra.mxu0 0
        %2583 = vmatprep.subr.bf16.mxu0 0
        %2584 = vmatpush1.bf16.msra.mxu0 0
        %2585 = vmatprep.subr.bf16.mxu0 0
        %2586 = vmatpush1.bf16.msra.mxu0 0
        %2587 = vmatprep.subr.bf16.mxu0 0
        %2588 = vmatpush1.bf16.msra.mxu0 0
        %2589 = vmatprep.subr.bf16.mxu0 0
        %2590 = vmatpush1.bf16.msra.mxu0 0
        %2591 = vmatprep.subr.bf16.mxu0 0
        %2592 = vmatpush1.bf16.msra.mxu0 0
        %2593 = vmatprep.subr.bf16.mxu0 0
        %2594 = vmatpush1.bf16.msra.mxu0 0
        %2595 = vmatprep.mubr.bf16.mxu0 0
        %2596 = vmatmul.mubr.bf16.gmra.mrb[0].mxu0 %v1021
        %v2597 = vpop.f32.mrb[0].mxu0
        %v2598 = vadd.f32 0.0, %v2597
        %v2599 = vpop.f32.mrb[0].mxu0
        %v2600 = vpop.f32.mrb[0].mxu0
        %v2601 = vadd.f32 0.0, %v2600
        %v2602 = vpop.f32.mrb[0].mxu0
        %2603 = vmatprep.mubr.bf16.mxu0 0
        %2604 = vmatmul.mubr.bf16.gmra.mrb[0].mxu0 %v1024
        %v2605 = vpop.f32.mrb[0].mxu0
        %v2606 = vadd.f32 0.0, %v2605
        %v2607 = vpop.f32.mrb[0].mxu0
        %v2608 = vpop.f32.mrb[0].mxu0
        %v2609 = vadd.f32 0.0, %v2608
        %v2610 = vpop.f32.mrb[0].mxu0
        %2611 = vmatprep.mubr.bf16.mxu0 0
        %2612 = vmatmul.mubr.bf16.gmra.mrb[0].mxu0 %v1027
        %v2613 = vpop.f32.mrb[0].mxu0
        %v2614 = vadd.f32 0.0, %v2613
        %v2615 = vpop.f32.mrb[0].mxu0
        %v2616 = vpop.f32.mrb[0].mxu0
        %v2617 = vadd.f32 0.0, %v2616
        %v2618 = vpop.f32.mrb[0].mxu0
        %2619 = vmatprep.mubr.bf16.mxu0 0
        %2620 = vmatmul.mubr.bf16.gmra.mrb[0].mxu0 %v1030
        %v2621 = vpop.f32.mrb[0].mxu0
        %v2622 = vadd.f32 0.0, %v2621
        %v2623 = vpop.f32.mrb[0].mxu0
        %v2624 = vpop.f32.mrb[0].mxu0
        %v2625 = vadd.f32 0.0, %v2624
        %v2626 = vpop.f32.mrb[0].mxu0
        %2627 = vmatprep.mubr.bf16.mxu0 0
        %2628 = vmatmul.mubr.bf16.gmra.mrb[0].mxu0 %v1033
        %v2629 = vpop.f32.mrb[0].mxu0
        %v2630 = vadd.f32 0.0, %v2629
        %v2631 = vpop.f32.mrb[0].mxu0
        %v2632 = vpop.f32.mrb[0].mxu0
        %v2633 = vadd.f32 0.0, %v2632
        %v2634 = vpop.f32.mrb[0].mxu0
        %2635 = vmatprep.mubr.bf16.mxu0 0
        %2636 = vmatmul.mubr.bf16.gmra.mrb[0].mxu0 %v1036
        %v2637 = vpop.f32.mrb[0].mxu0
        %v2638 = vadd.f32 0.0, %v2637
        %v2639 = vpop.f32.mrb[0].mxu0
        %v2640 = vpop.f32.mrb[0].mxu0
        %v2641 = vadd.f32 0.0, %v2640
        %v2642 = vpop.f32.mrb[0].mxu0
        %2643 = vmatprep.mubr.bf16.mxu0 0
        %2644 = vmatmul.mubr.bf16.gmra.mrb[0].mxu0 %v1039
        %v2645 = vpop.f32.mrb[0].mxu0
        %v2646 = vadd.f32 0.0, %v2645
        %v2647 = vpop.f32.mrb[0].mxu0
        %v2648 = vpop.f32.mrb[0].mxu0
        %v2649 = vadd.f32 0.0, %v2648
        %v2650 = vpop.f32.mrb[0].mxu0
        %2651 = vmatprep.mubr.bf16.mxu0 0
        %2652 = vmatmul.mubr.bf16.gmra.mrb[0].mxu0 %v1042
        %v2653 = vpop.f32.mrb[0].mxu0
        %v2654 = vadd.f32 0.0, %v2653
        %v2655 = vpop.f32.mrb[0].mxu0
        %v2656 = vpop.f32.mrb[0].mxu0
        %v2657 = vadd.f32 0.0, %v2656
        %v2658 = vpop.f32.mrb[0].mxu0
        %2659 = vmatprep.mubr.bf16.mxu0 0
        %2660 = vmatmul.mubr.bf16.gmra.mrb[0].mxu0 %v1045
        %v2661 = vpop.f32.mrb[0].mxu0
        %v2662 = vadd.f32 0.0, %v2661
        %v2663 = vpop.f32.mrb[0].mxu0
        %v2664 = vpop.f32.mrb[0].mxu0
        %v2665 = vadd.f32 0.0, %v2664
        %v2666 = vpop.f32.mrb[0].mxu0
        %2667 = vmatprep.mubr.bf16.mxu0 0
        %2668 = vmatmul.mubr.bf16.gmra.mrb[0].mxu0 %v1048
        %v2669 = vpop.f32.mrb[0].mxu0
        %v2670 = vadd.f32 0.0, %v2669
        %v2671 = vpop.f32.mrb[0].mxu0
        %v2672 = vpop.f32.mrb[0].mxu0
        %v2673 = vadd.f32 0.0, %v2672
        %v2674 = vpop.f32.mrb[0].mxu0
        %2675 = vmatprep.mubr.bf16.mxu0 0
        %2676 = vmatmul.mubr.bf16.gmra.mrb[0].mxu0 %v1051
        %v2677 = vpop.f32.mrb[0].mxu0
        %v2678 = vadd.f32 0.0, %v2677
        %v2679 = vpop.f32.mrb[0].mxu0
        %v2680 = vpop.f32.mrb[0].mxu0
        %v2681 = vadd.f32 0.0, %v2680
        %v2682 = vpop.f32.mrb[0].mxu0
        %2683 = vmatprep.mubr.bf16.mxu0 0
        %2684 = vmatmul.mubr.bf16.gmra.mrb[0].mxu0 %v1054
        %v2685 = vpop.f32.mrb[0].mxu0
        %v2686 = vadd.f32 0.0, %v2685
        %v2687 = vpop.f32.mrb[0].mxu0
        %v2688 = vpop.f32.mrb[0].mxu0
        %v2689 = vadd.f32 0.0, %v2688
        %v2690 = vpop.f32.mrb[0].mxu0
        %2691 = vmatprep.mubr.bf16.mxu0 0
        %2692 = vmatmul.mubr.bf16.gmra.mrb[0].mxu0 %v1057
        %v2693 = vpop.f32.mrb[0].mxu0
        %v2694 = vadd.f32 0.0, %v2693
        %v2695 = vpop.f32.mrb[0].mxu0
        %v2696 = vpop.f32.mrb[0].mxu0
        %v2697 = vadd.f32 0.0, %v2696
        %v2698 = vpop.f32.mrb[0].mxu0
        %2699 = vmatprep.mubr.bf16.mxu0 0
        %2700 = vmatmul.mubr.bf16.gmra.mrb[0].mxu0 %v1060
        %v2701 = vpop.f32.mrb[0].mxu0
        %v2702 = vadd.f32 0.0, %v2701
        %v2703 = vpop.f32.mrb[0].mxu0
        %v2704 = vpop.f32.mrb[0].mxu0
        %v2705 = vadd.f32 0.0, %v2704
        %v2706 = vpop.f32.mrb[0].mxu0
        %2707 = vmatprep.mubr.bf16.mxu0 0
        %2708 = vmatmul.mubr.bf16.gmra.mrb[0].mxu0 %v2555
        %v2709 = vpop.f32.mrb[0].mxu0
        %v2710 = vadd.f32 0.0, %v2709
        %v2711 = vpop.f32.mrb[0].mxu0
        %v2712 = vpop.f32.mrb[0].mxu0
        %v2713 = vadd.f32 0.0, %v2712
        %v2714 = vpop.f32.mrb[0].mxu0
        %2715 = vmatprep.mubr.bf16.mxu0 0
        %2716 = vmatmul.mubr.bf16.gmra.mrb[0].mxu0 %v2558
        %v2717 = vpop.f32.mrb[0].mxu0
        %v2718 = vadd.f32 0.0, %v2717
        %v2719 = vpop.f32.mrb[0].mxu0
        %v2720 = vpop.f32.mrb[0].mxu0
        %v2721 = vadd.f32 0.0, %v2720
        %v2722 = vpop.f32.mrb[0].mxu0
        %2723 = vdwg.mxu0
        %v2724 = vadd.f32 %v2503, %v2598
        %v2725 = vadd.f32 %v2504, %v2601
        %v2726 = vadd.f32 %v2505, %v2606
        %v2727 = vadd.f32 %v2506, %v2609
        %v2728 = vadd.f32 %v2507, %v2614
        %v2729 = vadd.f32 %v2508, %v2617
        %v2730 = vadd.f32 %v2509, %v2622
        %v2731 = vadd.f32 %v2510, %v2625
        %v2732 = vadd.f32 %v2511, %v2630
        %v2733 = vadd.f32 %v2512, %v2633
        %v2734 = vadd.f32 %v2513, %v2638
        %v2735 = vadd.f32 %v2514, %v2641
        %v2736 = vadd.f32 %v2515, %v2646
        %v2737 = vadd.f32 %v2516, %v2649
        %v2738 = vadd.f32 %v2517, %v2654
        %v2739 = vadd.f32 %v2518, %v2657
        %v2740 = vadd.f32 %v2519, %v2662
        %v2741 = vadd.f32 %v2520, %v2665
        %v2742 = vadd.f32 %v2521, %v2670
        %v2743 = vadd.f32 %v2522, %v2673
        %v2744 = vadd.f32 %v2523, %v2678
        %v2745 = vadd.f32 %v2524, %v2681
        %v2746 = vadd.f32 %v2525, %v2686
        %v2747 = vadd.f32 %v2526, %v2689
        %v2748 = vadd.f32 %v2527, %v2694
        %v2749 = vadd.f32 %v2528, %v2697
        %v2750 = vadd.f32 %v2529, %v2702
        %v2751 = vadd.f32 %v2530, %v2705
        %v2752 = vadd.f32 %v2531, %v2710
        %v2753 = vadd.f32 %v2532, %v2713
        %v2754 = vadd.f32 %v2533, %v2718
        %v2755 = vadd.f32 %v2534, %v2721
        %v2756 = vsel %vm1748, %v147, 0
        %v2757 = vsel %vm1749, %v148, 0
        %v2758 = vsel %vm1750, %v149, 0
        %v2759 = vsel %vm1751, %v150, 0
        %v2760 = vsel %vm1752, %v151, 0
        %v2761 = vsel %vm1753, %v152, 0
        %v2762 = vsel %vm1754, %v153, 0
        %v2763 = vsel %vm1755, %v154, 0
        %v2764 = vsel %vm1756, %v155, 0
        %v2765 = vsel %vm1757, %v156, 0
        %v2766 = vsel %vm1758, %v157, 0
        %v2767 = vsel %vm1759, %v158, 0
        %v2768 = vsel %vm1760, %v159, 0
        %v2769 = vsel %vm1761, %v160, 0
        %v2770 = vsel %vm1762, %v161, 0
        %v2771 = vsel %vm1763, %v162, 0
        %v2772 = vsel %vm1764, %v163, 0
        %v2773 = vsel %vm1765, %v164, 0
        %v2774 = vsel %vm1766, %v165, 0
        %v2775 = vsel %vm1767, %v166, 0
        %v2776 = vsel %vm1768, %v167, 0
        %v2777 = vsel %vm1769, %v168, 0
        %v2778 = vsel %vm1770, %v169, 0
        %v2779 = vsel %vm1771, %v170, 0
        %v2780 = vsel %vm1772, %v171, 0
        %v2781 = vsel %vm1773, %v172, 0
        %v2782 = vsel %vm1774, %v173, 0
        %v2783 = vsel %vm1775, %v174, 0
        %v2784 = vsel %vm1776, %v175, 0
        %v2785 = vsel %vm1777, %v176, 0
        %v2786 = vsel %vm1778, %v177, 0
        %v2787 = vsel %vm1779, %v178, 0
        %v2788 = vsel %vm1780, %v179, 0
        %v2822 = vunpack.c.l.b16 %v2756
        %v2823 = vunpack.c.l.b16 %v2757
        %v2824 = vunpack.c.l.b16 %v2758
        %v2825 = vunpack.c.l.b16 %v2759
        %v2826 = vunpack.c.l.b16 %v2760
        %v2827 = vunpack.c.l.b16 %v2761
        %v2828 = vunpack.c.l.b16 %v2762
        %v2829 = vunpack.c.l.b16 %v2763
        %v2830 = vunpack.c.l.b16 %v2764
        %v2831 = vunpack.c.l.b16 %v2765
        %v2832 = vunpack.c.l.b16 %v2766
        %v2833 = vunpack.c.l.b16 %v2767
        %v2834 = vunpack.c.l.b16 %v2768
        %v2835 = vunpack.c.l.b16 %v2769
        %v2836 = vunpack.c.l.b16 %v2770
        %v2837 = vunpack.c.l.b16 %v2771
        %v2838 = vunpack.c.l.b16 %v2772
        %v2839 = vunpack.c.l.b16 %v2773
        %v2840 = vunpack.c.l.b16 %v2774
        %v2841 = vunpack.c.l.b16 %v2775
        %v2842 = vunpack.c.l.b16 %v2776
        %v2843 = vunpack.c.l.b16 %v2777
        %v2844 = vunpack.c.l.b16 %v2778
        %v2845 = vunpack.c.l.b16 %v2779
        %v2846 = vunpack.c.l.b16 %v2780
        %v2847 = vunpack.c.l.b16 %v2781
        %v2848 = vunpack.c.l.b16 %v2782
        %v2849 = vunpack.c.l.b16 %v2783
        %v2850 = vunpack.c.l.b16 %v2784
        %v2851 = vunpack.c.l.b16 %v2785
        %v2852 = vunpack.c.l.b16 %v2786
        %v2853 = vunpack.c.l.b16 %v2787
        %v2854 = vunpack.c.l.b16 %v2788
        %v2855 = vpack.c.b16 %v2823, %v2822
        %v2856 = vpack.c.b16 %v2825, %v2824
        %v2857 = vpack.c.b16 %v2827, %v2826
        %v2858 = vpack.c.b16 %v2829, %v2828
        %v2859 = vpack.c.b16 %v2831, %v2830
        %v2860 = vpack.c.b16 %v2833, %v2832
        %v2861 = vpack.c.b16 %v2835, %v2834
        %v2862 = vpack.c.b16 %v2837, %v2836
        %v2863 = vpack.c.b16 %v2839, %v2838
        %v2864 = vpack.c.b16 %v2841, %v2840
        %v2865 = vpack.c.b16 %v2843, %v2842
        %v2866 = vpack.c.b16 %v2845, %v2844
        %v2867 = vpack.c.b16 %v2847, %v2846
        %v2868 = vpack.c.b16 %v2849, %v2848
        %v2869 = vpack.c.b16 %v2851, %v2850
        %v2870 = vpack.c.b16 %v2853, %v2852
        %v2871 = vpack.c.b16 %v2854, %v2854
        %v2872 = vrot.slane %v2855, 1
        %v2873 = vrot.slane %v2856, 1
        %v2874 = vsel %vm1897, %v2872, %v2873
        %v2875 = vrot.slane %v2857, 1
        %v2876 = vsel %vm1897, %v2873, %v2875
        %v2877 = vrot.slane %v2858, 1
        %v2878 = vsel %vm1897, %v2875, %v2877
        %v2879 = vrot.slane %v2859, 1
        %v2880 = vsel %vm1897, %v2877, %v2879
        %v2881 = vrot.slane %v2860, 1
        %v2882 = vsel %vm1897, %v2879, %v2881
        %v2883 = vrot.slane %v2861, 1
        %v2884 = vsel %vm1897, %v2881, %v2883
        %v2885 = vrot.slane %v2862, 1
        %v2886 = vsel %vm1897, %v2883, %v2885
        %v2887 = vrot.slane %v2863, 1
        %v2888 = vsel %vm1897, %v2885, %v2887
        %v2889 = vrot.slane %v2864, 1
        %v2890 = vsel %vm1897, %v2887, %v2889
        %v2891 = vrot.slane %v2865, 1
        %v2892 = vsel %vm1897, %v2889, %v2891
        %v2893 = vrot.slane %v2866, 1
        %v2894 = vsel %vm1897, %v2891, %v2893
        %v2895 = vrot.slane %v2867, 1
        %v2896 = vsel %vm1897, %v2893, %v2895
        %v2897 = vrot.slane %v2868, 1
        %v2898 = vsel %vm1897, %v2895, %v2897
        %v2899 = vrot.slane %v2869, 1
        %v2900 = vsel %vm1897, %v2897, %v2899
        %v2901 = vrot.slane %v2870, 1
        %v2902 = vsel %vm1897, %v2899, %v2901
        %v2903 = vrot.slane %v2871, 1
        %v2904 = vsel %vm1897, %v2901, %v2903
        %v2906 = vunpack.c.l.b16 %v184
        %v2907 = vpack.c.b16 %v2906, %v2906
        %v2908 = vrot.slane %v2907, 2
        %v2910 = vsel %vm1016, %v2874, 0
        %v2913 = vsel %vm1016, %v2876, 0
        %v2916 = vsel %vm1016, %v2878, 0
        %v2919 = vsel %vm1016, %v2880, 0
        %v2922 = vsel %vm1016, %v2882, 0
        %v2925 = vsel %vm1016, %v2884, 0
        %v2928 = vsel %vm1016, %v2886, 0
        %v2931 = vsel %vm1016, %v2888, 0
        %v2934 = vsel %vm1016, %v2890, 0
        %v2937 = vsel %vm1016, %v2892, 0
        %v2940 = vsel %vm1016, %v2894, 0
        %v2943 = vsel %vm1016, %v2896, 0
        %v2946 = vsel %vm1016, %v2898, 0
        %v2949 = vsel %vm1016, %v2900, 0
        %v2952 = vsel %vm1016, %v2902, 0
        %v2955 = vsel %vm1016, %v2904, 0
        %v2958 = vsel %vm1065, %v2908, 0
        %2960 = vmatprep.subr.bf16.mxu0 0
        %2961 = vmatpush1.bf16.msra.mxu0 %v2958
        %2962 = vmatprep.subr.bf16.mxu0 0
        %2963 = vmatpush1.bf16.msra.mxu0 0
        %2964 = vmatprep.subr.bf16.mxu0 0
        %2965 = vmatpush1.bf16.msra.mxu0 0
        %2966 = vmatprep.subr.bf16.mxu0 0
        %2967 = vmatpush1.bf16.msra.mxu0 0
        %2968 = vmatprep.subr.bf16.mxu0 0
        %2969 = vmatpush1.bf16.msra.mxu0 0
        %2970 = vmatprep.subr.bf16.mxu0 0
        %2971 = vmatpush1.bf16.msra.mxu0 0
        %2972 = vmatprep.subr.bf16.mxu0 0
        %2973 = vmatpush1.bf16.msra.mxu0 0
        %2974 = vmatprep.subr.bf16.mxu0 0
        %2975 = vmatpush1.bf16.msra.mxu0 0
        %2976 = vmatprep.subr.bf16.mxu0 0
        %2977 = vmatpush1.bf16.msra.mxu0 0
        %2978 = vmatprep.subr.bf16.mxu0 0
        %2979 = vmatpush1.bf16.msra.mxu0 0
        %2980 = vmatprep.subr.bf16.mxu0 0
        %2981 = vmatpush1.bf16.msra.mxu0 0
        %2982 = vmatprep.subr.bf16.mxu0 0
        %2983 = vmatpush1.bf16.msra.mxu0 0
        %2984 = vmatprep.subr.bf16.mxu0 0
        %2985 = vmatpush1.bf16.msra.mxu0 0
        %2986 = vmatprep.subr.bf16.mxu0 0
        %2987 = vmatpush1.bf16.msra.mxu0 0
        %2988 = vmatprep.subr.bf16.mxu0 0
        %2989 = vmatpush1.bf16.msra.mxu0 0
        %2990 = vmatprep.subr.bf16.mxu0 0
        %2991 = vmatpush1.bf16.msra.mxu0 0
        %2992 = vmatprep.mubr.bf16.mxu0 0
        %2993 = vmatmul.mubr.bf16.gmra.mrb[0].mxu0 %v2910
        %v2994 = vpop.f32.mrb[0].mxu0
        %v2995 = vadd.f32 0.0, %v2994
        %v2996 = vpop.f32.mrb[0].mxu0
        %v2997 = vpop.f32.mrb[0].mxu0
        %v2998 = vadd.f32 0.0, %v2997
        %v2999 = vpop.f32.mrb[0].mxu0
        %3000 = vmatprep.mubr.bf16.mxu0 0
        %3001 = vmatmul.mubr.bf16.gmra.mrb[0].mxu0 %v2913
        %v3002 = vpop.f32.mrb[0].mxu0
        %v3003 = vadd.f32 0.0, %v3002
        %v3004 = vpop.f32.mrb[0].mxu0
        %v3005 = vpop.f32.mrb[0].mxu0
        %v3006 = vadd.f32 0.0, %v3005
        %v3007 = vpop.f32.mrb[0].mxu0
        %3008 = vmatprep.mubr.bf16.mxu0 0
        %3009 = vmatmul.mubr.bf16.gmra.mrb[0].mxu0 %v2916
        %v3010 = vpop.f32.mrb[0].mxu0
        %v3011 = vadd.f32 0.0, %v3010
        %v3012 = vpop.f32.mrb[0].mxu0
        %v3013 = vpop.f32.mrb[0].mxu0
        %v3014 = vadd.f32 0.0, %v3013
        %v3015 = vpop.f32.mrb[0].mxu0
        %3016 = vmatprep.mubr.bf16.mxu0 0
        %3017 = vmatmul.mubr.bf16.gmra.mrb[0].mxu0 %v2919
        %v3018 = vpop.f32.mrb[0].mxu0
        %v3019 = vadd.f32 0.0, %v3018
        %v3020 = vpop.f32.mrb[0].mxu0
        %v3021 = vpop.f32.mrb[0].mxu0
        %v3022 = vadd.f32 0.0, %v3021
        %v3023 = vpop.f32.mrb[0].mxu0
        %3024 = vmatprep.mubr.bf16.mxu0 0
        %3025 = vmatmul.mubr.bf16.gmra.mrb[0].mxu0 %v2922
        %v3026 = vpop.f32.mrb[0].mxu0
        %v3027 = vadd.f32 0.0, %v3026
        %v3028 = vpop.f32.mrb[0].mxu0
        %v3029 = vpop.f32.mrb[0].mxu0
        %v3030 = vadd.f32 0.0, %v3029
        %v3031 = vpop.f32.mrb[0].mxu0
        %3032 = vmatprep.mubr.bf16.mxu0 0
        %3033 = vmatmul.mubr.bf16.gmra.mrb[0].mxu0 %v2925
        %v3034 = vpop.f32.mrb[0].mxu0
        %v3035 = vadd.f32 0.0, %v3034
        %v3036 = vpop.f32.mrb[0].mxu0
        %v3037 = vpop.f32.mrb[0].mxu0
        %v3038 = vadd.f32 0.0, %v3037
        %v3039 = vpop.f32.mrb[0].mxu0
        %3040 = vmatprep.mubr.bf16.mxu0 0
        %3041 = vmatmul.mubr.bf16.gmra.mrb[0].mxu0 %v2928
        %v3042 = vpop.f32.mrb[0].mxu0
        %v3043 = vadd.f32 0.0, %v3042
        %v3044 = vpop.f32.mrb[0].mxu0
        %v3045 = vpop.f32.mrb[0].mxu0
        %v3046 = vadd.f32 0.0, %v3045
        %v3047 = vpop.f32.mrb[0].mxu0
        %3048 = vmatprep.mubr.bf16.mxu0 0
        %3049 = vmatmul.mubr.bf16.gmra.mrb[0].mxu0 %v2931
        %v3050 = vpop.f32.mrb[0].mxu0
        %v3051 = vadd.f32 0.0, %v3050
        %v3052 = vpop.f32.mrb[0].mxu0
        %v3053 = vpop.f32.mrb[0].mxu0
        %v3054 = vadd.f32 0.0, %v3053
        %v3055 = vpop.f32.mrb[0].mxu0
        %3056 = vmatprep.mubr.bf16.mxu0 0
        %3057 = vmatmul.mubr.bf16.gmra.mrb[0].mxu0 %v2934
        %v3058 = vpop.f32.mrb[0].mxu0
        %v3059 = vadd.f32 0.0, %v3058
        %v3060 = vpop.f32.mrb[0].mxu0
        %v3061 = vpop.f32.mrb[0].mxu0
        %v3062 = vadd.f32 0.0, %v3061
        %v3063 = vpop.f32.mrb[0].mxu0
        %3064 = vmatprep.mubr.bf16.mxu0 0
        %3065 = vmatmul.mubr.bf16.gmra.mrb[0].mxu0 %v2937
        %v3066 = vpop.f32.mrb[0].mxu0
        %v3067 = vadd.f32 0.0, %v3066
        %v3068 = vpop.f32.mrb[0].mxu0
        %v3069 = vpop.f32.mrb[0].mxu0
        %v3070 = vadd.f32 0.0, %v3069
        %v3071 = vpop.f32.mrb[0].mxu0
        %3072 = vmatprep.mubr.bf16.mxu0 0
        %3073 = vmatmul.mubr.bf16.gmra.mrb[0].mxu0 %v2940
        %v3074 = vpop.f32.mrb[0].mxu0
        %v3075 = vadd.f32 0.0, %v3074
        %v3076 = vpop.f32.mrb[0].mxu0
        %v3077 = vpop.f32.mrb[0].mxu0
        %v3078 = vadd.f32 0.0, %v3077
        %v3079 = vpop.f32.mrb[0].mxu0
        %3080 = vmatprep.mubr.bf16.mxu0 0
        %3081 = vmatmul.mubr.bf16.gmra.mrb[0].mxu0 %v2943
        %v3082 = vpop.f32.mrb[0].mxu0
        %v3083 = vadd.f32 0.0, %v3082
        %v3084 = vpop.f32.mrb[0].mxu0
        %v3085 = vpop.f32.mrb[0].mxu0
        %v3086 = vadd.f32 0.0, %v3085
        %v3087 = vpop.f32.mrb[0].mxu0
        %3088 = vmatprep.mubr.bf16.mxu0 0
        %3089 = vmatmul.mubr.bf16.gmra.mrb[0].mxu0 %v2946
        %v3090 = vpop.f32.mrb[0].mxu0
        %v3091 = vadd.f32 0.0, %v3090
        %v3092 = vpop.f32.mrb[0].mxu0
        %v3093 = vpop.f32.mrb[0].mxu0
        %v3094 = vadd.f32 0.0, %v3093
        %v3095 = vpop.f32.mrb[0].mxu0
        %3096 = vmatprep.mubr.bf16.mxu0 0
        %3097 = vmatmul.mubr.bf16.gmra.mrb[0].mxu0 %v2949
        %v3098 = vpop.f32.mrb[0].mxu0
        %v3099 = vadd.f32 0.0, %v3098
        %v3100 = vpop.f32.mrb[0].mxu0
        %v3101 = vpop.f32.mrb[0].mxu0
        %v3102 = vadd.f32 0.0, %v3101
        %v3103 = vpop.f32.mrb[0].mxu0
        %3104 = vmatprep.mubr.bf16.mxu0 0
        %3105 = vmatmul.mubr.bf16.gmra.mrb[0].mxu0 %v2952
        %v3106 = vpop.f32.mrb[0].mxu0
        %v3107 = vadd.f32 0.0, %v3106
        %v3108 = vpop.f32.mrb[0].mxu0
        %v3109 = vpop.f32.mrb[0].mxu0
        %v3110 = vadd.f32 0.0, %v3109
        %v3111 = vpop.f32.mrb[0].mxu0
        %3112 = vmatprep.mubr.bf16.mxu0 0
        %3113 = vmatmul.mubr.bf16.gmra.mrb[0].mxu0 %v2955
        %v3114 = vpop.f32.mrb[0].mxu0
        %v3115 = vadd.f32 0.0, %v3114
        %v3116 = vpop.f32.mrb[0].mxu0
        %v3117 = vpop.f32.mrb[0].mxu0
        %v3118 = vadd.f32 0.0, %v3117
        %v3119 = vpop.f32.mrb[0].mxu0
        %3120 = vdwg.mxu0
        %v3121 = vadd.f32 %v2724, %v2995
        %v3122 = vadd.f32 %v2725, %v2998
        %v3123 = vadd.f32 %v2726, %v3003
        %v3124 = vadd.f32 %v2727, %v3006
        %v3125 = vadd.f32 %v2728, %v3011
        %v3126 = vadd.f32 %v2729, %v3014
        %v3127 = vadd.f32 %v2730, %v3019
        %v3128 = vadd.f32 %v2731, %v3022
        %v3129 = vadd.f32 %v2732, %v3027
        %v3130 = vadd.f32 %v2733, %v3030
        %v3131 = vadd.f32 %v2734, %v3035
        %v3132 = vadd.f32 %v2735, %v3038
        %v3133 = vadd.f32 %v2736, %v3043
        %v3134 = vadd.f32 %v2737, %v3046
        %v3135 = vadd.f32 %v2738, %v3051
        %v3136 = vadd.f32 %v2739, %v3054
        %v3137 = vadd.f32 %v2740, %v3059
        %v3138 = vadd.f32 %v2741, %v3062
        %v3139 = vadd.f32 %v2742, %v3067
        %v3140 = vadd.f32 %v2743, %v3070
        %v3141 = vadd.f32 %v2744, %v3075
        %v3142 = vadd.f32 %v2745, %v3078
        %v3143 = vadd.f32 %v2746, %v3083
        %v3144 = vadd.f32 %v2747, %v3086
        %v3145 = vadd.f32 %v2748, %v3091
        %v3146 = vadd.f32 %v2749, %v3094
        %v3147 = vadd.f32 %v2750, %v3099
        %v3148 = vadd.f32 %v2751, %v3102
        %v3149 = vadd.f32 %v2752, %v3107
        %v3150 = vadd.f32 %v2753, %v3110
        %v3151 = vadd.f32 %v2754, %v3115
        %v3152 = vadd.f32 %v2755, %v3118
        %v3153 = vsel %vm732, %v149, 0
        %v3154 = vsel %vm733, %v150, 0
        %v3155 = vsel %vm734, %v151, 0
        %v3156 = vsel %vm735, %v152, 0
        %v3157 = vsel %vm736, %v153, 0
        %v3158 = vsel %vm737, %v154, 0
        %v3159 = vsel %vm738, %v155, 0
        %v3160 = vsel %vm739, %v156, 0
        %v3161 = vsel %vm740, %v157, 0
        %v3162 = vsel %vm741, %v158, 0
        %v3163 = vsel %vm742, %v159, 0
        %v3164 = vsel %vm743, %v160, 0
        %v3165 = vsel %vm744, %v161, 0
        %v3166 = vsel %vm745, %v162, 0
        %v3167 = vsel %vm746, %v163, 0
        %v3168 = vsel %vm747, %v164, 0
        %v3169 = vsel %vm748, %v165, 0
        %v3170 = vsel %vm749, %v166, 0
        %v3171 = vsel %vm750, %v167, 0
        %v3172 = vsel %vm751, %v168, 0
        %v3173 = vsel %vm752, %v169, 0
        %v3174 = vsel %vm753, %v170, 0
        %v3175 = vsel %vm754, %v171, 0
        %v3176 = vsel %vm755, %v172, 0
        %v3177 = vsel %vm756, %v173, 0
        %v3178 = vsel %vm757, %v174, 0
        %v3179 = vsel %vm758, %v175, 0
        %v3180 = vsel %vm759, %v176, 0
        %v3181 = vsel %vm760, %v177, 0
        %v3182 = vsel %vm761, %v178, 0
        %v3183 = vsel %vm762, %v179, 0
        %v3184 = vsel %vm763, %v180, 0
        %v3217 = vunpack.c.l.b16 %v3153
        %v3218 = vunpack.c.l.b16 %v3154
        %v3219 = vunpack.c.l.b16 %v3155
        %v3220 = vunpack.c.l.b16 %v3156
        %v3221 = vunpack.c.l.b16 %v3157
        %v3222 = vunpack.c.l.b16 %v3158
        %v3223 = vunpack.c.l.b16 %v3159
        %v3224 = vunpack.c.l.b16 %v3160
        %v3225 = vunpack.c.l.b16 %v3161
        %v3226 = vunpack.c.l.b16 %v3162
        %v3227 = vunpack.c.l.b16 %v3163
        %v3228 = vunpack.c.l.b16 %v3164
        %v3229 = vunpack.c.l.b16 %v3165
        %v3230 = vunpack.c.l.b16 %v3166
        %v3231 = vunpack.c.l.b16 %v3167
        %v3232 = vunpack.c.l.b16 %v3168
        %v3233 = vunpack.c.l.b16 %v3169
        %v3234 = vunpack.c.l.b16 %v3170
        %v3235 = vunpack.c.l.b16 %v3171
        %v3236 = vunpack.c.l.b16 %v3172
        %v3237 = vunpack.c.l.b16 %v3173
        %v3238 = vunpack.c.l.b16 %v3174
        %v3239 = vunpack.c.l.b16 %v3175
        %v3240 = vunpack.c.l.b16 %v3176
        %v3241 = vunpack.c.l.b16 %v3177
        %v3242 = vunpack.c.l.b16 %v3178
        %v3243 = vunpack.c.l.b16 %v3179
        %v3244 = vunpack.c.l.b16 %v3180
        %v3245 = vunpack.c.l.b16 %v3181
        %v3246 = vunpack.c.l.b16 %v3182
        %v3247 = vunpack.c.l.b16 %v3183
        %v3248 = vunpack.c.l.b16 %v3184
        %v3249 = vpack.c.b16 %v3218, %v3217
        %v3250 = vpack.c.b16 %v3220, %v3219
        %v3251 = vpack.c.b16 %v3222, %v3221
        %v3252 = vpack.c.b16 %v3224, %v3223
        %v3253 = vpack.c.b16 %v3226, %v3225
        %v3254 = vpack.c.b16 %v3228, %v3227
        %v3255 = vpack.c.b16 %v3230, %v3229
        %v3256 = vpack.c.b16 %v3232, %v3231
        %v3257 = vpack.c.b16 %v3234, %v3233
        %v3258 = vpack.c.b16 %v3236, %v3235
        %v3259 = vpack.c.b16 %v3238, %v3237
        %v3260 = vpack.c.b16 %v3240, %v3239
        %v3261 = vpack.c.b16 %v3242, %v3241
        %v3262 = vpack.c.b16 %v3244, %v3243
        %v3263 = vpack.c.b16 %v3246, %v3245
        %v3264 = vpack.c.b16 %v3248, %v3247
        %v3266 = vsel %vm1016, %v3249, 0
        %v3269 = vsel %vm1016, %v3250, 0
        %v3272 = vsel %vm1016, %v3251, 0
        %v3275 = vsel %vm1016, %v3252, 0
        %v3278 = vsel %vm1016, %v3253, 0
        %v3281 = vsel %vm1016, %v3254, 0
        %v3284 = vsel %vm1016, %v3255, 0
        %v3287 = vsel %vm1016, %v3256, 0
        %v3290 = vsel %vm1016, %v3257, 0
        %v3293 = vsel %vm1016, %v3258, 0
        %v3296 = vsel %vm1016, %v3259, 0
        %v3299 = vsel %vm1016, %v3260, 0
        %v3302 = vsel %vm1016, %v3261, 0
        %v3305 = vsel %vm1016, %v3262, 0
        %v3308 = vsel %vm1016, %v3263, 0
        %v3311 = vsel %vm1016, %v3264, 0
        %v3314 = vsel %vm1065, %v185, 0
        %3316 = vmatprep.subr.bf16.mxu0 0
        %3317 = vmatpush1.bf16.msra.mxu0 %v3314
        %3318 = vmatprep.subr.bf16.mxu0 0
        %3319 = vmatpush1.bf16.msra.mxu0 0
        %3320 = vmatprep.subr.bf16.mxu0 0
        %3321 = vmatpush1.bf16.msra.mxu0 0
        %3322 = vmatprep.subr.bf16.mxu0 0
        %3323 = vmatpush1.bf16.msra.mxu0 0
        %3324 = vmatprep.subr.bf16.mxu0 0
        %3325 = vmatpush1.bf16.msra.mxu0 0
        %3326 = vmatprep.subr.bf16.mxu0 0
        %3327 = vmatpush1.bf16.msra.mxu0 0
        %3328 = vmatprep.subr.bf16.mxu0 0
        %3329 = vmatpush1.bf16.msra.mxu0 0
        %3330 = vmatprep.subr.bf16.mxu0 0
        %3331 = vmatpush1.bf16.msra.mxu0 0
        %3332 = vmatprep.subr.bf16.mxu0 0
        %3333 = vmatpush1.bf16.msra.mxu0 0
        %3334 = vmatprep.subr.bf16.mxu0 0
        %3335 = vmatpush1.bf16.msra.mxu0 0
        %3336 = vmatprep.subr.bf16.mxu0 0
        %3337 = vmatpush1.bf16.msra.mxu0 0
        %3338 = vmatprep.subr.bf16.mxu0 0
        %3339 = vmatpush1.bf16.msra.mxu0 0
        %3340 = vmatprep.subr.bf16.mxu0 0
        %3341 = vmatpush1.bf16.msra.mxu0 0
        %3342 = vmatprep.subr.bf16.mxu0 0
        %3343 = vmatpush1.bf16.msra.mxu0 0
        %3344 = vmatprep.subr.bf16.mxu0 0
        %3345 = vmatpush1.bf16.msra.mxu0 0
        %3346 = vmatprep.subr.bf16.mxu0 0
        %3347 = vmatpush1.bf16.msra.mxu0 0
        %3348 = vmatprep.mubr.bf16.mxu0 0
        %3349 = vmatmul.mubr.bf16.gmra.mrb[0].mxu0 %v3266
        %v3350 = vpop.f32.mrb[0].mxu0
        %v3351 = vadd.f32 0.0, %v3350
        %v3352 = vpop.f32.mrb[0].mxu0
        %v3353 = vpop.f32.mrb[0].mxu0
        %v3354 = vadd.f32 0.0, %v3353
        %v3355 = vpop.f32.mrb[0].mxu0
        %3356 = vmatprep.mubr.bf16.mxu0 0
        %3357 = vmatmul.mubr.bf16.gmra.mrb[0].mxu0 %v3269
        %v3358 = vpop.f32.mrb[0].mxu0
        %v3359 = vadd.f32 0.0, %v3358
        %v3360 = vpop.f32.mrb[0].mxu0
        %v3361 = vpop.f32.mrb[0].mxu0
        %v3362 = vadd.f32 0.0, %v3361
        %v3363 = vpop.f32.mrb[0].mxu0
        %3364 = vmatprep.mubr.bf16.mxu0 0
        %3365 = vmatmul.mubr.bf16.gmra.mrb[0].mxu0 %v3272
        %v3366 = vpop.f32.mrb[0].mxu0
        %v3367 = vadd.f32 0.0, %v3366
        %v3368 = vpop.f32.mrb[0].mxu0
        %v3369 = vpop.f32.mrb[0].mxu0
        %v3370 = vadd.f32 0.0, %v3369
        %v3371 = vpop.f32.mrb[0].mxu0
        %3372 = vmatprep.mubr.bf16.mxu0 0
        %3373 = vmatmul.mubr.bf16.gmra.mrb[0].mxu0 %v3275
        %v3374 = vpop.f32.mrb[0].mxu0
        %v3375 = vadd.f32 0.0, %v3374
        %v3376 = vpop.f32.mrb[0].mxu0
        %v3377 = vpop.f32.mrb[0].mxu0
        %v3378 = vadd.f32 0.0, %v3377
        %v3379 = vpop.f32.mrb[0].mxu0
        %3380 = vmatprep.mubr.bf16.mxu0 0
        %3381 = vmatmul.mubr.bf16.gmra.mrb[0].mxu0 %v3278
        %v3382 = vpop.f32.mrb[0].mxu0
        %v3383 = vadd.f32 0.0, %v3382
        %v3384 = vpop.f32.mrb[0].mxu0
        %v3385 = vpop.f32.mrb[0].mxu0
        %v3386 = vadd.f32 0.0, %v3385
        %v3387 = vpop.f32.mrb[0].mxu0
        %3388 = vmatprep.mubr.bf16.mxu0 0
        %3389 = vmatmul.mubr.bf16.gmra.mrb[0].mxu0 %v3281
        %v3390 = vpop.f32.mrb[0].mxu0
        %v3391 = vadd.f32 0.0, %v3390
        %v3392 = vpop.f32.mrb[0].mxu0
        %v3393 = vpop.f32.mrb[0].mxu0
        %v3394 = vadd.f32 0.0, %v3393
        %v3395 = vpop.f32.mrb[0].mxu0
        %3396 = vmatprep.mubr.bf16.mxu0 0
        %3397 = vmatmul.mubr.bf16.gmra.mrb[0].mxu0 %v3284
        %v3398 = vpop.f32.mrb[0].mxu0
        %v3399 = vadd.f32 0.0, %v3398
        %v3400 = vpop.f32.mrb[0].mxu0
        %v3401 = vpop.f32.mrb[0].mxu0
        %v3402 = vadd.f32 0.0, %v3401
        %v3403 = vpop.f32.mrb[0].mxu0
        %3404 = vmatprep.mubr.bf16.mxu0 0
        %3405 = vmatmul.mubr.bf16.gmra.mrb[0].mxu0 %v3287
        %v3406 = vpop.f32.mrb[0].mxu0
        %v3407 = vadd.f32 0.0, %v3406
        %v3408 = vpop.f32.mrb[0].mxu0
        %v3409 = vpop.f32.mrb[0].mxu0
        %v3410 = vadd.f32 0.0, %v3409
        %v3411 = vpop.f32.mrb[0].mxu0
        %3412 = vmatprep.mubr.bf16.mxu0 0
        %3413 = vmatmul.mubr.bf16.gmra.mrb[0].mxu0 %v3290
        %v3414 = vpop.f32.mrb[0].mxu0
        %v3415 = vadd.f32 0.0, %v3414
        %v3416 = vpop.f32.mrb[0].mxu0
        %v3417 = vpop.f32.mrb[0].mxu0
        %v3418 = vadd.f32 0.0, %v3417
        %v3419 = vpop.f32.mrb[0].mxu0
        %3420 = vmatprep.mubr.bf16.mxu0 0
        %3421 = vmatmul.mubr.bf16.gmra.mrb[0].mxu0 %v3293
        %v3422 = vpop.f32.mrb[0].mxu0
        %v3423 = vadd.f32 0.0, %v3422
        %v3424 = vpop.f32.mrb[0].mxu0
        %v3425 = vpop.f32.mrb[0].mxu0
        %v3426 = vadd.f32 0.0, %v3425
        %v3427 = vpop.f32.mrb[0].mxu0
        %3428 = vmatprep.mubr.bf16.mxu0 0
        %3429 = vmatmul.mubr.bf16.gmra.mrb[0].mxu0 %v3296
        %v3430 = vpop.f32.mrb[0].mxu0
        %v3431 = vadd.f32 0.0, %v3430
        %v3432 = vpop.f32.mrb[0].mxu0
        %v3433 = vpop.f32.mrb[0].mxu0
        %v3434 = vadd.f32 0.0, %v3433
        %v3435 = vpop.f32.mrb[0].mxu0
        %3436 = vmatprep.mubr.bf16.mxu0 0
        %3437 = vmatmul.mubr.bf16.gmra.mrb[0].mxu0 %v3299
        %v3438 = vpop.f32.mrb[0].mxu0
        %v3439 = vadd.f32 0.0, %v3438
        %v3440 = vpop.f32.mrb[0].mxu0
        %v3441 = vpop.f32.mrb[0].mxu0
        %v3442 = vadd.f32 0.0, %v3441
        %v3443 = vpop.f32.mrb[0].mxu0
        %3444 = vmatprep.mubr.bf16.mxu0 0
        %3445 = vmatmul.mubr.bf16.gmra.mrb[0].mxu0 %v3302
        %v3446 = vpop.f32.mrb[0].mxu0
        %v3447 = vadd.f32 0.0, %v3446
        %v3448 = vpop.f32.mrb[0].mxu0
        %v3449 = vpop.f32.mrb[0].mxu0
        %v3450 = vadd.f32 0.0, %v3449
        %v3451 = vpop.f32.mrb[0].mxu0
        %3452 = vmatprep.mubr.bf16.mxu0 0
        %3453 = vmatmul.mubr.bf16.gmra.mrb[0].mxu0 %v3305
        %v3454 = vpop.f32.mrb[0].mxu0
        %v3455 = vadd.f32 0.0, %v3454
        %v3456 = vpop.f32.mrb[0].mxu0
        %v3457 = vpop.f32.mrb[0].mxu0
        %v3458 = vadd.f32 0.0, %v3457
        %v3459 = vpop.f32.mrb[0].mxu0
        %3460 = vmatprep.mubr.bf16.mxu0 0
        %3461 = vmatmul.mubr.bf16.gmra.mrb[0].mxu0 %v3308
        %v3462 = vpop.f32.mrb[0].mxu0
        %v3463 = vadd.f32 0.0, %v3462
        %v3464 = vpop.f32.mrb[0].mxu0
        %v3465 = vpop.f32.mrb[0].mxu0
        %v3466 = vadd.f32 0.0, %v3465
        %v3467 = vpop.f32.mrb[0].mxu0
        %3468 = vmatprep.mubr.bf16.mxu0 0
        %3469 = vmatmul.mubr.bf16.gmra.mrb[0].mxu0 %v3311
        %v3470 = vpop.f32.mrb[0].mxu0
        %v3471 = vadd.f32 0.0, %v3470
        %v3472 = vpop.f32.mrb[0].mxu0
        %v3473 = vpop.f32.mrb[0].mxu0
        %v3474 = vadd.f32 0.0, %v3473
        %v3475 = vpop.f32.mrb[0].mxu0
        %3476 = vdwg.mxu0
        %v3477 = vadd.f32 %v3121, %v3351
        %v3478 = vadd.f32 %v3122, %v3354
        %v3479 = vadd.f32 %v3123, %v3359
        %v3480 = vadd.f32 %v3124, %v3362
        %v3481 = vadd.f32 %v3125, %v3367
        %v3482 = vadd.f32 %v3126, %v3370
        %v3483 = vadd.f32 %v3127, %v3375
        %v3484 = vadd.f32 %v3128, %v3378
        %v3485 = vadd.f32 %v3129, %v3383
        %v3486 = vadd.f32 %v3130, %v3386
        %v3487 = vadd.f32 %v3131, %v3391
        %v3488 = vadd.f32 %v3132, %v3394
        %v3489 = vadd.f32 %v3133, %v3399
        %v3490 = vadd.f32 %v3134, %v3402
        %v3491 = vadd.f32 %v3135, %v3407
        %v3492 = vadd.f32 %v3136, %v3410
        %v3493 = vadd.f32 %v3137, %v3415
        %v3494 = vadd.f32 %v3138, %v3418
        %v3495 = vadd.f32 %v3139, %v3423
        %v3496 = vadd.f32 %v3140, %v3426
        %v3497 = vadd.f32 %v3141, %v3431
        %v3498 = vadd.f32 %v3142, %v3434
        %v3499 = vadd.f32 %v3143, %v3439
        %v3500 = vadd.f32 %v3144, %v3442
        %v3501 = vadd.f32 %v3145, %v3447
        %v3502 = vadd.f32 %v3146, %v3450
        %v3503 = vadd.f32 %v3147, %v3455
        %v3504 = vadd.f32 %v3148, %v3458
        %v3505 = vadd.f32 %v3149, %v3463
        %v3506 = vadd.f32 %v3150, %v3466
        %v3507 = vadd.f32 %v3151, %v3471
        %v3508 = vadd.f32 %v3152, %v3474
        %v3511 = vunpack.c.l.b16 %v180
        %v3512 = vunpack.c.l.b16 %v181
        %v3513 = vpack.c.b16 %v3511, %v2538
        %v3514 = vpack.c.b16 %v3512, %v3512
        %v3516 = vshll.u32 %v3513, 16
        %v3518 = vrot.slane %v3516, 1
        %v3519 = vsel %vm879, %v2548, %v3518
        %v3520 = vshrl.u32 %v3513, 16
        %v3522 = vor.u32 %v3520, %v3518
        %v3524 = vshll.u32 %v3514, 16
        %v3526 = vrot.slane %v3524, 1
        %v3527 = vsel %vm879, %v3522, %v3526
        %v3529 = vunpack.c.l.b16 %v185
        %v3530 = vpack.c.b16 %v3529, %v3529
        %v3531 = vrot.slane %v3530, 2
        %v3533 = vsel %vm1016, %v3519, 0
        %v3536 = vsel %vm1016, %v3527, 0
        %v3539 = vsel %vm1065, %v3531, 0
        %3541 = vmatprep.subr.bf16.mxu0 0
        %3542 = vmatpush1.bf16.msra.mxu0 %v3539
        %3543 = vmatprep.subr.bf16.mxu0 0
        %3544 = vmatpush1.bf16.msra.mxu0 0
        %3545 = vmatprep.subr.bf16.mxu0 0
        %3546 = vmatpush1.bf16.msra.mxu0 0
        %3547 = vmatprep.subr.bf16.mxu0 0
        %3548 = vmatpush1.bf16.msra.mxu0 0
        %3549 = vmatprep.subr.bf16.mxu0 0
        %3550 = vmatpush1.bf16.msra.mxu0 0
        %3551 = vmatprep.subr.bf16.mxu0 0
        %3552 = vmatpush1.bf16.msra.mxu0 0
        %3553 = vmatprep.subr.bf16.mxu0 0
        %3554 = vmatpush1.bf16.msra.mxu0 0
        %3555 = vmatprep.subr.bf16.mxu0 0
        %3556 = vmatpush1.bf16.msra.mxu0 0
        %3557 = vmatprep.subr.bf16.mxu0 0
        %3558 = vmatpush1.bf16.msra.mxu0 0
        %3559 = vmatprep.subr.bf16.mxu0 0
        %3560 = vmatpush1.bf16.msra.mxu0 0
        %3561 = vmatprep.subr.bf16.mxu0 0
        %3562 = vmatpush1.bf16.msra.mxu0 0
        %3563 = vmatprep.subr.bf16.mxu0 0
        %3564 = vmatpush1.bf16.msra.mxu0 0
        %3565 = vmatprep.subr.bf16.mxu0 0
        %3566 = vmatpush1.bf16.msra.mxu0 0
        %3567 = vmatprep.subr.bf16.mxu0 0
        %3568 = vmatpush1.bf16.msra.mxu0 0
        %3569 = vmatprep.subr.bf16.mxu0 0
        %3570 = vmatpush1.bf16.msra.mxu0 0
        %3571 = vmatprep.subr.bf16.mxu0 0
        %3572 = vmatpush1.bf16.msra.mxu0 0
        %3573 = vmatprep.mubr.bf16.mxu0 0
        %3574 = vmatmul.mubr.bf16.gmra.mrb[0].mxu0 %v1024
        %v3575 = vpop.f32.mrb[0].mxu0
        %v3576 = vadd.f32 0.0, %v3575
        %v3577 = vpop.f32.mrb[0].mxu0
        %v3578 = vpop.f32.mrb[0].mxu0
        %v3579 = vadd.f32 0.0, %v3578
        %v3580 = vpop.f32.mrb[0].mxu0
        %3581 = vmatprep.mubr.bf16.mxu0 0
        %3582 = vmatmul.mubr.bf16.gmra.mrb[0].mxu0 %v1027
        %v3583 = vpop.f32.mrb[0].mxu0
        %v3584 = vadd.f32 0.0, %v3583
        %v3585 = vpop.f32.mrb[0].mxu0
        %v3586 = vpop.f32.mrb[0].mxu0
        %v3587 = vadd.f32 0.0, %v3586
        %v3588 = vpop.f32.mrb[0].mxu0
        %3589 = vmatprep.mubr.bf16.mxu0 0
        %3590 = vmatmul.mubr.bf16.gmra.mrb[0].mxu0 %v1030
        %v3591 = vpop.f32.mrb[0].mxu0
        %v3592 = vadd.f32 0.0, %v3591
        %v3593 = vpop.f32.mrb[0].mxu0
        %v3594 = vpop.f32.mrb[0].mxu0
        %v3595 = vadd.f32 0.0, %v3594
        %v3596 = vpop.f32.mrb[0].mxu0
        %3597 = vmatprep.mubr.bf16.mxu0 0
        %3598 = vmatmul.mubr.bf16.gmra.mrb[0].mxu0 %v1033
        %v3599 = vpop.f32.mrb[0].mxu0
        %v3600 = vadd.f32 0.0, %v3599
        %v3601 = vpop.f32.mrb[0].mxu0
        %v3602 = vpop.f32.mrb[0].mxu0
        %v3603 = vadd.f32 0.0, %v3602
        %v3604 = vpop.f32.mrb[0].mxu0
        %3605 = vmatprep.mubr.bf16.mxu0 0
        %3606 = vmatmul.mubr.bf16.gmra.mrb[0].mxu0 %v1036
        %v3607 = vpop.f32.mrb[0].mxu0
        %v3608 = vadd.f32 0.0, %v3607
        %v3609 = vpop.f32.mrb[0].mxu0
        %v3610 = vpop.f32.mrb[0].mxu0
        %v3611 = vadd.f32 0.0, %v3610
        %v3612 = vpop.f32.mrb[0].mxu0
        %3613 = vmatprep.mubr.bf16.mxu0 0
        %3614 = vmatmul.mubr.bf16.gmra.mrb[0].mxu0 %v1039
        %v3615 = vpop.f32.mrb[0].mxu0
        %v3616 = vadd.f32 0.0, %v3615
        %v3617 = vpop.f32.mrb[0].mxu0
        %v3618 = vpop.f32.mrb[0].mxu0
        %v3619 = vadd.f32 0.0, %v3618
        %v3620 = vpop.f32.mrb[0].mxu0
        %3621 = vmatprep.mubr.bf16.mxu0 0
        %3622 = vmatmul.mubr.bf16.gmra.mrb[0].mxu0 %v1042
        %v3623 = vpop.f32.mrb[0].mxu0
        %v3624 = vadd.f32 0.0, %v3623
        %v3625 = vpop.f32.mrb[0].mxu0
        %v3626 = vpop.f32.mrb[0].mxu0
        %v3627 = vadd.f32 0.0, %v3626
        %v3628 = vpop.f32.mrb[0].mxu0
        %3629 = vmatprep.mubr.bf16.mxu0 0
        %3630 = vmatmul.mubr.bf16.gmra.mrb[0].mxu0 %v1045
        %v3631 = vpop.f32.mrb[0].mxu0
        %v3632 = vadd.f32 0.0, %v3631
        %v3633 = vpop.f32.mrb[0].mxu0
        %v3634 = vpop.f32.mrb[0].mxu0
        %v3635 = vadd.f32 0.0, %v3634
        %v3636 = vpop.f32.mrb[0].mxu0
        %3637 = vmatprep.mubr.bf16.mxu0 0
        %3638 = vmatmul.mubr.bf16.gmra.mrb[0].mxu0 %v1048
        %v3639 = vpop.f32.mrb[0].mxu0
        %v3640 = vadd.f32 0.0, %v3639
        %v3641 = vpop.f32.mrb[0].mxu0
        %v3642 = vpop.f32.mrb[0].mxu0
        %v3643 = vadd.f32 0.0, %v3642
        %v3644 = vpop.f32.mrb[0].mxu0
        %3645 = vmatprep.mubr.bf16.mxu0 0
        %3646 = vmatmul.mubr.bf16.gmra.mrb[0].mxu0 %v1051
        %v3647 = vpop.f32.mrb[0].mxu0
        %v3648 = vadd.f32 0.0, %v3647
        %v3649 = vpop.f32.mrb[0].mxu0
        %v3650 = vpop.f32.mrb[0].mxu0
        %v3651 = vadd.f32 0.0, %v3650
        %v3652 = vpop.f32.mrb[0].mxu0
        %3653 = vmatprep.mubr.bf16.mxu0 0
        %3654 = vmatmul.mubr.bf16.gmra.mrb[0].mxu0 %v1054
        %v3655 = vpop.f32.mrb[0].mxu0
        %v3656 = vadd.f32 0.0, %v3655
        %v3657 = vpop.f32.mrb[0].mxu0
        %v3658 = vpop.f32.mrb[0].mxu0
        %v3659 = vadd.f32 0.0, %v3658
        %v3660 = vpop.f32.mrb[0].mxu0
        %3661 = vmatprep.mubr.bf16.mxu0 0
        %3662 = vmatmul.mubr.bf16.gmra.mrb[0].mxu0 %v1057
        %v3663 = vpop.f32.mrb[0].mxu0
        %v3664 = vadd.f32 0.0, %v3663
        %v3665 = vpop.f32.mrb[0].mxu0
        %v3666 = vpop.f32.mrb[0].mxu0
        %v3667 = vadd.f32 0.0, %v3666
        %v3668 = vpop.f32.mrb[0].mxu0
        %3669 = vmatprep.mubr.bf16.mxu0 0
        %3670 = vmatmul.mubr.bf16.gmra.mrb[0].mxu0 %v1060
        %v3671 = vpop.f32.mrb[0].mxu0
        %v3672 = vadd.f32 0.0, %v3671
        %v3673 = vpop.f32.mrb[0].mxu0
        %v3674 = vpop.f32.mrb[0].mxu0
        %v3675 = vadd.f32 0.0, %v3674
        %v3676 = vpop.f32.mrb[0].mxu0
        %3677 = vmatprep.mubr.bf16.mxu0 0
        %3678 = vmatmul.mubr.bf16.gmra.mrb[0].mxu0 %v2555
        %v3679 = vpop.f32.mrb[0].mxu0
        %v3680 = vadd.f32 0.0, %v3679
        %v3681 = vpop.f32.mrb[0].mxu0
        %v3682 = vpop.f32.mrb[0].mxu0
        %v3683 = vadd.f32 0.0, %v3682
        %v3684 = vpop.f32.mrb[0].mxu0
        %3685 = vmatprep.mubr.bf16.mxu0 0
        %3686 = vmatmul.mubr.bf16.gmra.mrb[0].mxu0 %v3533
        %v3687 = vpop.f32.mrb[0].mxu0
        %v3688 = vadd.f32 0.0, %v3687
        %v3689 = vpop.f32.mrb[0].mxu0
        %v3690 = vpop.f32.mrb[0].mxu0
        %v3691 = vadd.f32 0.0, %v3690
        %v3692 = vpop.f32.mrb[0].mxu0
        %3693 = vmatprep.mubr.bf16.mxu0 0
        %3694 = vmatmul.mubr.bf16.gmra.mrb[0].mxu0 %v3536
        %v3695 = vpop.f32.mrb[0].mxu0
        %v3696 = vadd.f32 0.0, %v3695
        %v3697 = vpop.f32.mrb[0].mxu0
        %v3698 = vpop.f32.mrb[0].mxu0
        %v3699 = vadd.f32 0.0, %v3698
        %v3700 = vpop.f32.mrb[0].mxu0
        %3701 = vdwg.mxu0
        %v3702 = vadd.f32 %v3477, %v3576
        %v3703 = vadd.f32 %v3478, %v3579
        %v3704 = vadd.f32 %v3479, %v3584
        %v3705 = vadd.f32 %v3480, %v3587
        %v3706 = vadd.f32 %v3481, %v3592
        %v3707 = vadd.f32 %v3482, %v3595
        %v3708 = vadd.f32 %v3483, %v3600
        %v3709 = vadd.f32 %v3484, %v3603
        %v3710 = vadd.f32 %v3485, %v3608
        %v3711 = vadd.f32 %v3486, %v3611
        %v3712 = vadd.f32 %v3487, %v3616
        %v3713 = vadd.f32 %v3488, %v3619
        %v3714 = vadd.f32 %v3489, %v3624
        %v3715 = vadd.f32 %v3490, %v3627
        %v3716 = vadd.f32 %v3491, %v3632
        %v3717 = vadd.f32 %v3492, %v3635
        %v3718 = vadd.f32 %v3493, %v3640
        %v3719 = vadd.f32 %v3494, %v3643
        %v3720 = vadd.f32 %v3495, %v3648
        %v3721 = vadd.f32 %v3496, %v3651
        %v3722 = vadd.f32 %v3497, %v3656
        %v3723 = vadd.f32 %v3498, %v3659
        %v3724 = vadd.f32 %v3499, %v3664
        %v3725 = vadd.f32 %v3500, %v3667
        %v3726 = vadd.f32 %v3501, %v3672
        %v3727 = vadd.f32 %v3502, %v3675
        %v3728 = vadd.f32 %v3503, %v3680
        %v3729 = vadd.f32 %v3504, %v3683
        %v3730 = vadd.f32 %v3505, %v3688
        %v3731 = vadd.f32 %v3506, %v3691
        %v3732 = vadd.f32 %v3507, %v3696
        %v3733 = vadd.f32 %v3508, %v3699
        %v3734 = vsel %vm1748, %v149, 0
        %v3735 = vsel %vm1749, %v150, 0
        %v3736 = vsel %vm1750, %v151, 0
        %v3737 = vsel %vm1751, %v152, 0
        %v3738 = vsel %vm1752, %v153, 0
        %v3739 = vsel %vm1753, %v154, 0
        %v3740 = vsel %vm1754, %v155, 0
        %v3741 = vsel %vm1755, %v156, 0
        %v3742 = vsel %vm1756, %v157, 0
        %v3743 = vsel %vm1757, %v158, 0
        %v3744 = vsel %vm1758, %v159, 0
        %v3745 = vsel %vm1759, %v160, 0
        %v3746 = vsel %vm1760, %v161, 0
        %v3747 = vsel %vm1761, %v162, 0
        %v3748 = vsel %vm1762, %v163, 0
        %v3749 = vsel %vm1763, %v164, 0
        %v3750 = vsel %vm1764, %v165, 0
        %v3751 = vsel %vm1765, %v166, 0
        %v3752 = vsel %vm1766, %v167, 0
        %v3753 = vsel %vm1767, %v168, 0
        %v3754 = vsel %vm1768, %v169, 0
        %v3755 = vsel %vm1769, %v170, 0
        %v3756 = vsel %vm1770, %v171, 0
        %v3757 = vsel %vm1771, %v172, 0
        %v3758 = vsel %vm1772, %v173, 0
        %v3759 = vsel %vm1773, %v174, 0
        %v3760 = vsel %vm1774, %v175, 0
        %v3761 = vsel %vm1775, %v176, 0
        %v3762 = vsel %vm1776, %v177, 0
        %v3763 = vsel %vm1777, %v178, 0
        %v3764 = vsel %vm1778, %v179, 0
        %v3765 = vsel %vm1779, %v180, 0
        %v3766 = vsel %vm1780, %v181, 0
        %v3800 = vunpack.c.l.b16 %v3734
        %v3801 = vunpack.c.l.b16 %v3735
        %v3802 = vunpack.c.l.b16 %v3736
        %v3803 = vunpack.c.l.b16 %v3737
        %v3804 = vunpack.c.l.b16 %v3738
        %v3805 = vunpack.c.l.b16 %v3739
        %v3806 = vunpack.c.l.b16 %v3740
        %v3807 = vunpack.c.l.b16 %v3741
        %v3808 = vunpack.c.l.b16 %v3742
        %v3809 = vunpack.c.l.b16 %v3743
        %v3810 = vunpack.c.l.b16 %v3744
        %v3811 = vunpack.c.l.b16 %v3745
        %v3812 = vunpack.c.l.b16 %v3746
        %v3813 = vunpack.c.l.b16 %v3747
        %v3814 = vunpack.c.l.b16 %v3748
        %v3815 = vunpack.c.l.b16 %v3749
        %v3816 = vunpack.c.l.b16 %v3750
        %v3817 = vunpack.c.l.b16 %v3751
        %v3818 = vunpack.c.l.b16 %v3752
        %v3819 = vunpack.c.l.b16 %v3753
        %v3820 = vunpack.c.l.b16 %v3754
        %v3821 = vunpack.c.l.b16 %v3755
        %v3822 = vunpack.c.l.b16 %v3756
        %v3823 = vunpack.c.l.b16 %v3757
        %v3824 = vunpack.c.l.b16 %v3758
        %v3825 = vunpack.c.l.b16 %v3759
        %v3826 = vunpack.c.l.b16 %v3760
        %v3827 = vunpack.c.l.b16 %v3761
        %v3828 = vunpack.c.l.b16 %v3762
        %v3829 = vunpack.c.l.b16 %v3763
        %v3830 = vunpack.c.l.b16 %v3764
        %v3831 = vunpack.c.l.b16 %v3765
        %v3832 = vunpack.c.l.b16 %v3766
        %v3833 = vpack.c.b16 %v3801, %v3800
        %v3834 = vpack.c.b16 %v3803, %v3802
        %v3835 = vpack.c.b16 %v3805, %v3804
        %v3836 = vpack.c.b16 %v3807, %v3806
        %v3837 = vpack.c.b16 %v3809, %v3808
        %v3838 = vpack.c.b16 %v3811, %v3810
        %v3839 = vpack.c.b16 %v3813, %v3812
        %v3840 = vpack.c.b16 %v3815, %v3814
        %v3841 = vpack.c.b16 %v3817, %v3816
        %v3842 = vpack.c.b16 %v3819, %v3818
        %v3843 = vpack.c.b16 %v3821, %v3820
        %v3844 = vpack.c.b16 %v3823, %v3822
        %v3845 = vpack.c.b16 %v3825, %v3824
        %v3846 = vpack.c.b16 %v3827, %v3826
        %v3847 = vpack.c.b16 %v3829, %v3828
        %v3848 = vpack.c.b16 %v3831, %v3830
        %v3849 = vpack.c.b16 %v3832, %v3832
        %v3850 = vrot.slane %v3833, 1
        %v3851 = vrot.slane %v3834, 1
        %v3852 = vsel %vm1897, %v3850, %v3851
        %v3853 = vrot.slane %v3835, 1
        %v3854 = vsel %vm1897, %v3851, %v3853
        %v3855 = vrot.slane %v3836, 1
        %v3856 = vsel %vm1897, %v3853, %v3855
        %v3857 = vrot.slane %v3837, 1
        %v3858 = vsel %vm1897, %v3855, %v3857
        %v3859 = vrot.slane %v3838, 1
        %v3860 = vsel %vm1897, %v3857, %v3859
        %v3861 = vrot.slane %v3839, 1
        %v3862 = vsel %vm1897, %v3859, %v3861
        %v3863 = vrot.slane %v3840, 1
        %v3864 = vsel %vm1897, %v3861, %v3863
        %v3865 = vrot.slane %v3841, 1
        %v3866 = vsel %vm1897, %v3863, %v3865
        %v3867 = vrot.slane %v3842, 1
        %v3868 = vsel %vm1897, %v3865, %v3867
        %v3869 = vrot.slane %v3843, 1
        %v3870 = vsel %vm1897, %v3867, %v3869
        %v3871 = vrot.slane %v3844, 1
        %v3872 = vsel %vm1897, %v3869, %v3871
        %v3873 = vrot.slane %v3845, 1
        %v3874 = vsel %vm1897, %v3871, %v3873
        %v3875 = vrot.slane %v3846, 1
        %v3876 = vsel %vm1897, %v3873, %v3875
        %v3877 = vrot.slane %v3847, 1
        %v3878 = vsel %vm1897, %v3875, %v3877
        %v3879 = vrot.slane %v3848, 1
        %v3880 = vsel %vm1897, %v3877, %v3879
        %v3881 = vrot.slane %v3849, 1
        %v3882 = vsel %vm1897, %v3879, %v3881
        %v3884 = vsel %vm1016, %v3852, 0
        %v3887 = vsel %vm1016, %v3854, 0
        %v3890 = vsel %vm1016, %v3856, 0
        %v3893 = vsel %vm1016, %v3858, 0
        %v3896 = vsel %vm1016, %v3860, 0
        %v3899 = vsel %vm1016, %v3862, 0
        %v3902 = vsel %vm1016, %v3864, 0
        %v3905 = vsel %vm1016, %v3866, 0
        %v3908 = vsel %vm1016, %v3868, 0
        %v3911 = vsel %vm1016, %v3870, 0
        %v3914 = vsel %vm1016, %v3872, 0
        %v3917 = vsel %vm1016, %v3874, 0
        %v3920 = vsel %vm1016, %v3876, 0
        %v3923 = vsel %vm1016, %v3878, 0
        %v3926 = vsel %vm1016, %v3880, 0
        %v3929 = vsel %vm1016, %v3882, 0
        %v3932 = vsel %vm1065, %v186, 0
        %3934 = vmatprep.subr.bf16.mxu0 0
        %3935 = vmatpush1.bf16.msra.mxu0 %v3932
        %3936 = vmatprep.subr.bf16.mxu0 0
        %3937 = vmatpush1.bf16.msra.mxu0 0
        %3938 = vmatprep.subr.bf16.mxu0 0
        %3939 = vmatpush1.bf16.msra.mxu0 0
        %3940 = vmatprep.subr.bf16.mxu0 0
        %3941 = vmatpush1.bf16.msra.mxu0 0
        %3942 = vmatprep.subr.bf16.mxu0 0
        %3943 = vmatpush1.bf16.msra.mxu0 0
        %3944 = vmatprep.subr.bf16.mxu0 0
        %3945 = vmatpush1.bf16.msra.mxu0 0
        %3946 = vmatprep.subr.bf16.mxu0 0
        %3947 = vmatpush1.bf16.msra.mxu0 0
        %3948 = vmatprep.subr.bf16.mxu0 0
        %3949 = vmatpush1.bf16.msra.mxu0 0
        %3950 = vmatprep.subr.bf16.mxu0 0
        %3951 = vmatpush1.bf16.msra.mxu0 0
        %3952 = vmatprep.subr.bf16.mxu0 0
        %3953 = vmatpush1.bf16.msra.mxu0 0
        %3954 = vmatprep.subr.bf16.mxu0 0
        %3955 = vmatpush1.bf16.msra.mxu0 0
        %3956 = vmatprep.subr.bf16.mxu0 0
        %3957 = vmatpush1.bf16.msra.mxu0 0
        %3958 = vmatprep.subr.bf16.mxu0 0
        %3959 = vmatpush1.bf16.msra.mxu0 0
        %3960 = vmatprep.subr.bf16.mxu0 0
        %3961 = vmatpush1.bf16.msra.mxu0 0
        %3962 = vmatprep.subr.bf16.mxu0 0
        %3963 = vmatpush1.bf16.msra.mxu0 0
        %3964 = vmatprep.subr.bf16.mxu0 0
        %3965 = vmatpush1.bf16.msra.mxu0 0
        %3966 = vmatprep.mubr.bf16.mxu0 0
        %3967 = vmatmul.mubr.bf16.gmra.mrb[0].mxu0 %v3884
        %v3968 = vpop.f32.mrb[0].mxu0
        %v3969 = vadd.f32 0.0, %v3968
        %v3970 = vpop.f32.mrb[0].mxu0
        %v3971 = vpop.f32.mrb[0].mxu0
        %v3972 = vadd.f32 0.0, %v3971
        %v3973 = vpop.f32.mrb[0].mxu0
        %3974 = vmatprep.mubr.bf16.mxu0 0
        %3975 = vmatmul.mubr.bf16.gmra.mrb[0].mxu0 %v3887
        %v3976 = vpop.f32.mrb[0].mxu0
        %v3977 = vadd.f32 0.0, %v3976
        %v3978 = vpop.f32.mrb[0].mxu0
        %v3979 = vpop.f32.mrb[0].mxu0
        %v3980 = vadd.f32 0.0, %v3979
        %v3981 = vpop.f32.mrb[0].mxu0
        %3982 = vmatprep.mubr.bf16.mxu0 0
        %3983 = vmatmul.mubr.bf16.gmra.mrb[0].mxu0 %v3890
        %v3984 = vpop.f32.mrb[0].mxu0
        %v3985 = vadd.f32 0.0, %v3984
        %v3986 = vpop.f32.mrb[0].mxu0
        %v3987 = vpop.f32.mrb[0].mxu0
        %v3988 = vadd.f32 0.0, %v3987
        %v3989 = vpop.f32.mrb[0].mxu0
        %3990 = vmatprep.mubr.bf16.mxu0 0
        %3991 = vmatmul.mubr.bf16.gmra.mrb[0].mxu0 %v3893
        %v3992 = vpop.f32.mrb[0].mxu0
        %v3993 = vadd.f32 0.0, %v3992
        %v3994 = vpop.f32.mrb[0].mxu0
        %v3995 = vpop.f32.mrb[0].mxu0
        %v3996 = vadd.f32 0.0, %v3995
        %v3997 = vpop.f32.mrb[0].mxu0
        %3998 = vmatprep.mubr.bf16.mxu0 0
        %3999 = vmatmul.mubr.bf16.gmra.mrb[0].mxu0 %v3896
        %v4000 = vpop.f32.mrb[0].mxu0
        %v4001 = vadd.f32 0.0, %v4000
        %v4002 = vpop.f32.mrb[0].mxu0
        %v4003 = vpop.f32.mrb[0].mxu0
        %v4004 = vadd.f32 0.0, %v4003
        %v4005 = vpop.f32.mrb[0].mxu0
        %4006 = vmatprep.mubr.bf16.mxu0 0
        %4007 = vmatmul.mubr.bf16.gmra.mrb[0].mxu0 %v3899
        %v4008 = vpop.f32.mrb[0].mxu0
        %v4009 = vadd.f32 0.0, %v4008
        %v4010 = vpop.f32.mrb[0].mxu0
        %v4011 = vpop.f32.mrb[0].mxu0
        %v4012 = vadd.f32 0.0, %v4011
        %v4013 = vpop.f32.mrb[0].mxu0
        %4014 = vmatprep.mubr.bf16.mxu0 0
        %4015 = vmatmul.mubr.bf16.gmra.mrb[0].mxu0 %v3902
        %v4016 = vpop.f32.mrb[0].mxu0
        %v4017 = vadd.f32 0.0, %v4016
        %v4018 = vpop.f32.mrb[0].mxu0
        %v4019 = vpop.f32.mrb[0].mxu0
        %v4020 = vadd.f32 0.0, %v4019
        %v4021 = vpop.f32.mrb[0].mxu0
        %4022 = vmatprep.mubr.bf16.mxu0 0
        %4023 = vmatmul.mubr.bf16.gmra.mrb[0].mxu0 %v3905
        %v4024 = vpop.f32.mrb[0].mxu0
        %v4025 = vadd.f32 0.0, %v4024
        %v4026 = vpop.f32.mrb[0].mxu0
        %v4027 = vpop.f32.mrb[0].mxu0
        %v4028 = vadd.f32 0.0, %v4027
        %v4029 = vpop.f32.mrb[0].mxu0
        %4030 = vmatprep.mubr.bf16.mxu0 0
        %4031 = vmatmul.mubr.bf16.gmra.mrb[0].mxu0 %v3908
        %v4032 = vpop.f32.mrb[0].mxu0
        %v4033 = vadd.f32 0.0, %v4032
        %v4034 = vpop.f32.mrb[0].mxu0
        %v4035 = vpop.f32.mrb[0].mxu0
        %v4036 = vadd.f32 0.0, %v4035
        %v4037 = vpop.f32.mrb[0].mxu0
        %4038 = vmatprep.mubr.bf16.mxu0 0
        %4039 = vmatmul.mubr.bf16.gmra.mrb[0].mxu0 %v3911
        %v4040 = vpop.f32.mrb[0].mxu0
        %v4041 = vadd.f32 0.0, %v4040
        %v4042 = vpop.f32.mrb[0].mxu0
        %v4043 = vpop.f32.mrb[0].mxu0
        %v4044 = vadd.f32 0.0, %v4043
        %v4045 = vpop.f32.mrb[0].mxu0
        %4046 = vmatprep.mubr.bf16.mxu0 0
        %4047 = vmatmul.mubr.bf16.gmra.mrb[0].mxu0 %v3914
        %v4048 = vpop.f32.mrb[0].mxu0
        %v4049 = vadd.f32 0.0, %v4048
        %v4050 = vpop.f32.mrb[0].mxu0
        %v4051 = vpop.f32.mrb[0].mxu0
        %v4052 = vadd.f32 0.0, %v4051
        %v4053 = vpop.f32.mrb[0].mxu0
        %4054 = vmatprep.mubr.bf16.mxu0 0
        %4055 = vmatmul.mubr.bf16.gmra.mrb[0].mxu0 %v3917
        %v4056 = vpop.f32.mrb[0].mxu0
        %v4057 = vadd.f32 0.0, %v4056
        %v4058 = vpop.f32.mrb[0].mxu0
        %v4059 = vpop.f32.mrb[0].mxu0
        %v4060 = vadd.f32 0.0, %v4059
        %v4061 = vpop.f32.mrb[0].mxu0
        %4062 = vmatprep.mubr.bf16.mxu0 0
        %4063 = vmatmul.mubr.bf16.gmra.mrb[0].mxu0 %v3920
        %v4064 = vpop.f32.mrb[0].mxu0
        %v4065 = vadd.f32 0.0, %v4064
        %v4066 = vpop.f32.mrb[0].mxu0
        %v4067 = vpop.f32.mrb[0].mxu0
        %v4068 = vadd.f32 0.0, %v4067
        %v4069 = vpop.f32.mrb[0].mxu0
        %4070 = vmatprep.mubr.bf16.mxu0 0
        %4071 = vmatmul.mubr.bf16.gmra.mrb[0].mxu0 %v3923
        %v4072 = vpop.f32.mrb[0].mxu0
        %v4073 = vadd.f32 0.0, %v4072
        %v4074 = vpop.f32.mrb[0].mxu0
        %v4075 = vpop.f32.mrb[0].mxu0
        %v4076 = vadd.f32 0.0, %v4075
        %v4077 = vpop.f32.mrb[0].mxu0
        %4078 = vmatprep.mubr.bf16.mxu0 0
        %4079 = vmatmul.mubr.bf16.gmra.mrb[0].mxu0 %v3926
        %v4080 = vpop.f32.mrb[0].mxu0
        %v4081 = vadd.f32 0.0, %v4080
        %v4082 = vpop.f32.mrb[0].mxu0
        %v4083 = vpop.f32.mrb[0].mxu0
        %v4084 = vadd.f32 0.0, %v4083
        %v4085 = vpop.f32.mrb[0].mxu0
        %4086 = vmatprep.mubr.bf16.mxu0 0
        %4087 = vmatmul.mubr.bf16.gmra.mrb[0].mxu0 %v3929
        %v4088 = vpop.f32.mrb[0].mxu0
        %v4089 = vadd.f32 0.0, %v4088
        %v4090 = vpop.f32.mrb[0].mxu0
        %v4091 = vpop.f32.mrb[0].mxu0
        %v4092 = vadd.f32 0.0, %v4091
        %v4093 = vpop.f32.mrb[0].mxu0
        %4094 = vdwg.mxu0
        %v4095 = vadd.f32 %v3702, %v3969
        %v4096 = vadd.f32 %v3703, %v3972
        %v4097 = vadd.f32 %v3704, %v3977
        %v4098 = vadd.f32 %v3705, %v3980
        %v4099 = vadd.f32 %v3706, %v3985
        %v4100 = vadd.f32 %v3707, %v3988
        %v4101 = vadd.f32 %v3708, %v3993
        %v4102 = vadd.f32 %v3709, %v3996
        %v4103 = vadd.f32 %v3710, %v4001
        %v4104 = vadd.f32 %v3711, %v4004
        %v4105 = vadd.f32 %v3712, %v4009
        %v4106 = vadd.f32 %v3713, %v4012
        %v4107 = vadd.f32 %v3714, %v4017
        %v4108 = vadd.f32 %v3715, %v4020
        %v4109 = vadd.f32 %v3716, %v4025
        %v4110 = vadd.f32 %v3717, %v4028
        %v4111 = vadd.f32 %v3718, %v4033
        %v4112 = vadd.f32 %v3719, %v4036
        %v4113 = vadd.f32 %v3720, %v4041
        %v4114 = vadd.f32 %v3721, %v4044
        %v4115 = vadd.f32 %v3722, %v4049
        %v4116 = vadd.f32 %v3723, %v4052
        %v4117 = vadd.f32 %v3724, %v4057
        %v4118 = vadd.f32 %v3725, %v4060
        %v4119 = vadd.f32 %v3726, %v4065
        %v4120 = vadd.f32 %v3727, %v4068
        %v4121 = vadd.f32 %v3728, %v4073
        %v4122 = vadd.f32 %v3729, %v4076
        %v4123 = vadd.f32 %v3730, %v4081
        %v4124 = vadd.f32 %v3731, %v4084
        %v4125 = vadd.f32 %v3732, %v4089
        %v4126 = vadd.f32 %v3733, %v4092
        %v4127 = vadd.f32 %v4095, %v4096
        %v4128 = vadd.f32 %v4127, %v4097
        %v4129 = vadd.f32 %v4128, %v4098
        %v4130 = vadd.f32 %v4129, %v4099
        %v4131 = vadd.f32 %v4130, %v4100
        %v4132 = vadd.f32 %v4131, %v4101
        %v4133 = vadd.f32 %v4132, %v4102
        %v4134 = vadd.f32 %v4133, %v4103
        %v4135 = vadd.f32 %v4134, %v4104
        %v4136 = vadd.f32 %v4135, %v4105
        %v4137 = vadd.f32 %v4136, %v4106
        %v4138 = vadd.f32 %v4137, %v4107
        %v4139 = vadd.f32 %v4138, %v4108
        %v4140 = vadd.f32 %v4139, %v4109
        %v4141 = vadd.f32 %v4140, %v4110
        %v4142 = vadd.f32 %v4141, %v4111
        %v4143 = vadd.f32 %v4142, %v4112
        %v4144 = vadd.f32 %v4143, %v4113
        %v4145 = vadd.f32 %v4144, %v4114
        %v4146 = vadd.f32 %v4145, %v4115
        %v4147 = vadd.f32 %v4146, %v4116
        %v4148 = vadd.f32 %v4147, %v4117
        %v4149 = vadd.f32 %v4148, %v4118
        %v4150 = vadd.f32 %v4149, %v4119
        %v4151 = vadd.f32 %v4150, %v4120
        %v4152 = vadd.f32 %v4151, %v4121
        %v4153 = vadd.f32 %v4152, %v4122
        %v4154 = vadd.f32 %v4153, %v4123
        %v4155 = vadd.f32 %v4154, %v4124
        %v4156 = vadd.f32 %v4155, %v4125
        %v4157 = vadd.f32 %v4156, %v4126
        %v4158 = vrot.slane %v4157, 4
        %v4159 = vadd.f32 %v4157, %v4158
        %v4160 = vrot.slane %v4159, 2
        %v4161 = vadd.f32 %v4159, %v4160
        %v4162 = vrot.slane %v4161, 1
        %v4163 = vadd.f32 %v4161, %v4162
        %v4164 = vmul.f32 %v4095, %v4095
        %v4165 = vmul.f32 %v4096, %v4096
        %v4166 = vmul.f32 %v4097, %v4097
        %v4167 = vmul.f32 %v4098, %v4098
        %v4168 = vmul.f32 %v4099, %v4099
        %v4169 = vmul.f32 %v4100, %v4100
        %v4170 = vmul.f32 %v4101, %v4101
        %v4171 = vmul.f32 %v4102, %v4102
        %v4172 = vmul.f32 %v4103, %v4103
        %v4173 = vmul.f32 %v4104, %v4104
        %v4174 = vmul.f32 %v4105, %v4105
        %v4175 = vmul.f32 %v4106, %v4106
        %v4176 = vmul.f32 %v4107, %v4107
        %v4177 = vmul.f32 %v4108, %v4108
        %v4178 = vmul.f32 %v4109, %v4109
        %v4179 = vmul.f32 %v4110, %v4110
        %v4180 = vmul.f32 %v4111, %v4111
        %v4181 = vmul.f32 %v4112, %v4112
        %v4182 = vmul.f32 %v4113, %v4113
        %v4183 = vmul.f32 %v4114, %v4114
        %v4184 = vmul.f32 %v4115, %v4115
        %v4185 = vmul.f32 %v4116, %v4116
        %v4186 = vmul.f32 %v4117, %v4117
        %v4187 = vmul.f32 %v4118, %v4118
        %v4188 = vmul.f32 %v4119, %v4119
        %v4189 = vmul.f32 %v4120, %v4120
        %v4190 = vmul.f32 %v4121, %v4121
        %v4191 = vmul.f32 %v4122, %v4122
        %v4192 = vmul.f32 %v4123, %v4123
        %v4193 = vmul.f32 %v4124, %v4124
        %v4194 = vmul.f32 %v4125, %v4125
        %v4195 = vmul.f32 %v4126, %v4126
        %v4196 = vadd.f32 %v4164, %v4165
        %v4197 = vadd.f32 %v4196, %v4166
        %v4198 = vadd.f32 %v4197, %v4167
        %v4199 = vadd.f32 %v4198, %v4168
        %v4200 = vadd.f32 %v4199, %v4169
        %v4201 = vadd.f32 %v4200, %v4170
        %v4202 = vadd.f32 %v4201, %v4171
        %v4203 = vadd.f32 %v4202, %v4172
        %v4204 = vadd.f32 %v4203, %v4173
        %v4205 = vadd.f32 %v4204, %v4174
        %v4206 = vadd.f32 %v4205, %v4175
        %v4207 = vadd.f32 %v4206, %v4176
        %v4208 = vadd.f32 %v4207, %v4177
        %v4209 = vadd.f32 %v4208, %v4178
        %v4210 = vadd.f32 %v4209, %v4179
        %v4211 = vadd.f32 %v4210, %v4180
        %v4212 = vadd.f32 %v4211, %v4181
        %v4213 = vadd.f32 %v4212, %v4182
        %v4214 = vadd.f32 %v4213, %v4183
        %v4215 = vadd.f32 %v4214, %v4184
        %v4216 = vadd.f32 %v4215, %v4185
        %v4217 = vadd.f32 %v4216, %v4186
        %v4218 = vadd.f32 %v4217, %v4187
        %v4219 = vadd.f32 %v4218, %v4188
        %v4220 = vadd.f32 %v4219, %v4189
        %v4221 = vadd.f32 %v4220, %v4190
        %v4222 = vadd.f32 %v4221, %v4191
        %v4223 = vadd.f32 %v4222, %v4192
        %v4224 = vadd.f32 %v4223, %v4193
        %v4225 = vadd.f32 %v4224, %v4194
        %v4226 = vadd.f32 %v4225, %v4195
        %v4227 = vrot.slane %v4226, 4
        %v4228 = vadd.f32 %v4226, %v4227
        %v4229 = vrot.slane %v4228, 2
        %v4230 = vadd.f32 %v4228, %v4229
        %v4231 = vrot.slane %v4230, 1
        %v4232 = vadd.f32 %v4230, %v4231
        %vm4233 = vcmask 1040384
        %v4234 = vsel %vm4233, %v4163, %v4232
        %4235 = vst [vmem:[%s136] sm:$0x3] %v4234
        %s4236 = sand.u32 %s71, 1
        %s4237 = scalar_lea.sflag [#allocation3], %s4236
        %s4238 = sand.u32 %s71, 1
        %s4239 = smul.addr %s4238, 2
        %s4240 = scalar_lea.vmem [#allocation2], %s4239
        // Predicated region
        $region29: #{tpu_custom_call.1} parent=27 // pred_check
          %p4241 = pneg %p81
        $region30: #{tpu_custom_call.1} parent=27 // pred_check_branch
          %4243 = sbr.rel (%p4241) target = $region32
        $region31: #{tpu_custom_call.1} parent=27 // pred_region
          %s4245 = ssub.s32 32, 32
          %4246 = vsyncadd %s4237, %s4245
          %s4247 = smul.addr %s16, 32
          %s4248 = scalar_lea.hbm %s2, %s4247
          %s4250 = sshll.u32 %s4240, 4
          %s4251 = int_to_ptr.vmem [resolvable:$true] %s4250
          %4253 = dma.vmem_to_hbm [thread:$0]  %s4251, 32, %s4248, %s4237
        $region32: #{tpu_custom_call.1} parent=27 // pred_fallthru
          _
      $region28: #{tpu_custom_call.1} parent=5 // pred_fallthru
        _
      %p4254 = scmp.le.s32.totalorder 2, %s11
      // Predicated region
      $region33: #{tpu_custom_call.1} parent=5 // pred_check
        %p4255 = pneg %p4254
      $region34: #{tpu_custom_call.1} parent=5 // pred_check_branch
        %4257 = sbr.rel (%p4255) target = $region36
      $region35: #{tpu_custom_call.1} parent=5 // pred_region
        %s4258 = ssub.s32 %s11, 2
        // Predicated region
        $region37: #{tpu_custom_call.1} parent=35 // pred_check
          %p4259 = pneg %p87
        $region38: #{tpu_custom_call.1} parent=35 // pred_check_branch
          %4261 = sbr.rel (%p4259) target = $region40
        $region39: #{tpu_custom_call.1} parent=35 // pred_region
          %s4262 = sand.u32 %s72, 1
          %s4263 = scalar_lea.sflag [#allocation3], %s4262
          %s4264 = sand.u32 %s72, 1
          %s4265 = smul.addr %s4264, 2
          %s4266 = scalar_lea.vmem [#allocation2], %s4265
          %4267 = dma.done %s4263, 32
        $region40: #{tpu_custom_call.1} parent=35 // pred_fallthru
          _
      $region36: #{tpu_custom_call.1} parent=5 // pred_fallthru
        _
    $region6: #{tpu_custom_call.1} parent=1 // loop_footer
      %s15 = sadd.s32 1, %s11
    $region7: #{tpu_custom_call.1} parent=1 // loop_footer_branch
      %10 = sbr.rel target = $region3
    $region8: #{tpu_custom_call.1} parent=1 // loop_exit
      _
    %4268 = vsyncpa [#allocation3], 1
    %s4269 = scalar_lea.sflag [#allocation3], 1
    %4270 = vsyncpa %s4269, 1

</llo_original>
